<compile_context>
chip_gen: v5e
topology: v5e:2x2
jax: 0.10.0
libtpu: 0.0.40
codegen_flags: <defaults>
</compile_context>

<pallas_src>
import functools

import jax
import jax.numpy as jnp
from jax.experimental import pallas as pl
from jax.experimental.pallas import tpu as pltpu


# --------------------------- fused MHA block kernel ---------------------------

def _mha_block_kernel(qin_ref, kin_ref, vin_ref, res_ref,
                      wq_ref, bq_ref, wk_ref, bk_ref, wv_ref, bv_ref,
                      wo_ref, bo_ref, g_ref, b_ref, o_ref,
                      *, nhead, eps, matmul_dtype):
    """One batch element: LayerNorm(res + MHA(qin, kin, vin)).

    Activation refs are (1, L, D); weights (D, D); biases / LN params (1, D).
    """
    qin = qin_ref[0]                                  # (T, D)
    kin = kin_ref[0]                                  # (S, D)
    vin = vin_ref[0]                                  # (S, D)
    res = res_ref[0].astype(jnp.float32)              # (T, D)

    D = qin.shape[-1]
    hd = D // nhead
    scale = 1.0 / (hd ** 0.5)

    def proj(x, w_ref, b_ref_):
        y = jnp.dot(x.astype(matmul_dtype), w_ref[...].astype(matmul_dtype),
                    preferred_element_type=jnp.float32)
        return y + b_ref_[...].astype(jnp.float32)

    q = proj(qin, wq_ref, bq_ref) * scale              # scale folded into q
    k = proj(kin, wk_ref, bk_ref)
    v = proj(vin, wv_ref, bv_ref)

    # Per-head attention with 2-D matmuls (static unroll over heads keeps the
    # key-length axis on lanes and avoids 3-D reshapes/transposes).
    head_outs = []
    for h in range(nhead):
        lo, hi = h * hd, (h + 1) * hd
        qh = q[:, lo:hi].astype(matmul_dtype)          # (T, hd)
        kh = k[:, lo:hi].astype(matmul_dtype)          # (S, hd)
        vh = v[:, lo:hi].astype(matmul_dtype)          # (S, hd)
        s = jax.lax.dot_general(qh, kh, (((1,), (1,)), ((), ())),
                                preferred_element_type=jnp.float32)   # (T, S)
        s = s - jnp.max(s, axis=-1, keepdims=True)
        p = jnp.exp(s)
        p = p * pl.reciprocal(jnp.sum(p, axis=-1, keepdims=True), approx=True)
        head_outs.append(jnp.dot(p.astype(matmul_dtype), vh,
                                 preferred_element_type=jnp.float32))  # (T, hd)
    ctx = jnp.concatenate(head_outs, axis=-1)          # (T, D)

    attn_out = jnp.dot(ctx.astype(matmul_dtype), wo_ref[...].astype(matmul_dtype),
                       preferred_element_type=jnp.float32)
    attn_out = attn_out + bo_ref[...].astype(jnp.float32)

    # residual add + LayerNorm (stats in f32)
    z = res + attn_out
    mu = jnp.mean(z, axis=-1, keepdims=True)
    var = jnp.mean((z - mu) ** 2, axis=-1, keepdims=True)
    zn = (z - mu) * jax.lax.rsqrt(var + eps)
    out = zn * g_ref[...].astype(jnp.float32) + b_ref[...].astype(jnp.float32)
    o_ref[0] = out.astype(o_ref.dtype)


def mha_block(q_in, k_in, v_in, residual, attn_p, ln_gamma, ln_beta, nhead,
              eps=1e-5, matmul_dtype=jnp.bfloat16):
    """Batch-first fused attention block.

    q_in / residual: (B, T, D); k_in / v_in: (B, S, D).
    Returns LayerNorm(residual + MHA(q_in, k_in, v_in)) : (B, T, D).
    """
    B, T, D = q_in.shape
    S = k_in.shape[1]

    def act_spec(L):
        return pl.BlockSpec((1, L, D), lambda b: (b, 0, 0))

    w_spec = pl.BlockSpec((D, D), lambda b: (0, 0))
    v_spec = pl.BlockSpec((1, D), lambda b: (0, 0))

    kernel = functools.partial(_mha_block_kernel, nhead=nhead, eps=eps,
                               matmul_dtype=matmul_dtype)
    return pl.pallas_call(
        kernel,
        grid=(B,),
        out_shape=jax.ShapeDtypeStruct((B, T, D), q_in.dtype),
        in_specs=[act_spec(T), act_spec(S), act_spec(S), act_spec(T),
                  w_spec, v_spec,     # wq, bq
                  w_spec, v_spec,     # wk, bk
                  w_spec, v_spec,     # wv, bv
                  w_spec, v_spec,     # wo, bo
                  v_spec, v_spec],    # gamma, beta
        out_specs=act_spec(T),
        compiler_params=pltpu.CompilerParams(dimension_semantics=("parallel",)),
    )(q_in, k_in, v_in, residual,
      attn_p["wq"], attn_p["bq"].reshape(1, D),
      attn_p["wk"], attn_p["bk"].reshape(1, D),
      attn_p["wv"], attn_p["bv"].reshape(1, D),
      attn_p["wo"], attn_p["bo"].reshape(1, D),
      ln_gamma.reshape(1, D), ln_beta.reshape(1, D))


# --------------------------- fused FFN block kernel ---------------------------

def _ffn_block_kernel(x_ref, w1_ref, b1_ref, w2_ref, b2_ref, g_ref, b_ref, o_ref,
                      *, eps, matmul_dtype):
    """LayerNorm(x + linear2(relu(linear1(x)))) on a (block_rows, D) tile."""
    x = x_ref[...].astype(jnp.float32)                 # (bn, D)

    h = jnp.dot(x.astype(matmul_dtype), w1_ref[...].astype(matmul_dtype),
                preferred_element_type=jnp.float32)
    h = jnp.maximum(h + b1_ref[...].astype(jnp.float32), 0.0)

    y = jnp.dot(h.astype(matmul_dtype), w2_ref[...].astype(matmul_dtype),
                preferred_element_type=jnp.float32)
    y = y + b2_ref[...].astype(jnp.float32)

    z = x + y
    mu = jnp.mean(z, axis=-1, keepdims=True)
    var = jnp.mean((z - mu) ** 2, axis=-1, keepdims=True)
    zn = (z - mu) * jax.lax.rsqrt(var + eps)
    out = zn * g_ref[...].astype(jnp.float32) + b_ref[...].astype(jnp.float32)
    o_ref[...] = out.astype(o_ref.dtype)


def ffn_block(x, w1, b1, w2, b2, gamma, beta, eps=1e-5,
              matmul_dtype=jnp.bfloat16, max_block_rows=512):
    """x: (N, D). Fused FFN + residual + LayerNorm, row-tiled with a parallel grid."""
    N, D = x.shape
    FF = w1.shape[1]

    # Row tile: whole thing if small, else a clean divisor tile (keeps blocks 8-aligned).
    if N <= max_block_rows or N % max_block_rows != 0:
        bn = N
    else:
        bn = max_block_rows
    grid = (N // bn,)

    kernel = functools.partial(_ffn_block_kernel, eps=eps, matmul_dtype=matmul_dtype)
    const = lambda shape: pl.BlockSpec(shape, lambda i: (0, 0))
    return pl.pallas_call(
        kernel,
        grid=grid,
        out_shape=jax.ShapeDtypeStruct((N, D), x.dtype),
        in_specs=[pl.BlockSpec((bn, D), lambda i: (i, 0)),
                  const((D, FF)), const((1, FF)),
                  const((FF, D)), const((1, D)),
                  const((1, D)), const((1, D))],
        out_specs=pl.BlockSpec((bn, D), lambda i: (i, 0)),
        compiler_params=pltpu.CompilerParams(dimension_semantics=("parallel",)),
    )(x, w1, b1.reshape(1, FF), w2, b2.reshape(1, D),
      gamma.reshape(1, D), beta.reshape(1, D))


# ------------------------------ layer forward ------------------------------

def _with_pos(x, pos):
    return x if pos is None else x + pos


def decoder_layer_forward(params, tgt, memory, pos=None, query_pos=None,
                          nhead=4, normalize_before=False,
                          matmul_dtype=jnp.bfloat16):
    """TransformerDecoderLayer.forward_post (eval / dropout=0).

    tgt: (T, B, D), memory: (S, B, D) — sequence-first, like nn.MultiheadAttention.
    """
    assert not normalize_before, "TODO(synk): pre-norm path not implemented"
    T, B, D = tgt.shape

    # Single layout change to batch-first so kernels grid over B / rows;
    # pos embeddings are tiny elementwise adds left to XLA.
    tgt_b = jnp.transpose(tgt, (1, 0, 2))                       # (B, T, D)
    mem_b = jnp.transpose(memory, (1, 0, 2))                    # (B, S, D)
    qpos_b = None if query_pos is None else jnp.transpose(query_pos, (1, 0, 2))
    pos_b = None if pos is None else jnp.transpose(pos, (1, 0, 2))

    # --- self-attention block: q = k = tgt + query_pos, v = tgt; + residual + LN1
    q = _with_pos(tgt_b, qpos_b)
    tgt_b = mha_block(q, q, tgt_b, tgt_b, params["self_attn"],
                      params["norm1_g"], params["norm1_b"], nhead,
                      matmul_dtype=matmul_dtype)

    # --- cross-attention block: q = tgt + query_pos, k = memory + pos, v = memory
    tgt_b = mha_block(_with_pos(tgt_b, qpos_b), _with_pos(mem_b, pos_b), mem_b,
                      tgt_b, params["cross_attn"],
                      params["norm2_g"], params["norm2_b"], nhead,
                      matmul_dtype=matmul_dtype)

    # --- feed-forward block: linear1 -> relu -> linear2 ; + residual + LN3
    x = tgt_b.reshape(B * T, D)
    x = ffn_block(x, params["w1"], params["b1"], params["w2"], params["b2"],
                  params["norm3_g"], params["norm3_b"], matmul_dtype=matmul_dtype)
    tgt_b = x.reshape(B, T, D)

    return jnp.transpose(tgt_b, (1, 0, 2))                      # back to (T, B, D)


# ------------------------------ parameter init ------------------------------

def _init_mha(key, d, std=0.02):
    ks = jax.random.split(key, 4)
    return {
        "wq": jax.random.normal(ks[0], (d, d), jnp.float32) * std,
        "bq": jnp.zeros((d,), jnp.float32),
        "wk": jax.random.normal(ks[1], (d, d), jnp.float32) * std,
        "bk": jnp.zeros((d,), jnp.float32),
        "wv": jax.random.normal(ks[2], (d, d), jnp.float32) * std,
        "bv": jnp.zeros((d,), jnp.float32),
        "wo": jax.random.normal(ks[3], (d, d), jnp.float32) * std,
        "bo": jnp.zeros((d,), jnp.float32),
    }


def init_decoder_layer_params(key, d_model, dim_ff, std=0.02):
    k_sa, k_ca, k_w1, k_w2 = jax.random.split(key, 4)
    return {
        "self_attn": _init_mha(k_sa, d_model),
        "cross_attn": _init_mha(k_ca, d_model),
        "w1": jax.random.normal(k_w1, (d_model, dim_ff), jnp.float32) * std,
        "b1": jnp.zeros((dim_ff,), jnp.float32),
        "w2": jax.random.normal(k_w2, (dim_ff, d_model), jnp.float32) * std,
        "b2": jnp.zeros((d_model,), jnp.float32),
        "norm1_g": jnp.ones((d_model,), jnp.float32),
        "norm1_b": jnp.zeros((d_model,), jnp.float32),
        "norm2_g": jnp.ones((d_model,), jnp.float32),
        "norm2_b": jnp.zeros((d_model,), jnp.float32),
        "norm3_g": jnp.ones((d_model,), jnp.float32),
        "norm3_b": jnp.zeros((d_model,), jnp.float32),
    }


# ----------------------------------- main -----------------------------------

if __name__ == "__main__":
    # Small demo shapes: T=8 queries, S=16 memory tokens, B=2, d_model=32, 4 heads, ff=64.
    T, S, B, D, NHEAD, FF = 8, 16, 2, 32, 4, 64

    root = jax.random.PRNGKey(0)
    k_params, k_mem, k_qpos, k_pos = jax.random.split(root, 4)

    params = init_decoder_layer_params(k_params, D, FF)

    tgt = jnp.zeros((T, B, D), jnp.float32)                     # DETR-style zero queries
    memory = jax.random.normal(k_mem, (S, B, D), jnp.float32)
    query_pos = jax.random.normal(k_qpos, (T, B, D), jnp.float32)
    pos = jax.random.normal(k_pos, (S, B, D), jnp.float32)

    fwd = jax.jit(functools.partial(decoder_layer_forward, nhead=NHEAD))
    out = fwd(params, tgt, memory, pos, query_pos)
    out = jax.block_until_ready(out)

    assert out.shape == (T, B, D)
    assert bool(jnp.all(jnp.isfinite(out)))
    print("KERNEL_OK")
</pallas_src>

<mosaic_0001>
module attributes {stable_mosaic.version = 11 : i64} {
  func.func @_mha_block_kernel(%arg0: i32, %arg1: memref<1x8x32xf32, #tpu.memory_space<vmem>>, %arg2: memref<1x8x32xf32, #tpu.memory_space<vmem>>, %arg3: memref<1x8x32xf32, #tpu.memory_space<vmem>>, %arg4: memref<1x8x32xf32, #tpu.memory_space<vmem>>, %arg5: memref<32x32xf32, #tpu.memory_space<vmem>>, %arg6: memref<1x32xf32, #tpu.memory_space<vmem>>, %arg7: memref<32x32xf32, #tpu.memory_space<vmem>>, %arg8: memref<1x32xf32, #tpu.memory_space<vmem>>, %arg9: memref<32x32xf32, #tpu.memory_space<vmem>>, %arg10: memref<1x32xf32, #tpu.memory_space<vmem>>, %arg11: memref<32x32xf32, #tpu.memory_space<vmem>>, %arg12: memref<1x32xf32, #tpu.memory_space<vmem>>, %arg13: memref<1x32xf32, #tpu.memory_space<vmem>>, %arg14: memref<1x32xf32, #tpu.memory_space<vmem>>, %arg15: memref<1x8x32xf32, #tpu.memory_space<vmem>>) attributes {dimension_semantics = [#tpu.dimension_semantics<parallel>], iteration_bounds = array<i64: 2>, scalar_prefetch = 0 : i64, scratch_operands = 0 : i64, tpu.core_type = #tpu.core_type<tc>, window_params = [{transform_indices = @transform_0, window_bounds = array<i64: 1, 8, 32>}, {transform_indices = @transform_1, window_bounds = array<i64: 1, 8, 32>}, {transform_indices = @transform_2, window_bounds = array<i64: 1, 8, 32>}, {transform_indices = @transform_3, window_bounds = array<i64: 1, 8, 32>}, {pipeline_mode = #tpu.pipeline_mode<synchronous>, transform_indices = @transform_4, window_bounds = array<i64: 32, 32>}, {pipeline_mode = #tpu.pipeline_mode<synchronous>, transform_indices = @transform_5, window_bounds = array<i64: 1, 32>}, {pipeline_mode = #tpu.pipeline_mode<synchronous>, transform_indices = @transform_6, window_bounds = array<i64: 32, 32>}, {pipeline_mode = #tpu.pipeline_mode<synchronous>, transform_indices = @transform_7, window_bounds = array<i64: 1, 32>}, {pipeline_mode = #tpu.pipeline_mode<synchronous>, transform_indices = @transform_8, window_bounds = array<i64: 32, 32>}, {pipeline_mode = #tpu.pipeline_mode<synchronous>, transform_indices = @transform_9, window_bounds = array<i64: 1, 32>}, {pipeline_mode = #tpu.pipeline_mode<synchronous>, transform_indices = @transform_10, window_bounds = array<i64: 32, 32>}, {pipeline_mode = #tpu.pipeline_mode<synchronous>, transform_indices = @transform_11, window_bounds = array<i64: 1, 32>}, {pipeline_mode = #tpu.pipeline_mode<synchronous>, transform_indices = @transform_12, window_bounds = array<i64: 1, 32>}, {pipeline_mode = #tpu.pipeline_mode<synchronous>, transform_indices = @transform_13, window_bounds = array<i64: 1, 32>}, {transform_indices = @transform_14, window_bounds = array<i64: 1, 8, 32>}]} {
    %c0 = arith.constant 0 : index
    %c0_0 = arith.constant 0 : index
    %c0_1 = arith.constant 0 : index
    %0 = vector.load %arg1[%c0, %c0_0, %c0_1] : memref<1x8x32xf32, #tpu.memory_space<vmem>>, vector<1x8x32xf32>
    %1 = vector.shape_cast %0 : vector<1x8x32xf32> to vector<8x32xf32>
    %c0_2 = arith.constant 0 : index
    %c0_3 = arith.constant 0 : index
    %c0_4 = arith.constant 0 : index
    %2 = vector.load %arg2[%c0_2, %c0_3, %c0_4] : memref<1x8x32xf32, #tpu.memory_space<vmem>>, vector<1x8x32xf32>
    %3 = vector.shape_cast %2 : vector<1x8x32xf32> to vector<8x32xf32>
    %c0_5 = arith.constant 0 : index
    %c0_6 = arith.constant 0 : index
    %c0_7 = arith.constant 0 : index
    %4 = vector.load %arg3[%c0_5, %c0_6, %c0_7] : memref<1x8x32xf32, #tpu.memory_space<vmem>>, vector<1x8x32xf32>
    %5 = vector.shape_cast %4 : vector<1x8x32xf32> to vector<8x32xf32>
    %c0_8 = arith.constant 0 : index
    %c0_9 = arith.constant 0 : index
    %c0_10 = arith.constant 0 : index
    %6 = vector.load %arg4[%c0_8, %c0_9, %c0_10] : memref<1x8x32xf32, #tpu.memory_space<vmem>>, vector<1x8x32xf32>
    %7 = vector.shape_cast %6 : vector<1x8x32xf32> to vector<8x32xf32>
    %8 = arith.truncf %1 : vector<8x32xf32> to vector<8x32xbf16>
    %c0_11 = arith.constant 0 : index
    %c0_12 = arith.constant 0 : index
    %9 = vector.load %arg5[%c0_11, %c0_12] : memref<32x32xf32, #tpu.memory_space<vmem>>, vector<32x32xf32>
    %10 = arith.truncf %9 : vector<32x32xf32> to vector<32x32xbf16>
    %cst = arith.constant dense<0.000000e+00> : vector<8x32xf32>
    %11 = tpu.matmul %8, %10, %cst {dimension_numbers = #tpu.dot_dimension_numbers<[1], [0], [0], [1], [0, 0, 1, 1], [], []>} : vector<8x32xbf16>, vector<32x32xbf16>, vector<8x32xf32> -> vector<8x32xf32>
    %c0_13 = arith.constant 0 : index
    %c0_14 = arith.constant 0 : index
    %12 = vector.load %arg6[%c0_13, %c0_14] : memref<1x32xf32, #tpu.memory_space<vmem>>, vector<1x32xf32>
    %13 = vector.broadcast %12 : vector<1x32xf32> to vector<8x32xf32>
    %14 = arith.addf %11, %13 : vector<8x32xf32>
    %cst_15 = arith.constant 0.353553385 : f32
    %15 = vector.broadcast %cst_15 : f32 to vector<8x32xf32>
    %16 = arith.mulf %14, %15 : vector<8x32xf32>
    %17 = arith.truncf %3 : vector<8x32xf32> to vector<8x32xbf16>
    %c0_16 = arith.constant 0 : index
    %c0_17 = arith.constant 0 : index
    %18 = vector.load %arg7[%c0_16, %c0_17] : memref<32x32xf32, #tpu.memory_space<vmem>>, vector<32x32xf32>
    %19 = arith.truncf %18 : vector<32x32xf32> to vector<32x32xbf16>
    %cst_18 = arith.constant dense<0.000000e+00> : vector<8x32xf32>
    %20 = tpu.matmul %17, %19, %cst_18 {dimension_numbers = #tpu.dot_dimension_numbers<[1], [0], [0], [1], [0, 0, 1, 1], [], []>} : vector<8x32xbf16>, vector<32x32xbf16>, vector<8x32xf32> -> vector<8x32xf32>
    %c0_19 = arith.constant 0 : index
    %c0_20 = arith.constant 0 : index
    %21 = vector.load %arg8[%c0_19, %c0_20] : memref<1x32xf32, #tpu.memory_space<vmem>>, vector<1x32xf32>
    %22 = vector.broadcast %21 : vector<1x32xf32> to vector<8x32xf32>
    %23 = arith.addf %20, %22 : vector<8x32xf32>
    %24 = arith.truncf %5 : vector<8x32xf32> to vector<8x32xbf16>
    %c0_21 = arith.constant 0 : index
    %c0_22 = arith.constant 0 : index
    %25 = vector.load %arg9[%c0_21, %c0_22] : memref<32x32xf32, #tpu.memory_space<vmem>>, vector<32x32xf32>
    %26 = arith.truncf %25 : vector<32x32xf32> to vector<32x32xbf16>
    %cst_23 = arith.constant dense<0.000000e+00> : vector<8x32xf32>
    %27 = tpu.matmul %24, %26, %cst_23 {dimension_numbers = #tpu.dot_dimension_numbers<[1], [0], [0], [1], [0, 0, 1, 1], [], []>} : vector<8x32xbf16>, vector<32x32xbf16>, vector<8x32xf32> -> vector<8x32xf32>
    %c0_24 = arith.constant 0 : index
    %c0_25 = arith.constant 0 : index
    %28 = vector.load %arg10[%c0_24, %c0_25] : memref<1x32xf32, #tpu.memory_space<vmem>>, vector<1x32xf32>
    %29 = vector.broadcast %28 : vector<1x32xf32> to vector<8x32xf32>
    %30 = arith.addf %27, %29 : vector<8x32xf32>
    %31 = vector.extract_strided_slice %16 {offsets = [0, 0], sizes = [8, 8], strides = [1, 1]} : vector<8x32xf32> to vector<8x8xf32>
    %32 = arith.truncf %31 : vector<8x8xf32> to vector<8x8xbf16>
    %33 = vector.extract_strided_slice %23 {offsets = [0, 0], sizes = [8, 8], strides = [1, 1]} : vector<8x32xf32> to vector<8x8xf32>
    %34 = arith.truncf %33 : vector<8x8xf32> to vector<8x8xbf16>
    %35 = vector.extract_strided_slice %30 {offsets = [0, 0], sizes = [8, 8], strides = [1, 1]} : vector<8x32xf32> to vector<8x8xf32>
    %36 = arith.truncf %35 : vector<8x8xf32> to vector<8x8xbf16>
    %cst_26 = arith.constant dense<0.000000e+00> : vector<8x8xf32>
    %37 = tpu.matmul %32, %34, %cst_26 {dimension_numbers = #tpu.dot_dimension_numbers<[1], [1], [0], [0], [0, 0, 1, 0], [], []>} : vector<8x8xbf16>, vector<8x8xbf16>, vector<8x8xf32> -> vector<8x8xf32>
    %cst_27 = arith.constant dense<0xFF800000> : vector<8xf32>
    %38 = vector.multi_reduction <maximumf>, %37, %cst_27 [1] : vector<8x8xf32> to vector<8xf32>
    %39 = vector.shape_cast %38 : vector<8xf32> to vector<8x1xf32>
    %40 = vector.broadcast %39 : vector<8x1xf32> to vector<8x8xf32>
    %41 = arith.subf %37, %40 : vector<8x8xf32>
    %42 = math.exp %41 : vector<8x8xf32>
    %cst_28 = arith.constant dense<0.000000e+00> : vector<8xf32>
    %43 = vector.multi_reduction <add>, %42, %cst_28 [1] : vector<8x8xf32> to vector<8xf32>
    %44 = vector.shape_cast %43 : vector<8xf32> to vector<8x1xf32>
    %45 = tpu.reciprocal %44 {approx = true} : vector<8x1xf32> -> vector<8x1xf32>
    %46 = vector.broadcast %45 : vector<8x1xf32> to vector<8x8xf32>
    %47 = arith.mulf %42, %46 : vector<8x8xf32>
    %48 = arith.truncf %47 : vector<8x8xf32> to vector<8x8xbf16>
    %cst_29 = arith.constant dense<0.000000e+00> : vector<8x8xf32>
    %49 = tpu.matmul %48, %36, %cst_29 {dimension_numbers = #tpu.dot_dimension_numbers<[1], [0], [0], [1], [0, 0, 1, 1], [], []>} : vector<8x8xbf16>, vector<8x8xbf16>, vector<8x8xf32> -> vector<8x8xf32>
    %50 = vector.extract_strided_slice %16 {offsets = [0, 8], sizes = [8, 8], strides = [1, 1]} : vector<8x32xf32> to vector<8x8xf32>
    %51 = arith.truncf %50 : vector<8x8xf32> to vector<8x8xbf16>
    %52 = vector.extract_strided_slice %23 {offsets = [0, 8], sizes = [8, 8], strides = [1, 1]} : vector<8x32xf32> to vector<8x8xf32>
    %53 = arith.truncf %52 : vector<8x8xf32> to vector<8x8xbf16>
    %54 = vector.extract_strided_slice %30 {offsets = [0, 8], sizes = [8, 8], strides = [1, 1]} : vector<8x32xf32> to vector<8x8xf32>
    %55 = arith.truncf %54 : vector<8x8xf32> to vector<8x8xbf16>
    %cst_30 = arith.constant dense<0.000000e+00> : vector<8x8xf32>
    %56 = tpu.matmul %51, %53, %cst_30 {dimension_numbers = #tpu.dot_dimension_numbers<[1], [1], [0], [0], [0, 0, 1, 0], [], []>} : vector<8x8xbf16>, vector<8x8xbf16>, vector<8x8xf32> -> vector<8x8xf32>
    %cst_31 = arith.constant dense<0xFF800000> : vector<8xf32>
    %57 = vector.multi_reduction <maximumf>, %56, %cst_31 [1] : vector<8x8xf32> to vector<8xf32>
    %58 = vector.shape_cast %57 : vector<8xf32> to vector<8x1xf32>
    %59 = vector.broadcast %58 : vector<8x1xf32> to vector<8x8xf32>
    %60 = arith.subf %56, %59 : vector<8x8xf32>
    %61 = math.exp %60 : vector<8x8xf32>
    %cst_32 = arith.constant dense<0.000000e+00> : vector<8xf32>
    %62 = vector.multi_reduction <add>, %61, %cst_32 [1] : vector<8x8xf32> to vector<8xf32>
    %63 = vector.shape_cast %62 : vector<8xf32> to vector<8x1xf32>
    %64 = tpu.reciprocal %63 {approx = true} : vector<8x1xf32> -> vector<8x1xf32>
    %65 = vector.broadcast %64 : vector<8x1xf32> to vector<8x8xf32>
    %66 = arith.mulf %61, %65 : vector<8x8xf32>
    %67 = arith.truncf %66 : vector<8x8xf32> to vector<8x8xbf16>
    %cst_33 = arith.constant dense<0.000000e+00> : vector<8x8xf32>
    %68 = tpu.matmul %67, %55, %cst_33 {dimension_numbers = #tpu.dot_dimension_numbers<[1], [0], [0], [1], [0, 0, 1, 1], [], []>} : vector<8x8xbf16>, vector<8x8xbf16>, vector<8x8xf32> -> vector<8x8xf32>
    %69 = vector.extract_strided_slice %16 {offsets = [0, 16], sizes = [8, 8], strides = [1, 1]} : vector<8x32xf32> to vector<8x8xf32>
    %70 = arith.truncf %69 : vector<8x8xf32> to vector<8x8xbf16>
    %71 = vector.extract_strided_slice %23 {offsets = [0, 16], sizes = [8, 8], strides = [1, 1]} : vector<8x32xf32> to vector<8x8xf32>
    %72 = arith.truncf %71 : vector<8x8xf32> to vector<8x8xbf16>
    %73 = vector.extract_strided_slice %30 {offsets = [0, 16], sizes = [8, 8], strides = [1, 1]} : vector<8x32xf32> to vector<8x8xf32>
    %74 = arith.truncf %73 : vector<8x8xf32> to vector<8x8xbf16>
    %cst_34 = arith.constant dense<0.000000e+00> : vector<8x8xf32>
    %75 = tpu.matmul %70, %72, %cst_34 {dimension_numbers = #tpu.dot_dimension_numbers<[1], [1], [0], [0], [0, 0, 1, 0], [], []>} : vector<8x8xbf16>, vector<8x8xbf16>, vector<8x8xf32> -> vector<8x8xf32>
    %cst_35 = arith.constant dense<0xFF800000> : vector<8xf32>
    %76 = vector.multi_reduction <maximumf>, %75, %cst_35 [1] : vector<8x8xf32> to vector<8xf32>
    %77 = vector.shape_cast %76 : vector<8xf32> to vector<8x1xf32>
    %78 = vector.broadcast %77 : vector<8x1xf32> to vector<8x8xf32>
    %79 = arith.subf %75, %78 : vector<8x8xf32>
    %80 = math.exp %79 : vector<8x8xf32>
    %cst_36 = arith.constant dense<0.000000e+00> : vector<8xf32>
    %81 = vector.multi_reduction <add>, %80, %cst_36 [1] : vector<8x8xf32> to vector<8xf32>
    %82 = vector.shape_cast %81 : vector<8xf32> to vector<8x1xf32>
    %83 = tpu.reciprocal %82 {approx = true} : vector<8x1xf32> -> vector<8x1xf32>
    %84 = vector.broadcast %83 : vector<8x1xf32> to vector<8x8xf32>
    %85 = arith.mulf %80, %84 : vector<8x8xf32>
    %86 = arith.truncf %85 : vector<8x8xf32> to vector<8x8xbf16>
    %cst_37 = arith.constant dense<0.000000e+00> : vector<8x8xf32>
    %87 = tpu.matmul %86, %74, %cst_37 {dimension_numbers = #tpu.dot_dimension_numbers<[1], [0], [0], [1], [0, 0, 1, 1], [], []>} : vector<8x8xbf16>, vector<8x8xbf16>, vector<8x8xf32> -> vector<8x8xf32>
    %88 = vector.extract_strided_slice %16 {offsets = [0, 24], sizes = [8, 8], strides = [1, 1]} : vector<8x32xf32> to vector<8x8xf32>
    %89 = arith.truncf %88 : vector<8x8xf32> to vector<8x8xbf16>
    %90 = vector.extract_strided_slice %23 {offsets = [0, 24], sizes = [8, 8], strides = [1, 1]} : vector<8x32xf32> to vector<8x8xf32>
    %91 = arith.truncf %90 : vector<8x8xf32> to vector<8x8xbf16>
    %92 = vector.extract_strided_slice %30 {offsets = [0, 24], sizes = [8, 8], strides = [1, 1]} : vector<8x32xf32> to vector<8x8xf32>
    %93 = arith.truncf %92 : vector<8x8xf32> to vector<8x8xbf16>
    %cst_38 = arith.constant dense<0.000000e+00> : vector<8x8xf32>
    %94 = tpu.matmul %89, %91, %cst_38 {dimension_numbers = #tpu.dot_dimension_numbers<[1], [1], [0], [0], [0, 0, 1, 0], [], []>} : vector<8x8xbf16>, vector<8x8xbf16>, vector<8x8xf32> -> vector<8x8xf32>
    %cst_39 = arith.constant dense<0xFF800000> : vector<8xf32>
    %95 = vector.multi_reduction <maximumf>, %94, %cst_39 [1] : vector<8x8xf32> to vector<8xf32>
    %96 = vector.shape_cast %95 : vector<8xf32> to vector<8x1xf32>
    %97 = vector.broadcast %96 : vector<8x1xf32> to vector<8x8xf32>
    %98 = arith.subf %94, %97 : vector<8x8xf32>
    %99 = math.exp %98 : vector<8x8xf32>
    %cst_40 = arith.constant dense<0.000000e+00> : vector<8xf32>
    %100 = vector.multi_reduction <add>, %99, %cst_40 [1] : vector<8x8xf32> to vector<8xf32>
    %101 = vector.shape_cast %100 : vector<8xf32> to vector<8x1xf32>
    %102 = tpu.reciprocal %101 {approx = true} : vector<8x1xf32> -> vector<8x1xf32>
    %103 = vector.broadcast %102 : vector<8x1xf32> to vector<8x8xf32>
    %104 = arith.mulf %99, %103 : vector<8x8xf32>
    %105 = arith.truncf %104 : vector<8x8xf32> to vector<8x8xbf16>
    %cst_41 = arith.constant dense<0.000000e+00> : vector<8x8xf32>
    %106 = tpu.matmul %105, %93, %cst_41 {dimension_numbers = #tpu.dot_dimension_numbers<[1], [0], [0], [1], [0, 0, 1, 1], [], []>} : vector<8x8xbf16>, vector<8x8xbf16>, vector<8x8xf32> -> vector<8x8xf32>
    %107 = tpu.concatenate %49, %68, %87, %106 in 1 : vector<8x8xf32>, vector<8x8xf32>, vector<8x8xf32>, vector<8x8xf32> -> vector<8x32xf32>
    %108 = arith.truncf %107 : vector<8x32xf32> to vector<8x32xbf16>
    %c0_42 = arith.constant 0 : index
    %c0_43 = arith.constant 0 : index
    %109 = vector.load %arg11[%c0_42, %c0_43] : memref<32x32xf32, #tpu.memory_space<vmem>>, vector<32x32xf32>
    %110 = arith.truncf %109 : vector<32x32xf32> to vector<32x32xbf16>
    %cst_44 = arith.constant dense<0.000000e+00> : vector<8x32xf32>
    %111 = tpu.matmul %108, %110, %cst_44 {dimension_numbers = #tpu.dot_dimension_numbers<[1], [0], [0], [1], [0, 0, 1, 1], [], []>} : vector<8x32xbf16>, vector<32x32xbf16>, vector<8x32xf32> -> vector<8x32xf32>
    %c0_45 = arith.constant 0 : index
    %c0_46 = arith.constant 0 : index
    %112 = vector.load %arg12[%c0_45, %c0_46] : memref<1x32xf32, #tpu.memory_space<vmem>>, vector<1x32xf32>
    %113 = vector.broadcast %112 : vector<1x32xf32> to vector<8x32xf32>
    %114 = arith.addf %111, %113 : vector<8x32xf32>
    %115 = arith.addf %7, %114 : vector<8x32xf32>
    %cst_47 = arith.constant dense<0.000000e+00> : vector<8xf32>
    %116 = vector.multi_reduction <add>, %115, %cst_47 [1] : vector<8x32xf32> to vector<8xf32>
    %117 = vector.shape_cast %116 : vector<8xf32> to vector<8x1xf32>
    %cst_48 = arith.constant 3.200000e+01 : f32
    %118 = vector.broadcast %cst_48 : f32 to vector<8x1xf32>
    %119 = arith.divf %117, %118 : vector<8x1xf32>
    %120 = vector.broadcast %119 : vector<8x1xf32> to vector<8x32xf32>
    %121 = arith.subf %115, %120 : vector<8x32xf32>
    %122 = arith.mulf %121, %121 : vector<8x32xf32>
    %cst_49 = arith.constant dense<0.000000e+00> : vector<8xf32>
    %123 = vector.multi_reduction <add>, %122, %cst_49 [1] : vector<8x32xf32> to vector<8xf32>
    %124 = vector.shape_cast %123 : vector<8xf32> to vector<8x1xf32>
    %cst_50 = arith.constant 3.200000e+01 : f32
    %125 = vector.broadcast %cst_50 : f32 to vector<8x1xf32>
    %126 = arith.divf %124, %125 : vector<8x1xf32>
    %127 = vector.broadcast %119 : vector<8x1xf32> to vector<8x32xf32>
    %128 = arith.subf %115, %127 : vector<8x32xf32>
    %cst_51 = arith.constant 9.99999974E-6 : f32
    %129 = vector.broadcast %cst_51 : f32 to vector<8x1xf32>
    %130 = arith.addf %126, %129 : vector<8x1xf32>
    %131 = math.rsqrt %130 : vector<8x1xf32>
    %132 = vector.broadcast %131 : vector<8x1xf32> to vector<8x32xf32>
    %133 = arith.mulf %128, %132 : vector<8x32xf32>
    %c0_52 = arith.constant 0 : index
    %c0_53 = arith.constant 0 : index
    %134 = vector.load %arg13[%c0_52, %c0_53] : memref<1x32xf32, #tpu.memory_space<vmem>>, vector<1x32xf32>
    %135 = vector.broadcast %134 : vector<1x32xf32> to vector<8x32xf32>
    %136 = arith.mulf %133, %135 : vector<8x32xf32>
    %c0_54 = arith.constant 0 : index
    %c0_55 = arith.constant 0 : index
    %137 = vector.load %arg14[%c0_54, %c0_55] : memref<1x32xf32, #tpu.memory_space<vmem>>, vector<1x32xf32>
    %138 = vector.broadcast %137 : vector<1x32xf32> to vector<8x32xf32>
    %139 = arith.addf %136, %138 : vector<8x32xf32>
    %c0_56 = arith.constant 0 : index
    %c0_57 = arith.constant 0 : index
    %c0_58 = arith.constant 0 : index
    %140 = vector.load %arg15[%c0_56, %c0_57, %c0_58] : memref<1x8x32xf32, #tpu.memory_space<vmem>>, vector<1x8x32xf32>
    %141 = vector.shape_cast %140 : vector<1x8x32xf32> to vector<8x32xf32>
    %142 = vector.shape_cast %139 : vector<8x32xf32> to vector<1x8x32xf32>
    tpu.vector_store %arg15[%c0_56, %c0_57, %c0_58], %142 {strides = array<i32>} : memref<1x8x32xf32, #tpu.memory_space<vmem>>, vector<1x8x32xf32>,
    return
  }
  func.func @transform_0(%arg0: i32) -> (i32, i32, i32) {
    %c0_i32 = arith.constant 0 : i32
    %c0_i32_0 = arith.constant 0 : i32
    %c0_i32_1 = arith.constant 0 : i32
    return %arg0, %c0_i32, %c0_i32_0 : i32, i32, i32
  }
  func.func @transform_1(%arg0: i32) -> (i32, i32, i32) {
    %c0_i32 = arith.constant 0 : i32
    %c0_i32_0 = arith.constant 0 : i32
    %c0_i32_1 = arith.constant 0 : i32
    return %arg0, %c0_i32, %c0_i32_0 : i32, i32, i32
  }
  func.func @transform_2(%arg0: i32) -> (i32, i32, i32) {
    %c0_i32 = arith.constant 0 : i32
    %c0_i32_0 = arith.constant 0 : i32
    %c0_i32_1 = arith.constant 0 : i32
    return %arg0, %c0_i32, %c0_i32_0 : i32, i32, i32
  }
  func.func @transform_3(%arg0: i32) -> (i32, i32, i32) {
    %c0_i32 = arith.constant 0 : i32
    %c0_i32_0 = arith.constant 0 : i32
    %c0_i32_1 = arith.constant 0 : i32
    return %arg0, %c0_i32, %c0_i32_0 : i32, i32, i32
  }
  func.func @transform_4(%arg0: i32) -> (i32, i32) {
    %c0_i32 = arith.constant 0 : i32
    %c0_i32_0 = arith.constant 0 : i32
    %c0_i32_1 = arith.constant 0 : i32
    return %c0_i32, %c0_i32_0 : i32, i32
  }
  func.func @transform_5(%arg0: i32) -> (i32, i32) {
    %c0_i32 = arith.constant 0 : i32
    %c0_i32_0 = arith.constant 0 : i32
    %c0_i32_1 = arith.constant 0 : i32
    return %c0_i32, %c0_i32_0 : i32, i32
  }
  func.func @transform_6(%arg0: i32) -> (i32, i32) {
    %c0_i32 = arith.constant 0 : i32
    %c0_i32_0 = arith.constant 0 : i32
    %c0_i32_1 = arith.constant 0 : i32
    return %c0_i32, %c0_i32_0 : i32, i32
  }
  func.func @transform_7(%arg0: i32) -> (i32, i32) {
    %c0_i32 = arith.constant 0 : i32
    %c0_i32_0 = arith.constant 0 : i32
    %c0_i32_1 = arith.constant 0 : i32
    return %c0_i32, %c0_i32_0 : i32, i32
  }
  func.func @transform_8(%arg0: i32) -> (i32, i32) {
    %c0_i32 = arith.constant 0 : i32
    %c0_i32_0 = arith.constant 0 : i32
    %c0_i32_1 = arith.constant 0 : i32
    return %c0_i32, %c0_i32_0 : i32, i32
  }
  func.func @transform_9(%arg0: i32) -> (i32, i32) {
    %c0_i32 = arith.constant 0 : i32
    %c0_i32_0 = arith.constant 0 : i32
    %c0_i32_1 = arith.constant 0 : i32
    return %c0_i32, %c0_i32_0 : i32, i32
  }
  func.func @transform_10(%arg0: i32) -> (i32, i32) {
    %c0_i32 = arith.constant 0 : i32
    %c0_i32_0 = arith.constant 0 : i32
    %c0_i32_1 = arith.constant 0 : i32
    return %c0_i32, %c0_i32_0 : i32, i32
  }
  func.func @transform_11(%arg0: i32) -> (i32, i32) {
    %c0_i32 = arith.constant 0 : i32
    %c0_i32_0 = arith.constant 0 : i32
    %c0_i32_1 = arith.constant 0 : i32
    return %c0_i32, %c0_i32_0 : i32, i32
  }
  func.func @transform_12(%arg0: i32) -> (i32, i32) {
    %c0_i32 = arith.constant 0 : i32
    %c0_i32_0 = arith.constant 0 : i32
    %c0_i32_1 = arith.constant 0 : i32
    return %c0_i32, %c0_i32_0 : i32, i32
  }
  func.func @transform_13(%arg0: i32) -> (i32, i32) {
    %c0_i32 = arith.constant 0 : i32
    %c0_i32_0 = arith.constant 0 : i32
    %c0_i32_1 = arith.constant 0 : i32
    return %c0_i32, %c0_i32_0 : i32, i32
  }
  func.func @transform_14(%arg0: i32) -> (i32, i32, i32) {
    %c0_i32 = arith.constant 0 : i32
    %c0_i32_0 = arith.constant 0 : i32
    %c0_i32_1 = arith.constant 0 : i32
    return %arg0, %c0_i32, %c0_i32_0 : i32, i32, i32
  }
}

module attributes {stable_mosaic.version = 11 : i64} {
  func.func @_ffn_block_kernel(%arg0: i32, %arg1: memref<16x32xf32, #tpu.memory_space<vmem>>, %arg2: memref<32x64xf32, #tpu.memory_space<vmem>>, %arg3: memref<1x64xf32, #tpu.memory_space<vmem>>, %arg4: memref<64x32xf32, #tpu.memory_space<vmem>>, %arg5: memref<1x32xf32, #tpu.memory_space<vmem>>, %arg6: memref<1x32xf32, #tpu.memory_space<vmem>>, %arg7: memref<1x32xf32, #tpu.memory_space<vmem>>, %arg8: memref<16x32xf32, #tpu.memory_space<vmem>>) attributes {dimension_semantics = [#tpu.dimension_semantics<parallel>], iteration_bounds = array<i64: 1>, scalar_prefetch = 0 : i64, scratch_operands = 0 : i64, tpu.core_type = #tpu.core_type<tc>, window_params = [{transform_indices = @transform_0, window_bounds = array<i64: 16, 32>}, {pipeline_mode = #tpu.pipeline_mode<synchronous>, transform_indices = @transform_1, window_bounds = array<i64: 32, 64>}, {pipeline_mode = #tpu.pipeline_mode<synchronous>, transform_indices = @transform_2, window_bounds = array<i64: 1, 64>}, {pipeline_mode = #tpu.pipeline_mode<synchronous>, transform_indices = @transform_3, window_bounds = array<i64: 64, 32>}, {pipeline_mode = #tpu.pipeline_mode<synchronous>, transform_indices = @transform_4, window_bounds = array<i64: 1, 32>}, {pipeline_mode = #tpu.pipeline_mode<synchronous>, transform_indices = @transform_5, window_bounds = array<i64: 1, 32>}, {pipeline_mode = #tpu.pipeline_mode<synchronous>, transform_indices = @transform_6, window_bounds = array<i64: 1, 32>}, {transform_indices = @transform_7, window_bounds = array<i64: 16, 32>}]} {
    %c0 = arith.constant 0 : index
    %c0_0 = arith.constant 0 : index
    %0 = vector.load %arg1[%c0, %c0_0] : memref<16x32xf32, #tpu.memory_space<vmem>>, vector<16x32xf32>
    %1 = arith.truncf %0 : vector<16x32xf32> to vector<16x32xbf16>
    %c0_1 = arith.constant 0 : index
    %c0_2 = arith.constant 0 : index
    %2 = vector.load %arg2[%c0_1, %c0_2] : memref<32x64xf32, #tpu.memory_space<vmem>>, vector<32x64xf32>
    %3 = arith.truncf %2 : vector<32x64xf32> to vector<32x64xbf16>
    %cst = arith.constant dense<0.000000e+00> : vector<16x64xf32>
    %4 = tpu.matmul %1, %3, %cst {dimension_numbers = #tpu.dot_dimension_numbers<[1], [0], [0], [1], [0, 0, 1, 1], [], []>} : vector<16x32xbf16>, vector<32x64xbf16>, vector<16x64xf32> -> vector<16x64xf32>
    %c0_3 = arith.constant 0 : index
    %c0_4 = arith.constant 0 : index
    %5 = vector.load %arg3[%c0_3, %c0_4] : memref<1x64xf32, #tpu.memory_space<vmem>>, vector<1x64xf32>
    %6 = vector.broadcast %5 : vector<1x64xf32> to vector<16x64xf32>
    %7 = arith.addf %4, %6 : vector<16x64xf32>
    %cst_5 = arith.constant 0.000000e+00 : f32
    %8 = vector.broadcast %cst_5 : f32 to vector<16x64xf32>
    %9 = arith.maximumf %7, %8 : vector<16x64xf32>
    %10 = arith.truncf %9 : vector<16x64xf32> to vector<16x64xbf16>
    %c0_6 = arith.constant 0 : index
    %c0_7 = arith.constant 0 : index
    %11 = vector.load %arg4[%c0_6, %c0_7] : memref<64x32xf32, #tpu.memory_space<vmem>>, vector<64x32xf32>
    %12 = arith.truncf %11 : vector<64x32xf32> to vector<64x32xbf16>
    %cst_8 = arith.constant dense<0.000000e+00> : vector<16x32xf32>
    %13 = tpu.matmul %10, %12, %cst_8 {dimension_numbers = #tpu.dot_dimension_numbers<[1], [0], [0], [1], [0, 0, 1, 1], [], []>} : vector<16x64xbf16>, vector<64x32xbf16>, vector<16x32xf32> -> vector<16x32xf32>
    %c0_9 = arith.constant 0 : index
    %c0_10 = arith.constant 0 : index
    %14 = vector.load %arg5[%c0_9, %c0_10] : memref<1x32xf32, #tpu.memory_space<vmem>>, vector<1x32xf32>
    %15 = vector.broadcast %14 : vector<1x32xf32> to vector<16x32xf32>
    %16 = arith.addf %13, %15 : vector<16x32xf32>
    %17 = arith.addf %0, %16 : vector<16x32xf32>
    %cst_11 = arith.constant dense<0.000000e+00> : vector<16xf32>
    %18 = vector.multi_reduction <add>, %17, %cst_11 [1] : vector<16x32xf32> to vector<16xf32>
    %19 = vector.shape_cast %18 : vector<16xf32> to vector<16x1xf32>
    %cst_12 = arith.constant 3.200000e+01 : f32
    %20 = vector.broadcast %cst_12 : f32 to vector<16x1xf32>
    %21 = arith.divf %19, %20 : vector<16x1xf32>
    %22 = vector.broadcast %21 : vector<16x1xf32> to vector<16x32xf32>
    %23 = arith.subf %17, %22 : vector<16x32xf32>
    %24 = arith.mulf %23, %23 : vector<16x32xf32>
    %cst_13 = arith.constant dense<0.000000e+00> : vector<16xf32>
    %25 = vector.multi_reduction <add>, %24, %cst_13 [1] : vector<16x32xf32> to vector<16xf32>
    %26 = vector.shape_cast %25 : vector<16xf32> to vector<16x1xf32>
    %cst_14 = arith.constant 3.200000e+01 : f32
    %27 = vector.broadcast %cst_14 : f32 to vector<16x1xf32>
    %28 = arith.divf %26, %27 : vector<16x1xf32>
    %29 = vector.broadcast %21 : vector<16x1xf32> to vector<16x32xf32>
    %30 = arith.subf %17, %29 : vector<16x32xf32>
    %cst_15 = arith.constant 9.99999974E-6 : f32
    %31 = vector.broadcast %cst_15 : f32 to vector<16x1xf32>
    %32 = arith.addf %28, %31 : vector<16x1xf32>
    %33 = math.rsqrt %32 : vector<16x1xf32>
    %34 = vector.broadcast %33 : vector<16x1xf32> to vector<16x32xf32>
    %35 = arith.mulf %30, %34 : vector<16x32xf32>
    %c0_16 = arith.constant 0 : index
    %c0_17 = arith.constant 0 : index
    %36 = vector.load %arg6[%c0_16, %c0_17] : memref<1x32xf32, #tpu.memory_space<vmem>>, vector<1x32xf32>
    %37 = vector.broadcast %36 : vector<1x32xf32> to vector<16x32xf32>
    %38 = arith.mulf %35, %37 : vector<16x32xf32>
    %c0_18 = arith.constant 0 : index
    %c0_19 = arith.constant 0 : index
    %39 = vector.load %arg7[%c0_18, %c0_19] : memref<1x32xf32, #tpu.memory_space<vmem>>, vector<1x32xf32>
    %40 = vector.broadcast %39 : vector<1x32xf32> to vector<16x32xf32>
    %41 = arith.addf %38, %40 : vector<16x32xf32>
    %c0_20 = arith.constant 0 : index
    %c0_21 = arith.constant 0 : index
    %42 = vector.load %arg8[%c0_20, %c0_21] : memref<16x32xf32, #tpu.memory_space<vmem>>, vector<16x32xf32>
    tpu.vector_store %arg8[%c0_20, %c0_21], %41 {strides = array<i32>} : memref<16x32xf32, #tpu.memory_space<vmem>>, vector<16x32xf32>,
    return
  }
  func.func @transform_0(%arg0: i32) -> (i32, i32) {
    %c0_i32 = arith.constant 0 : i32
    %c0_i32_0 = arith.constant 0 : i32
    return %arg0, %c0_i32 : i32, i32
  }
  func.func @transform_1(%arg0: i32) -> (i32, i32) {
    %c0_i32 = arith.constant 0 : i32
    %c0_i32_0 = arith.constant 0 : i32
    %c0_i32_1 = arith.constant 0 : i32
    return %c0_i32, %c0_i32_0 : i32, i32
  }
  func.func @transform_2(%arg0: i32) -> (i32, i32) {
    %c0_i32 = arith.constant 0 : i32
    %c0_i32_0 = arith.constant 0 : i32
    %c0_i32_1 = arith.constant 0 : i32
    return %c0_i32, %c0_i32_0 : i32, i32
  }
  func.func @transform_3(%arg0: i32) -> (i32, i32) {
    %c0_i32 = arith.constant 0 : i32
    %c0_i32_0 = arith.constant 0 : i32
    %c0_i32_1 = arith.constant 0 : i32
    return %c0_i32, %c0_i32_0 : i32, i32
  }
  func.func @transform_4(%arg0: i32) -> (i32, i32) {
    %c0_i32 = arith.constant 0 : i32
    %c0_i32_0 = arith.constant 0 : i32
    %c0_i32_1 = arith.constant 0 : i32
    return %c0_i32, %c0_i32_0 : i32, i32
  }
  func.func @transform_5(%arg0: i32) -> (i32, i32) {
    %c0_i32 = arith.constant 0 : i32
    %c0_i32_0 = arith.constant 0 : i32
    %c0_i32_1 = arith.constant 0 : i32
    return %c0_i32, %c0_i32_0 : i32, i32
  }
  func.func @transform_6(%arg0: i32) -> (i32, i32) {
    %c0_i32 = arith.constant 0 : i32
    %c0_i32_0 = arith.constant 0 : i32
    %c0_i32_1 = arith.constant 0 : i32
    return %c0_i32, %c0_i32_0 : i32, i32
  }
  func.func @transform_7(%arg0: i32) -> (i32, i32) {
    %c0_i32 = arith.constant 0 : i32
    %c0_i32_0 = arith.constant 0 : i32
    return %arg0, %c0_i32 : i32, i32
  }
}

module attributes {stable_mosaic.version = 11 : i64} {
  func.func @_mha_block_kernel(%arg0: i32, %arg1: memref<1x8x32xf32, #tpu.memory_space<vmem>>, %arg2: memref<1x16x32xf32, #tpu.memory_space<vmem>>, %arg3: memref<1x16x32xf32, #tpu.memory_space<vmem>>, %arg4: memref<1x8x32xf32, #tpu.memory_space<vmem>>, %arg5: memref<32x32xf32, #tpu.memory_space<vmem>>, %arg6: memref<1x32xf32, #tpu.memory_space<vmem>>, %arg7: memref<32x32xf32, #tpu.memory_space<vmem>>, %arg8: memref<1x32xf32, #tpu.memory_space<vmem>>, %arg9: memref<32x32xf32, #tpu.memory_space<vmem>>, %arg10: memref<1x32xf32, #tpu.memory_space<vmem>>, %arg11: memref<32x32xf32, #tpu.memory_space<vmem>>, %arg12: memref<1x32xf32, #tpu.memory_space<vmem>>, %arg13: memref<1x32xf32, #tpu.memory_space<vmem>>, %arg14: memref<1x32xf32, #tpu.memory_space<vmem>>, %arg15: memref<1x8x32xf32, #tpu.memory_space<vmem>>) attributes {dimension_semantics = [#tpu.dimension_semantics<parallel>], iteration_bounds = array<i64: 2>, scalar_prefetch = 0 : i64, scratch_operands = 0 : i64, tpu.core_type = #tpu.core_type<tc>, window_params = [{transform_indices = @transform_0, window_bounds = array<i64: 1, 8, 32>}, {transform_indices = @transform_1, window_bounds = array<i64: 1, 16, 32>}, {transform_indices = @transform_2, window_bounds = array<i64: 1, 16, 32>}, {transform_indices = @transform_3, window_bounds = array<i64: 1, 8, 32>}, {pipeline_mode = #tpu.pipeline_mode<synchronous>, transform_indices = @transform_4, window_bounds = array<i64: 32, 32>}, {pipeline_mode = #tpu.pipeline_mode<synchronous>, transform_indices = @transform_5, window_bounds = array<i64: 1, 32>}, {pipeline_mode = #tpu.pipeline_mode<synchronous>, transform_indices = @transform_6, window_bounds = array<i64: 32, 32>}, {pipeline_mode = #tpu.pipeline_mode<synchronous>, transform_indices = @transform_7, window_bounds = array<i64: 1, 32>}, {pipeline_mode = #tpu.pipeline_mode<synchronous>, transform_indices = @transform_8, window_bounds = array<i64: 32, 32>}, {pipeline_mode = #tpu.pipeline_mode<synchronous>, transform_indices = @transform_9, window_bounds = array<i64: 1, 32>}, {pipeline_mode = #tpu.pipeline_mode<synchronous>, transform_indices = @transform_10, window_bounds = array<i64: 32, 32>}, {pipeline_mode = #tpu.pipeline_mode<synchronous>, transform_indices = @transform_11, window_bounds = array<i64: 1, 32>}, {pipeline_mode = #tpu.pipeline_mode<synchronous>, transform_indices = @transform_12, window_bounds = array<i64: 1, 32>}, {pipeline_mode = #tpu.pipeline_mode<synchronous>, transform_indices = @transform_13, window_bounds = array<i64: 1, 32>}, {transform_indices = @transform_14, window_bounds = array<i64: 1, 8, 32>}]} {
    %c0 = arith.constant 0 : index
    %c0_0 = arith.constant 0 : index
    %c0_1 = arith.constant 0 : index
    %0 = vector.load %arg1[%c0, %c0_0, %c0_1] : memref<1x8x32xf32, #tpu.memory_space<vmem>>, vector<1x8x32xf32>
    %1 = vector.shape_cast %0 : vector<1x8x32xf32> to vector<8x32xf32>
    %c0_2 = arith.constant 0 : index
    %c0_3 = arith.constant 0 : index
    %c0_4 = arith.constant 0 : index
    %2 = vector.load %arg2[%c0_2, %c0_3, %c0_4] : memref<1x16x32xf32, #tpu.memory_space<vmem>>, vector<1x16x32xf32>
    %3 = vector.shape_cast %2 : vector<1x16x32xf32> to vector<16x32xf32>
    %c0_5 = arith.constant 0 : index
    %c0_6 = arith.constant 0 : index
    %c0_7 = arith.constant 0 : index
    %4 = vector.load %arg3[%c0_5, %c0_6, %c0_7] : memref<1x16x32xf32, #tpu.memory_space<vmem>>, vector<1x16x32xf32>
    %5 = vector.shape_cast %4 : vector<1x16x32xf32> to vector<16x32xf32>
    %c0_8 = arith.constant 0 : index
    %c0_9 = arith.constant 0 : index
    %c0_10 = arith.constant 0 : index
    %6 = vector.load %arg4[%c0_8, %c0_9, %c0_10] : memref<1x8x32xf32, #tpu.memory_space<vmem>>, vector<1x8x32xf32>
    %7 = vector.shape_cast %6 : vector<1x8x32xf32> to vector<8x32xf32>
    %8 = arith.truncf %1 : vector<8x32xf32> to vector<8x32xbf16>
    %c0_11 = arith.constant 0 : index
    %c0_12 = arith.constant 0 : index
    %9 = vector.load %arg5[%c0_11, %c0_12] : memref<32x32xf32, #tpu.memory_space<vmem>>, vector<32x32xf32>
    %10 = arith.truncf %9 : vector<32x32xf32> to vector<32x32xbf16>
    %cst = arith.constant dense<0.000000e+00> : vector<8x32xf32>
    %11 = tpu.matmul %8, %10, %cst {dimension_numbers = #tpu.dot_dimension_numbers<[1], [0], [0], [1], [0, 0, 1, 1], [], []>} : vector<8x32xbf16>, vector<32x32xbf16>, vector<8x32xf32> -> vector<8x32xf32>
    %c0_13 = arith.constant 0 : index
    %c0_14 = arith.constant 0 : index
    %12 = vector.load %arg6[%c0_13, %c0_14] : memref<1x32xf32, #tpu.memory_space<vmem>>, vector<1x32xf32>
    %13 = vector.broadcast %12 : vector<1x32xf32> to vector<8x32xf32>
    %14 = arith.addf %11, %13 : vector<8x32xf32>
    %cst_15 = arith.constant 0.353553385 : f32
    %15 = vector.broadcast %cst_15 : f32 to vector<8x32xf32>
    %16 = arith.mulf %14, %15 : vector<8x32xf32>
    %17 = arith.truncf %3 : vector<16x32xf32> to vector<16x32xbf16>
    %c0_16 = arith.constant 0 : index
    %c0_17 = arith.constant 0 : index
    %18 = vector.load %arg7[%c0_16, %c0_17] : memref<32x32xf32, #tpu.memory_space<vmem>>, vector<32x32xf32>
    %19 = arith.truncf %18 : vector<32x32xf32> to vector<32x32xbf16>
    %cst_18 = arith.constant dense<0.000000e+00> : vector<16x32xf32>
    %20 = tpu.matmul %17, %19, %cst_18 {dimension_numbers = #tpu.dot_dimension_numbers<[1], [0], [0], [1], [0, 0, 1, 1], [], []>} : vector<16x32xbf16>, vector<32x32xbf16>, vector<16x32xf32> -> vector<16x32xf32>
    %c0_19 = arith.constant 0 : index
    %c0_20 = arith.constant 0 : index
    %21 = vector.load %arg8[%c0_19, %c0_20] : memref<1x32xf32, #tpu.memory_space<vmem>>, vector<1x32xf32>
    %22 = vector.broadcast %21 : vector<1x32xf32> to vector<16x32xf32>
    %23 = arith.addf %20, %22 : vector<16x32xf32>
    %24 = arith.truncf %5 : vector<16x32xf32> to vector<16x32xbf16>
    %c0_21 = arith.constant 0 : index
    %c0_22 = arith.constant 0 : index
    %25 = vector.load %arg9[%c0_21, %c0_22] : memref<32x32xf32, #tpu.memory_space<vmem>>, vector<32x32xf32>
    %26 = arith.truncf %25 : vector<32x32xf32> to vector<32x32xbf16>
    %cst_23 = arith.constant dense<0.000000e+00> : vector<16x32xf32>
    %27 = tpu.matmul %24, %26, %cst_23 {dimension_numbers = #tpu.dot_dimension_numbers<[1], [0], [0], [1], [0, 0, 1, 1], [], []>} : vector<16x32xbf16>, vector<32x32xbf16>, vector<16x32xf32> -> vector<16x32xf32>
    %c0_24 = arith.constant 0 : index
    %c0_25 = arith.constant 0 : index
    %28 = vector.load %arg10[%c0_24, %c0_25] : memref<1x32xf32, #tpu.memory_space<vmem>>, vector<1x32xf32>
    %29 = vector.broadcast %28 : vector<1x32xf32> to vector<16x32xf32>
    %30 = arith.addf %27, %29 : vector<16x32xf32>
    %31 = vector.extract_strided_slice %16 {offsets = [0, 0], sizes = [8, 8], strides = [1, 1]} : vector<8x32xf32> to vector<8x8xf32>
    %32 = arith.truncf %31 : vector<8x8xf32> to vector<8x8xbf16>
    %33 = vector.extract_strided_slice %23 {offsets = [0, 0], sizes = [16, 8], strides = [1, 1]} : vector<16x32xf32> to vector<16x8xf32>
    %34 = arith.truncf %33 : vector<16x8xf32> to vector<16x8xbf16>
    %35 = vector.extract_strided_slice %30 {offsets = [0, 0], sizes = [16, 8], strides = [1, 1]} : vector<16x32xf32> to vector<16x8xf32>
    %36 = arith.truncf %35 : vector<16x8xf32> to vector<16x8xbf16>
    %cst_26 = arith.constant dense<0.000000e+00> : vector<8x16xf32>
    %37 = tpu.matmul %32, %34, %cst_26 {dimension_numbers = #tpu.dot_dimension_numbers<[1], [1], [0], [0], [0, 0, 1, 0], [], []>} : vector<8x8xbf16>, vector<16x8xbf16>, vector<8x16xf32> -> vector<8x16xf32>
    %cst_27 = arith.constant dense<0xFF800000> : vector<8xf32>
    %38 = vector.multi_reduction <maximumf>, %37, %cst_27 [1] : vector<8x16xf32> to vector<8xf32>
    %39 = vector.shape_cast %38 : vector<8xf32> to vector<8x1xf32>
    %40 = vector.broadcast %39 : vector<8x1xf32> to vector<8x16xf32>
    %41 = arith.subf %37, %40 : vector<8x16xf32>
    %42 = math.exp %41 : vector<8x16xf32>
    %cst_28 = arith.constant dense<0.000000e+00> : vector<8xf32>
    %43 = vector.multi_reduction <add>, %42, %cst_28 [1] : vector<8x16xf32> to vector<8xf32>
    %44 = vector.shape_cast %43 : vector<8xf32> to vector<8x1xf32>
    %45 = tpu.reciprocal %44 {approx = true} : vector<8x1xf32> -> vector<8x1xf32>
    %46 = vector.broadcast %45 : vector<8x1xf32> to vector<8x16xf32>
    %47 = arith.mulf %42, %46 : vector<8x16xf32>
    %48 = arith.truncf %47 : vector<8x16xf32> to vector<8x16xbf16>
    %cst_29 = arith.constant dense<0.000000e+00> : vector<8x8xf32>
    %49 = tpu.matmul %48, %36, %cst_29 {dimension_numbers = #tpu.dot_dimension_numbers<[1], [0], [0], [1], [0, 0, 1, 1], [], []>} : vector<8x16xbf16>, vector<16x8xbf16>, vector<8x8xf32> -> vector<8x8xf32>
    %50 = vector.extract_strided_slice %16 {offsets = [0, 8], sizes = [8, 8], strides = [1, 1]} : vector<8x32xf32> to vector<8x8xf32>
    %51 = arith.truncf %50 : vector<8x8xf32> to vector<8x8xbf16>
    %52 = vector.extract_strided_slice %23 {offsets = [0, 8], sizes = [16, 8], strides = [1, 1]} : vector<16x32xf32> to vector<16x8xf32>
    %53 = arith.truncf %52 : vector<16x8xf32> to vector<16x8xbf16>
    %54 = vector.extract_strided_slice %30 {offsets = [0, 8], sizes = [16, 8], strides = [1, 1]} : vector<16x32xf32> to vector<16x8xf32>
    %55 = arith.truncf %54 : vector<16x8xf32> to vector<16x8xbf16>
    %cst_30 = arith.constant dense<0.000000e+00> : vector<8x16xf32>
    %56 = tpu.matmul %51, %53, %cst_30 {dimension_numbers = #tpu.dot_dimension_numbers<[1], [1], [0], [0], [0, 0, 1, 0], [], []>} : vector<8x8xbf16>, vector<16x8xbf16>, vector<8x16xf32> -> vector<8x16xf32>
    %cst_31 = arith.constant dense<0xFF800000> : vector<8xf32>
    %57 = vector.multi_reduction <maximumf>, %56, %cst_31 [1] : vector<8x16xf32> to vector<8xf32>
    %58 = vector.shape_cast %57 : vector<8xf32> to vector<8x1xf32>
    %59 = vector.broadcast %58 : vector<8x1xf32> to vector<8x16xf32>
    %60 = arith.subf %56, %59 : vector<8x16xf32>
    %61 = math.exp %60 : vector<8x16xf32>
    %cst_32 = arith.constant dense<0.000000e+00> : vector<8xf32>
    %62 = vector.multi_reduction <add>, %61, %cst_32 [1] : vector<8x16xf32> to vector<8xf32>
    %63 = vector.shape_cast %62 : vector<8xf32> to vector<8x1xf32>
    %64 = tpu.reciprocal %63 {approx = true} : vector<8x1xf32> -> vector<8x1xf32>
    %65 = vector.broadcast %64 : vector<8x1xf32> to vector<8x16xf32>
    %66 = arith.mulf %61, %65 : vector<8x16xf32>
    %67 = arith.truncf %66 : vector<8x16xf32> to vector<8x16xbf16>
    %cst_33 = arith.constant dense<0.000000e+00> : vector<8x8xf32>
    %68 = tpu.matmul %67, %55, %cst_33 {dimension_numbers = #tpu.dot_dimension_numbers<[1], [0], [0], [1], [0, 0, 1, 1], [], []>} : vector<8x16xbf16>, vector<16x8xbf16>, vector<8x8xf32> -> vector<8x8xf32>
    %69 = vector.extract_strided_slice %16 {offsets = [0, 16], sizes = [8, 8], strides = [1, 1]} : vector<8x32xf32> to vector<8x8xf32>
    %70 = arith.truncf %69 : vector<8x8xf32> to vector<8x8xbf16>
    %71 = vector.extract_strided_slice %23 {offsets = [0, 16], sizes = [16, 8], strides = [1, 1]} : vector<16x32xf32> to vector<16x8xf32>
    %72 = arith.truncf %71 : vector<16x8xf32> to vector<16x8xbf16>
    %73 = vector.extract_strided_slice %30 {offsets = [0, 16], sizes = [16, 8], strides = [1, 1]} : vector<16x32xf32> to vector<16x8xf32>
    %74 = arith.truncf %73 : vector<16x8xf32> to vector<16x8xbf16>
    %cst_34 = arith.constant dense<0.000000e+00> : vector<8x16xf32>
    %75 = tpu.matmul %70, %72, %cst_34 {dimension_numbers = #tpu.dot_dimension_numbers<[1], [1], [0], [0], [0, 0, 1, 0], [], []>} : vector<8x8xbf16>, vector<16x8xbf16>, vector<8x16xf32> -> vector<8x16xf32>
    %cst_35 = arith.constant dense<0xFF800000> : vector<8xf32>
    %76 = vector.multi_reduction <maximumf>, %75, %cst_35 [1] : vector<8x16xf32> to vector<8xf32>
    %77 = vector.shape_cast %76 : vector<8xf32> to vector<8x1xf32>
    %78 = vector.broadcast %77 : vector<8x1xf32> to vector<8x16xf32>
    %79 = arith.subf %75, %78 : vector<8x16xf32>
    %80 = math.exp %79 : vector<8x16xf32>
    %cst_36 = arith.constant dense<0.000000e+00> : vector<8xf32>
    %81 = vector.multi_reduction <add>, %80, %cst_36 [1] : vector<8x16xf32> to vector<8xf32>
    %82 = vector.shape_cast %81 : vector<8xf32> to vector<8x1xf32>
    %83 = tpu.reciprocal %82 {approx = true} : vector<8x1xf32> -> vector<8x1xf32>
    %84 = vector.broadcast %83 : vector<8x1xf32> to vector<8x16xf32>
    %85 = arith.mulf %80, %84 : vector<8x16xf32>
    %86 = arith.truncf %85 : vector<8x16xf32> to vector<8x16xbf16>
    %cst_37 = arith.constant dense<0.000000e+00> : vector<8x8xf32>
    %87 = tpu.matmul %86, %74, %cst_37 {dimension_numbers = #tpu.dot_dimension_numbers<[1], [0], [0], [1], [0, 0, 1, 1], [], []>} : vector<8x16xbf16>, vector<16x8xbf16>, vector<8x8xf32> -> vector<8x8xf32>
    %88 = vector.extract_strided_slice %16 {offsets = [0, 24], sizes = [8, 8], strides = [1, 1]} : vector<8x32xf32> to vector<8x8xf32>
    %89 = arith.truncf %88 : vector<8x8xf32> to vector<8x8xbf16>
    %90 = vector.extract_strided_slice %23 {offsets = [0, 24], sizes = [16, 8], strides = [1, 1]} : vector<16x32xf32> to vector<16x8xf32>
    %91 = arith.truncf %90 : vector<16x8xf32> to vector<16x8xbf16>
    %92 = vector.extract_strided_slice %30 {offsets = [0, 24], sizes = [16, 8], strides = [1, 1]} : vector<16x32xf32> to vector<16x8xf32>
    %93 = arith.truncf %92 : vector<16x8xf32> to vector<16x8xbf16>
    %cst_38 = arith.constant dense<0.000000e+00> : vector<8x16xf32>
    %94 = tpu.matmul %89, %91, %cst_38 {dimension_numbers = #tpu.dot_dimension_numbers<[1], [1], [0], [0], [0, 0, 1, 0], [], []>} : vector<8x8xbf16>, vector<16x8xbf16>, vector<8x16xf32> -> vector<8x16xf32>
    %cst_39 = arith.constant dense<0xFF800000> : vector<8xf32>
    %95 = vector.multi_reduction <maximumf>, %94, %cst_39 [1] : vector<8x16xf32> to vector<8xf32>
    %96 = vector.shape_cast %95 : vector<8xf32> to vector<8x1xf32>
    %97 = vector.broadcast %96 : vector<8x1xf32> to vector<8x16xf32>
    %98 = arith.subf %94, %97 : vector<8x16xf32>
    %99 = math.exp %98 : vector<8x16xf32>
    %cst_40 = arith.constant dense<0.000000e+00> : vector<8xf32>
    %100 = vector.multi_reduction <add>, %99, %cst_40 [1] : vector<8x16xf32> to vector<8xf32>
    %101 = vector.shape_cast %100 : vector<8xf32> to vector<8x1xf32>
    %102 = tpu.reciprocal %101 {approx = true} : vector<8x1xf32> -> vector<8x1xf32>
    %103 = vector.broadcast %102 : vector<8x1xf32> to vector<8x16xf32>
    %104 = arith.mulf %99, %103 : vector<8x16xf32>
    %105 = arith.truncf %104 : vector<8x16xf32> to vector<8x16xbf16>
    %cst_41 = arith.constant dense<0.000000e+00> : vector<8x8xf32>
    %106 = tpu.matmul %105, %93, %cst_41 {dimension_numbers = #tpu.dot_dimension_numbers<[1], [0], [0], [1], [0, 0, 1, 1], [], []>} : vector<8x16xbf16>, vector<16x8xbf16>, vector<8x8xf32> -> vector<8x8xf32>
    %107 = tpu.concatenate %49, %68, %87, %106 in 1 : vector<8x8xf32>, vector<8x8xf32>, vector<8x8xf32>, vector<8x8xf32> -> vector<8x32xf32>
    %108 = arith.truncf %107 : vector<8x32xf32> to vector<8x32xbf16>
    %c0_42 = arith.constant 0 : index
    %c0_43 = arith.constant 0 : index
    %109 = vector.load %arg11[%c0_42, %c0_43] : memref<32x32xf32, #tpu.memory_space<vmem>>, vector<32x32xf32>
    %110 = arith.truncf %109 : vector<32x32xf32> to vector<32x32xbf16>
    %cst_44 = arith.constant dense<0.000000e+00> : vector<8x32xf32>
    %111 = tpu.matmul %108, %110, %cst_44 {dimension_numbers = #tpu.dot_dimension_numbers<[1], [0], [0], [1], [0, 0, 1, 1], [], []>} : vector<8x32xbf16>, vector<32x32xbf16>, vector<8x32xf32> -> vector<8x32xf32>
    %c0_45 = arith.constant 0 : index
    %c0_46 = arith.constant 0 : index
    %112 = vector.load %arg12[%c0_45, %c0_46] : memref<1x32xf32, #tpu.memory_space<vmem>>, vector<1x32xf32>
    %113 = vector.broadcast %112 : vector<1x32xf32> to vector<8x32xf32>
    %114 = arith.addf %111, %113 : vector<8x32xf32>
    %115 = arith.addf %7, %114 : vector<8x32xf32>
    %cst_47 = arith.constant dense<0.000000e+00> : vector<8xf32>
    %116 = vector.multi_reduction <add>, %115, %cst_47 [1] : vector<8x32xf32> to vector<8xf32>
    %117 = vector.shape_cast %116 : vector<8xf32> to vector<8x1xf32>
    %cst_48 = arith.constant 3.200000e+01 : f32
    %118 = vector.broadcast %cst_48 : f32 to vector<8x1xf32>
    %119 = arith.divf %117, %118 : vector<8x1xf32>
    %120 = vector.broadcast %119 : vector<8x1xf32> to vector<8x32xf32>
    %121 = arith.subf %115, %120 : vector<8x32xf32>
    %122 = arith.mulf %121, %121 : vector<8x32xf32>
    %cst_49 = arith.constant dense<0.000000e+00> : vector<8xf32>
    %123 = vector.multi_reduction <add>, %122, %cst_49 [1] : vector<8x32xf32> to vector<8xf32>
    %124 = vector.shape_cast %123 : vector<8xf32> to vector<8x1xf32>
    %cst_50 = arith.constant 3.200000e+01 : f32
    %125 = vector.broadcast %cst_50 : f32 to vector<8x1xf32>
    %126 = arith.divf %124, %125 : vector<8x1xf32>
    %127 = vector.broadcast %119 : vector<8x1xf32> to vector<8x32xf32>
    %128 = arith.subf %115, %127 : vector<8x32xf32>
    %cst_51 = arith.constant 9.99999974E-6 : f32
    %129 = vector.broadcast %cst_51 : f32 to vector<8x1xf32>
    %130 = arith.addf %126, %129 : vector<8x1xf32>
    %131 = math.rsqrt %130 : vector<8x1xf32>
    %132 = vector.broadcast %131 : vector<8x1xf32> to vector<8x32xf32>
    %133 = arith.mulf %128, %132 : vector<8x32xf32>
    %c0_52 = arith.constant 0 : index
    %c0_53 = arith.constant 0 : index
    %134 = vector.load %arg13[%c0_52, %c0_53] : memref<1x32xf32, #tpu.memory_space<vmem>>, vector<1x32xf32>
    %135 = vector.broadcast %134 : vector<1x32xf32> to vector<8x32xf32>
    %136 = arith.mulf %133, %135 : vector<8x32xf32>
    %c0_54 = arith.constant 0 : index
    %c0_55 = arith.constant 0 : index
    %137 = vector.load %arg14[%c0_54, %c0_55] : memref<1x32xf32, #tpu.memory_space<vmem>>, vector<1x32xf32>
    %138 = vector.broadcast %137 : vector<1x32xf32> to vector<8x32xf32>
    %139 = arith.addf %136, %138 : vector<8x32xf32>
    %c0_56 = arith.constant 0 : index
    %c0_57 = arith.constant 0 : index
    %c0_58 = arith.constant 0 : index
    %140 = vector.load %arg15[%c0_56, %c0_57, %c0_58] : memref<1x8x32xf32, #tpu.memory_space<vmem>>, vector<1x8x32xf32>
    %141 = vector.shape_cast %140 : vector<1x8x32xf32> to vector<8x32xf32>
    %142 = vector.shape_cast %139 : vector<8x32xf32> to vector<1x8x32xf32>
    tpu.vector_store %arg15[%c0_56, %c0_57, %c0_58], %142 {strides = array<i32>} : memref<1x8x32xf32, #tpu.memory_space<vmem>>, vector<1x8x32xf32>,
    return
  }
  func.func @transform_0(%arg0: i32) -> (i32, i32, i32) {
    %c0_i32 = arith.constant 0 : i32
    %c0_i32_0 = arith.constant 0 : i32
    %c0_i32_1 = arith.constant 0 : i32
    return %arg0, %c0_i32, %c0_i32_0 : i32, i32, i32
  }
  func.func @transform_1(%arg0: i32) -> (i32, i32, i32) {
    %c0_i32 = arith.constant 0 : i32
    %c0_i32_0 = arith.constant 0 : i32
    %c0_i32_1 = arith.constant 0 : i32
    return %arg0, %c0_i32, %c0_i32_0 : i32, i32, i32
  }
  func.func @transform_2(%arg0: i32) -> (i32, i32, i32) {
    %c0_i32 = arith.constant 0 : i32
    %c0_i32_0 = arith.constant 0 : i32
    %c0_i32_1 = arith.constant 0 : i32
    return %arg0, %c0_i32, %c0_i32_0 : i32, i32, i32
  }
  func.func @transform_3(%arg0: i32) -> (i32, i32, i32) {
    %c0_i32 = arith.constant 0 : i32
    %c0_i32_0 = arith.constant 0 : i32
    %c0_i32_1 = arith.constant 0 : i32
    return %arg0, %c0_i32, %c0_i32_0 : i32, i32, i32
  }
  func.func @transform_4(%arg0: i32) -> (i32, i32) {
    %c0_i32 = arith.constant 0 : i32
    %c0_i32_0 = arith.constant 0 : i32
    %c0_i32_1 = arith.constant 0 : i32
    return %c0_i32, %c0_i32_0 : i32, i32
  }
  func.func @transform_5(%arg0: i32) -> (i32, i32) {
    %c0_i32 = arith.constant 0 : i32
    %c0_i32_0 = arith.constant 0 : i32
    %c0_i32_1 = arith.constant 0 : i32
    return %c0_i32, %c0_i32_0 : i32, i32
  }
  func.func @transform_6(%arg0: i32) -> (i32, i32) {
    %c0_i32 = arith.constant 0 : i32
    %c0_i32_0 = arith.constant 0 : i32
    %c0_i32_1 = arith.constant 0 : i32
    return %c0_i32, %c0_i32_0 : i32, i32
  }
  func.func @transform_7(%arg0: i32) -> (i32, i32) {
    %c0_i32 = arith.constant 0 : i32
    %c0_i32_0 = arith.constant 0 : i32
    %c0_i32_1 = arith.constant 0 : i32
    return %c0_i32, %c0_i32_0 : i32, i32
  }
  func.func @transform_8(%arg0: i32) -> (i32, i32) {
    %c0_i32 = arith.constant 0 : i32
    %c0_i32_0 = arith.constant 0 : i32
    %c0_i32_1 = arith.constant 0 : i32
    return %c0_i32, %c0_i32_0 : i32, i32
  }
  func.func @transform_9(%arg0: i32) -> (i32, i32) {
    %c0_i32 = arith.constant 0 : i32
    %c0_i32_0 = arith.constant 0 : i32
    %c0_i32_1 = arith.constant 0 : i32
    return %c0_i32, %c0_i32_0 : i32, i32
  }
  func.func @transform_10(%arg0: i32) -> (i32, i32) {
    %c0_i32 = arith.constant 0 : i32
    %c0_i32_0 = arith.constant 0 : i32
    %c0_i32_1 = arith.constant 0 : i32
    return %c0_i32, %c0_i32_0 : i32, i32
  }
  func.func @transform_11(%arg0: i32) -> (i32, i32) {
    %c0_i32 = arith.constant 0 : i32
    %c0_i32_0 = arith.constant 0 : i32
    %c0_i32_1 = arith.constant 0 : i32
    return %c0_i32, %c0_i32_0 : i32, i32
  }
  func.func @transform_12(%arg0: i32) -> (i32, i32) {
    %c0_i32 = arith.constant 0 : i32
    %c0_i32_0 = arith.constant 0 : i32
    %c0_i32_1 = arith.constant 0 : i32
    return %c0_i32, %c0_i32_0 : i32, i32
  }
  func.func @transform_13(%arg0: i32) -> (i32, i32) {
    %c0_i32 = arith.constant 0 : i32
    %c0_i32_0 = arith.constant 0 : i32
    %c0_i32_1 = arith.constant 0 : i32
    return %c0_i32, %c0_i32_0 : i32, i32
  }
  func.func @transform_14(%arg0: i32) -> (i32, i32, i32) {
    %c0_i32 = arith.constant 0 : i32
    %c0_i32_0 = arith.constant 0 : i32
    %c0_i32_1 = arith.constant 0 : i32
    return %arg0, %c0_i32, %c0_i32_0 : i32, i32, i32
  }
}

</mosaic_0001>

<llo_original>
// kernel: decoder_layer_forward.4
$region0: #{decoder_layer_forward.4}
  #allocation0 [shape = 'u32[]', space=smem, size = 0x4, offset = 0x4, fixed_abs, tag = 'smem constant byte address 0x4 - core index']
  #allocation1 [shape = 'u32[72,128]{1,0:T(1,128)}', space=vmem, size = 0x9000, scoped, tag = 'internal scratch']
  %s0 = inlined_call_operand.vmem [shape: f32[2,8,32], index: 0, kind: input, shape index: {}]
  %s1 = inlined_call_operand.vmem [shape: f32[2,16,32], index: 1, kind: input, shape index: {}]
  %s2 = inlined_call_operand.vmem [shape: f32[2,16,32], index: 2, kind: input, shape index: {}]
  %s3 = inlined_call_operand.vmem [shape: f32[2,8,32], index: 3, kind: input, shape index: {}]
  %s4 = inlined_call_operand.vmem [shape: f32[32,32], index: 4, kind: input, shape index: {}]
  %s5 = inlined_call_operand.hbm [shape: f32[1,32], index: 5, kind: input, shape index: {}]
  %s6 = inlined_call_operand.vmem [shape: f32[32,32], index: 6, kind: input, shape index: {}]
  %s7 = inlined_call_operand.hbm [shape: f32[1,32], index: 7, kind: input, shape index: {}]
  %s8 = inlined_call_operand.vmem [shape: f32[32,32], index: 8, kind: input, shape index: {}]
  %s9 = inlined_call_operand.hbm [shape: f32[1,32], index: 9, kind: input, shape index: {}]
  %s10 = inlined_call_operand.vmem [shape: f32[32,32], index: 10, kind: input, shape index: {}]
  %s11 = inlined_call_operand.hbm [shape: f32[1,32], index: 11, kind: input, shape index: {}]
  %s12 = inlined_call_operand.hbm [shape: f32[1,32], index: 12, kind: input, shape index: {}]
  %s13 = inlined_call_operand.hbm [shape: f32[1,32], index: 13, kind: input, shape index: {}]
  %s14 = inlined_call_operand.vmem [shape: f32[2,8,32], index: 14, kind: output, shape index: {}]
  %s15 = sld [smem:[#allocation0]]
  $region113: #{decoder_layer_forward.4} parent=0
    _
  %s17 = ssub.s32 1, %s15
  %s18 = scalar_select 0, %s17, %s15
  $region1: #{decoder_layer_forward.4} parent=0
    #allocation2 [shape = 'u8[512]{0}', space=vmem, size = 0x400, scoped, tag = 'input window, operand 5, single buffered']
    #allocation3 [shape = 's32[2]{0}', space=sflag, size = 0x8, scoped, tag = 'scoped memory for decoder_layer_forward.4']
    #allocation4 [shape = 'u8[512]{0}', space=vmem, size = 0x400, scoped, tag = 'input window, operand 7, single buffered']
    #allocation5 [shape = 's32[1]{0}', space=sflag, size = 0x4, scoped, tag = 'scoped memory for decoder_layer_forward.4']
    #allocation6 [shape = 'u8[512]{0}', space=vmem, size = 0x400, scoped, tag = 'input window, operand 9, single buffered']
    #allocation7 [shape = 'u8[512]{0}', space=vmem, size = 0x400, scoped, tag = 'input window, operand 11, single buffered']
    #allocation8 [shape = 's32[1]{0}', space=sflag, size = 0x4, scoped, tag = 'scoped memory for decoder_layer_forward.4']
    #allocation9 [shape = 'u8[512]{0}', space=vmem, size = 0x400, scoped, tag = 'input window, operand 12, single buffered']
    #allocation10 [shape = 'u8[512]{0}', space=vmem, size = 0x400, scoped, tag = 'input window, operand 13, single buffered']
    #allocation11 [shape = 's32[1]{0}', space=sflag, size = 0x4, scoped, tag = 'scoped memory for decoder_layer_forward.4']
    %19 = vsyncpa [#allocation3], 0
    %20 = vsyncpa [#allocation5], 0
    %21 = vsyncpa [#allocation8], 0
    %22 = vsyncpa [#allocation11], 0
    loop: start=0, step=1, limit=4
    $region2: #{decoder_layer_forward.4} parent=1 // loop_pre_header
      _
    $region3: #{decoder_layer_forward.4} parent=1 // loop_header
      %s24 = sphi 0, %s28
      %p25 = scmp.ge.s32.totalorder %s24, 4
      %s34 = sphi 0, %s36
      %s37 = sphi 0, %s34
      %s38 = sphi 0, %s37
      %s54 = sphi 0, %s38
      %s60 = sphi 0, %s62
      %s63 = sphi 0, %s60
      %s64 = sphi 0, %s63
      %s80 = sphi 0, %s64
      %s86 = sphi 0, %s88
      %s89 = sphi 0, %s86
      %s90 = sphi 0, %s89
      %s106 = sphi 0, %s90
      %s112 = sphi 0, %s114
      %s115 = sphi 0, %s112
      %s116 = sphi 0, %s115
      %s132 = sphi 0, %s116
      %s136 = sphi 0, %s136
      %s138 = sphi 0, %s136
      %s139 = sphi 0, %s138
      %s153 = sphi 0, %s139
      %s157 = sphi 0, %s157
      %s159 = sphi 0, %s157
      %s160 = sphi 0, %s159
      %s174 = sphi 0, %s160
      %s178 = sphi 0, %s178
      %s180 = sphi 0, %s178
      %s181 = sphi 0, %s180
      %s195 = sphi 0, %s181
      %s199 = sphi 0, %s199
      %s201 = sphi 0, %s199
      %s202 = sphi 0, %s201
      %s216 = sphi 0, %s202
      %s220 = sphi 0, %s220
      %s222 = sphi 0, %s220
      %s223 = sphi 0, %s222
      %s237 = sphi 0, %s223
      %s241 = sphi 0, %s241
      %s243 = sphi 0, %s241
      %s244 = sphi 0, %s243
      %s258 = sphi 0, %s244
      %s262 = sphi 0, %s262
      %s264 = sphi 0, %s262
      %s265 = sphi 0, %s264
      %s279 = sphi 0, %s265
      %s283 = sphi 0, %s283
      %s285 = sphi 0, %s283
      %s286 = sphi 0, %s285
      %s300 = sphi 0, %s286
      %s304 = sphi 0, %s304
      %s306 = sphi 0, %s304
      %s307 = sphi 0, %s306
      %s321 = sphi 0, %s307
      %s325 = sphi 0, %s325
      %s327 = sphi 0, %s325
      %s328 = sphi 0, %s327
      %s342 = sphi 0, %s328
      %s348 = sphi 0, %s350
      %s351 = sphi 0, %s348
      %s352 = sphi 0, %s351
      %s368 = sphi 0, %s352
    $region4: #{decoder_layer_forward.4} parent=1 // loop_header_branch
      %27 = sbr.rel (%p25) target = $region8
    $region5: #{decoder_layer_forward.4} parent=1 // loop_body
      %s29 = ssub.s32 %s24, 1
      %s30 = ssub.s32 %s24, 2
      %s31 = sadd.s32 %s24, 1
      %s32 = ssub.s32 %s24, %s31
      %p33 = scmp.eq.s32.totalorder %s32, 0
      %s35 = sadd.s32 %s34, 1
      %s36 = scalar_select %p33, %s34, %s35
      %p39 = pneg %p33
      %p40 = scmp.eq.s32.totalorder %s24, 1
      %p41 = por %p39, %p40
      %p42 = scmp.ne.s32.totalorder %s34, %s37
      %p43 = scmp.eq.s32.totalorder %s24, 0
      %p44 = por %p42, %p43
      %p45 = scmp.ne.s32.totalorder %s34, %s37
      %p46 = scmp.eq.s32.totalorder %s29, 1
      %p47 = por %p45, %p46
      %p48 = scmp.ne.s32.totalorder %s37, %s38
      %p49 = scmp.eq.s32.totalorder %s29, 0
      %p50 = por %p48, %p49
      %p51 = scmp.ne.s32.totalorder %s37, %s38
      %p52 = scmp.eq.s32.totalorder %s30, 1
      %p53 = por %p51, %p52
      %p55 = scmp.ne.s32.totalorder %s38, %s54
      %p56 = scmp.eq.s32.totalorder %s30, 0
      %p57 = por %p55, %p56
      %s58 = ssub.s32 %s24, %s31
      %p59 = scmp.eq.s32.totalorder %s58, 0
      %s61 = sadd.s32 %s60, 1
      %s62 = scalar_select %p59, %s60, %s61
      %p65 = pneg %p59
      %p66 = scmp.eq.s32.totalorder %s24, 1
      %p67 = por %p65, %p66
      %p68 = scmp.ne.s32.totalorder %s60, %s63
      %p69 = scmp.eq.s32.totalorder %s24, 0
      %p70 = por %p68, %p69
      %p71 = scmp.ne.s32.totalorder %s60, %s63
      %p72 = scmp.eq.s32.totalorder %s29, 1
      %p73 = por %p71, %p72
      %p74 = scmp.ne.s32.totalorder %s63, %s64
      %p75 = scmp.eq.s32.totalorder %s29, 0
      %p76 = por %p74, %p75
      %p77 = scmp.ne.s32.totalorder %s63, %s64
      %p78 = scmp.eq.s32.totalorder %s30, 1
      %p79 = por %p77, %p78
      %p81 = scmp.ne.s32.totalorder %s64, %s80
      %p82 = scmp.eq.s32.totalorder %s30, 0
      %p83 = por %p81, %p82
      %s84 = ssub.s32 %s24, %s31
      %p85 = scmp.eq.s32.totalorder %s84, 0
      %s87 = sadd.s32 %s86, 1
      %s88 = scalar_select %p85, %s86, %s87
      %p91 = pneg %p85
      %p92 = scmp.eq.s32.totalorder %s24, 1
      %p93 = por %p91, %p92
      %p94 = scmp.ne.s32.totalorder %s86, %s89
      %p95 = scmp.eq.s32.totalorder %s24, 0
      %p96 = por %p94, %p95
      %p97 = scmp.ne.s32.totalorder %s86, %s89
      %p98 = scmp.eq.s32.totalorder %s29, 1
      %p99 = por %p97, %p98
      %p100 = scmp.ne.s32.totalorder %s89, %s90
      %p101 = scmp.eq.s32.totalorder %s29, 0
      %p102 = por %p100, %p101
      %p103 = scmp.ne.s32.totalorder %s89, %s90
      %p104 = scmp.eq.s32.totalorder %s30, 1
      %p105 = por %p103, %p104
      %p107 = scmp.ne.s32.totalorder %s90, %s106
      %p108 = scmp.eq.s32.totalorder %s30, 0
      %p109 = por %p107, %p108
      %s110 = ssub.s32 %s24, %s31
      %p111 = scmp.eq.s32.totalorder %s110, 0
      %s113 = sadd.s32 %s112, 1
      %s114 = scalar_select %p111, %s112, %s113
      %p117 = pneg %p111
      %p118 = scmp.eq.s32.totalorder %s24, 1
      %p119 = por %p117, %p118
      %p120 = scmp.ne.s32.totalorder %s112, %s115
      %p121 = scmp.eq.s32.totalorder %s24, 0
      %p122 = por %p120, %p121
      %p123 = scmp.ne.s32.totalorder %s112, %s115
      %p124 = scmp.eq.s32.totalorder %s29, 1
      %p125 = por %p123, %p124
      %p126 = scmp.ne.s32.totalorder %s115, %s116
      %p127 = scmp.eq.s32.totalorder %s29, 0
      %p128 = por %p126, %p127
      %p129 = scmp.ne.s32.totalorder %s115, %s116
      %p130 = scmp.eq.s32.totalorder %s30, 1
      %p131 = por %p129, %p130
      %p133 = scmp.ne.s32.totalorder %s116, %s132
      %p134 = scmp.eq.s32.totalorder %s30, 0
      %p135 = por %p133, %p134
      %s137 = sadd.s32 %s136, 1
      %p140 = scmp.eq.s32.totalorder %s24, 1
      %p141 = scmp.ne.s32.totalorder %s136, %s138
      %p142 = scmp.eq.s32.totalorder %s24, 0
      %p143 = por %p141, %p142
      %p144 = scmp.ne.s32.totalorder %s136, %s138
      %p145 = scmp.eq.s32.totalorder %s29, 1
      %p146 = por %p144, %p145
      %p147 = scmp.ne.s32.totalorder %s138, %s139
      %p148 = scmp.eq.s32.totalorder %s29, 0
      %p149 = por %p147, %p148
      %p150 = scmp.ne.s32.totalorder %s138, %s139
      %p151 = scmp.eq.s32.totalorder %s30, 1
      %p152 = por %p150, %p151
      %p154 = scmp.ne.s32.totalorder %s139, %s153
      %p155 = scmp.eq.s32.totalorder %s30, 0
      %p156 = por %p154, %p155
      %s158 = sadd.s32 %s157, 1
      %p161 = scmp.eq.s32.totalorder %s24, 1
      %p162 = scmp.ne.s32.totalorder %s157, %s159
      %p163 = scmp.eq.s32.totalorder %s24, 0
      %p164 = por %p162, %p163
      %p165 = scmp.ne.s32.totalorder %s157, %s159
      %p166 = scmp.eq.s32.totalorder %s29, 1
      %p167 = por %p165, %p166
      %p168 = scmp.ne.s32.totalorder %s159, %s160
      %p169 = scmp.eq.s32.totalorder %s29, 0
      %p170 = por %p168, %p169
      %p171 = scmp.ne.s32.totalorder %s159, %s160
      %p172 = scmp.eq.s32.totalorder %s30, 1
      %p173 = por %p171, %p172
      %p175 = scmp.ne.s32.totalorder %s160, %s174
      %p176 = scmp.eq.s32.totalorder %s30, 0
      %p177 = por %p175, %p176
      %s179 = sadd.s32 %s178, 1
      %p182 = scmp.eq.s32.totalorder %s24, 1
      %p183 = scmp.ne.s32.totalorder %s178, %s180
      %p184 = scmp.eq.s32.totalorder %s24, 0
      %p185 = por %p183, %p184
      %p186 = scmp.ne.s32.totalorder %s178, %s180
      %p187 = scmp.eq.s32.totalorder %s29, 1
      %p188 = por %p186, %p187
      %p189 = scmp.ne.s32.totalorder %s180, %s181
      %p190 = scmp.eq.s32.totalorder %s29, 0
      %p191 = por %p189, %p190
      %p192 = scmp.ne.s32.totalorder %s180, %s181
      %p193 = scmp.eq.s32.totalorder %s30, 1
      %p194 = por %p192, %p193
      %p196 = scmp.ne.s32.totalorder %s181, %s195
      %p197 = scmp.eq.s32.totalorder %s30, 0
      %p198 = por %p196, %p197
      %s200 = sadd.s32 %s199, 1
      %p203 = scmp.eq.s32.totalorder %s24, 1
      %p204 = scmp.ne.s32.totalorder %s199, %s201
      %p205 = scmp.eq.s32.totalorder %s24, 0
      %p206 = por %p204, %p205
      %p207 = scmp.ne.s32.totalorder %s199, %s201
      %p208 = scmp.eq.s32.totalorder %s29, 1
      %p209 = por %p207, %p208
      %p210 = scmp.ne.s32.totalorder %s201, %s202
      %p211 = scmp.eq.s32.totalorder %s29, 0
      %p212 = por %p210, %p211
      %p213 = scmp.ne.s32.totalorder %s201, %s202
      %p214 = scmp.eq.s32.totalorder %s30, 1
      %p215 = por %p213, %p214
      %p217 = scmp.ne.s32.totalorder %s202, %s216
      %p218 = scmp.eq.s32.totalorder %s30, 0
      %p219 = por %p217, %p218
      %s221 = sadd.s32 %s220, 1
      %p224 = scmp.eq.s32.totalorder %s24, 1
      %p225 = scmp.ne.s32.totalorder %s220, %s222
      %p226 = scmp.eq.s32.totalorder %s24, 0
      %p227 = por %p225, %p226
      %p228 = scmp.ne.s32.totalorder %s220, %s222
      %p229 = scmp.eq.s32.totalorder %s29, 1
      %p230 = por %p228, %p229
      %p231 = scmp.ne.s32.totalorder %s222, %s223
      %p232 = scmp.eq.s32.totalorder %s29, 0
      %p233 = por %p231, %p232
      %p234 = scmp.ne.s32.totalorder %s222, %s223
      %p235 = scmp.eq.s32.totalorder %s30, 1
      %p236 = por %p234, %p235
      %p238 = scmp.ne.s32.totalorder %s223, %s237
      %p239 = scmp.eq.s32.totalorder %s30, 0
      %p240 = por %p238, %p239
      %s242 = sadd.s32 %s241, 1
      %p245 = scmp.eq.s32.totalorder %s24, 1
      %p246 = scmp.ne.s32.totalorder %s241, %s243
      %p247 = scmp.eq.s32.totalorder %s24, 0
      %p248 = por %p246, %p247
      %p249 = scmp.ne.s32.totalorder %s241, %s243
      %p250 = scmp.eq.s32.totalorder %s29, 1
      %p251 = por %p249, %p250
      %p252 = scmp.ne.s32.totalorder %s243, %s244
      %p253 = scmp.eq.s32.totalorder %s29, 0
      %p254 = por %p252, %p253
      %p255 = scmp.ne.s32.totalorder %s243, %s244
      %p256 = scmp.eq.s32.totalorder %s30, 1
      %p257 = por %p255, %p256
      %p259 = scmp.ne.s32.totalorder %s244, %s258
      %p260 = scmp.eq.s32.totalorder %s30, 0
      %p261 = por %p259, %p260
      %s263 = sadd.s32 %s262, 1
      %p266 = scmp.eq.s32.totalorder %s24, 1
      %p267 = scmp.ne.s32.totalorder %s262, %s264
      %p268 = scmp.eq.s32.totalorder %s24, 0
      %p269 = por %p267, %p268
      %p270 = scmp.ne.s32.totalorder %s262, %s264
      %p271 = scmp.eq.s32.totalorder %s29, 1
      %p272 = por %p270, %p271
      %p273 = scmp.ne.s32.totalorder %s264, %s265
      %p274 = scmp.eq.s32.totalorder %s29, 0
      %p275 = por %p273, %p274
      %p276 = scmp.ne.s32.totalorder %s264, %s265
      %p277 = scmp.eq.s32.totalorder %s30, 1
      %p278 = por %p276, %p277
      %p280 = scmp.ne.s32.totalorder %s265, %s279
      %p281 = scmp.eq.s32.totalorder %s30, 0
      %p282 = por %p280, %p281
      %s284 = sadd.s32 %s283, 1
      %p287 = scmp.eq.s32.totalorder %s24, 1
      %p288 = scmp.ne.s32.totalorder %s283, %s285
      %p289 = scmp.eq.s32.totalorder %s24, 0
      %p290 = por %p288, %p289
      %p291 = scmp.ne.s32.totalorder %s283, %s285
      %p292 = scmp.eq.s32.totalorder %s29, 1
      %p293 = por %p291, %p292
      %p294 = scmp.ne.s32.totalorder %s285, %s286
      %p295 = scmp.eq.s32.totalorder %s29, 0
      %p296 = por %p294, %p295
      %p297 = scmp.ne.s32.totalorder %s285, %s286
      %p298 = scmp.eq.s32.totalorder %s30, 1
      %p299 = por %p297, %p298
      %p301 = scmp.ne.s32.totalorder %s286, %s300
      %p302 = scmp.eq.s32.totalorder %s30, 0
      %p303 = por %p301, %p302
      %s305 = sadd.s32 %s304, 1
      %p308 = scmp.eq.s32.totalorder %s24, 1
      %p309 = scmp.ne.s32.totalorder %s304, %s306
      %p310 = scmp.eq.s32.totalorder %s24, 0
      %p311 = por %p309, %p310
      %p312 = scmp.ne.s32.totalorder %s304, %s306
      %p313 = scmp.eq.s32.totalorder %s29, 1
      %p314 = por %p312, %p313
      %p315 = scmp.ne.s32.totalorder %s306, %s307
      %p316 = scmp.eq.s32.totalorder %s29, 0
      %p317 = por %p315, %p316
      %p318 = scmp.ne.s32.totalorder %s306, %s307
      %p319 = scmp.eq.s32.totalorder %s30, 1
      %p320 = por %p318, %p319
      %p322 = scmp.ne.s32.totalorder %s307, %s321
      %p323 = scmp.eq.s32.totalorder %s30, 0
      %p324 = por %p322, %p323
      %s326 = sadd.s32 %s325, 1
      %p329 = scmp.eq.s32.totalorder %s24, 1
      %p330 = scmp.ne.s32.totalorder %s325, %s327
      %p331 = scmp.eq.s32.totalorder %s24, 0
      %p332 = por %p330, %p331
      %p333 = scmp.ne.s32.totalorder %s325, %s327
      %p334 = scmp.eq.s32.totalorder %s29, 1
      %p335 = por %p333, %p334
      %p336 = scmp.ne.s32.totalorder %s327, %s328
      %p337 = scmp.eq.s32.totalorder %s29, 0
      %p338 = por %p336, %p337
      %p339 = scmp.ne.s32.totalorder %s327, %s328
      %p340 = scmp.eq.s32.totalorder %s30, 1
      %p341 = por %p339, %p340
      %p343 = scmp.ne.s32.totalorder %s328, %s342
      %p344 = scmp.eq.s32.totalorder %s30, 0
      %p345 = por %p343, %p344
      %s346 = ssub.s32 %s24, %s31
      %p347 = scmp.eq.s32.totalorder %s346, 0
      %s349 = sadd.s32 %s348, 1
      %s350 = scalar_select %p347, %s348, %s349
      %p353 = pneg %p347
      %p354 = scmp.eq.s32.totalorder %s24, 1
      %p355 = por %p353, %p354
      %p356 = scmp.ne.s32.totalorder %s348, %s351
      %p357 = scmp.eq.s32.totalorder %s24, 0
      %p358 = por %p356, %p357
      %p359 = scmp.ne.s32.totalorder %s348, %s351
      %p360 = scmp.eq.s32.totalorder %s29, 1
      %p361 = por %p359, %p360
      %p362 = scmp.ne.s32.totalorder %s351, %s352
      %p363 = scmp.eq.s32.totalorder %s29, 0
      %p364 = por %p362, %p363
      %p365 = scmp.ne.s32.totalorder %s351, %s352
      %p366 = scmp.eq.s32.totalorder %s30, 1
      %p367 = por %p365, %p366
      %p369 = scmp.ne.s32.totalorder %s352, %s368
      %p370 = scmp.eq.s32.totalorder %s30, 0
      %p371 = por %p369, %p370
      %p372 = scmp.le.s32.totalorder 1, %s24
      %p373 = scmp.lt.s32.totalorder %s24, 3
      %p374 = pnand %p372, %p373
      %p375 = pneg %p374
      // Predicated region
      $region9: #{decoder_layer_forward.4} parent=5 // pred_check
        _
      $region10: #{decoder_layer_forward.4} parent=5 // pred_check_branch
        %377 = sbr.rel (%p374) target = $region12
      $region11: #{decoder_layer_forward.4} parent=5 // pred_region
        %s378 = ssub.s32 %s24, 1
        // Predicated region
        $region13: #{decoder_layer_forward.4} parent=11 // pred_check
          %p379 = pneg %p149
        $region14: #{decoder_layer_forward.4} parent=11 // pred_check_branch
          %381 = sbr.rel (%p379) target = $region16
        $region15: #{decoder_layer_forward.4} parent=11 // pred_region
          _
        $region16: #{decoder_layer_forward.4} parent=11 // pred_fallthru
          _
        // Predicated region
        $region17: #{decoder_layer_forward.4} parent=11 // pred_check
          %p382 = pneg %p170
        $region18: #{decoder_layer_forward.4} parent=11 // pred_check_branch
          %384 = sbr.rel (%p382) target = $region20
        $region19: #{decoder_layer_forward.4} parent=11 // pred_region
          %386 = vsyncadd [#allocation3], 0
          %s388 = sshll.u32 %s5, 4
          %s389 = int_to_ptr.hbm [resolvable:$true] %s388
          %s390 = sshll.u32 [#allocation2], 4
          %s391 = int_to_ptr.vmem [resolvable:$true] %s390
          %393 = dma.hbm_to_vmem [thread:$0]  %s389, 16, %s391, [#allocation3]
        $region20: #{decoder_layer_forward.4} parent=11 // pred_fallthru
          _
        // Predicated region
        $region21: #{decoder_layer_forward.4} parent=11 // pred_check
          %p394 = pneg %p191
        $region22: #{decoder_layer_forward.4} parent=11 // pred_check_branch
          %396 = sbr.rel (%p394) target = $region24
        $region23: #{decoder_layer_forward.4} parent=11 // pred_region
          _
        $region24: #{decoder_layer_forward.4} parent=11 // pred_fallthru
          _
        // Predicated region
        $region25: #{decoder_layer_forward.4} parent=11 // pred_check
          %p397 = pneg %p212
        $region26: #{decoder_layer_forward.4} parent=11 // pred_check_branch
          %399 = sbr.rel (%p397) target = $region28
        $region27: #{decoder_layer_forward.4} parent=11 // pred_region
          %401 = vsyncadd [#allocation5], 0
          %s403 = sshll.u32 %s7, 4
          %s404 = int_to_ptr.hbm [resolvable:$true] %s403
          %s405 = sshll.u32 [#allocation4], 4
          %s406 = int_to_ptr.vmem [resolvable:$true] %s405
          %408 = dma.hbm_to_vmem [thread:$0]  %s404, 16, %s406, [#allocation5]
        $region28: #{decoder_layer_forward.4} parent=11 // pred_fallthru
          _
        // Predicated region
        $region29: #{decoder_layer_forward.4} parent=11 // pred_check
          %p409 = pneg %p233
        $region30: #{decoder_layer_forward.4} parent=11 // pred_check_branch
          %411 = sbr.rel (%p409) target = $region32
        $region31: #{decoder_layer_forward.4} parent=11 // pred_region
          _
        $region32: #{decoder_layer_forward.4} parent=11 // pred_fallthru
          _
        // Predicated region
        $region33: #{decoder_layer_forward.4} parent=11 // pred_check
          %p412 = pneg %p254
        $region34: #{decoder_layer_forward.4} parent=11 // pred_check_branch
          %414 = sbr.rel (%p412) target = $region36
        $region35: #{decoder_layer_forward.4} parent=11 // pred_region
          %416 = vsyncadd [#allocation5], 0
          %s418 = sshll.u32 %s9, 4
          %s419 = int_to_ptr.hbm [resolvable:$true] %s418
          %s420 = sshll.u32 [#allocation6], 4
          %s421 = int_to_ptr.vmem [resolvable:$true] %s420
          %423 = dma.hbm_to_vmem [thread:$0]  %s419, 16, %s421, [#allocation5]
        $region36: #{decoder_layer_forward.4} parent=11 // pred_fallthru
          _
        // Predicated region
        $region37: #{decoder_layer_forward.4} parent=11 // pred_check
          %p424 = pneg %p275
        $region38: #{decoder_layer_forward.4} parent=11 // pred_check_branch
          %426 = sbr.rel (%p424) target = $region40
        $region39: #{decoder_layer_forward.4} parent=11 // pred_region
          _
        $region40: #{decoder_layer_forward.4} parent=11 // pred_fallthru
          _
        // Predicated region
        $region41: #{decoder_layer_forward.4} parent=11 // pred_check
          %p427 = pneg %p296
        $region42: #{decoder_layer_forward.4} parent=11 // pred_check_branch
          %429 = sbr.rel (%p427) target = $region44
        $region43: #{decoder_layer_forward.4} parent=11 // pred_region
          %431 = vsyncadd [#allocation8], 0
          %s433 = sshll.u32 %s11, 4
          %s434 = int_to_ptr.hbm [resolvable:$true] %s433
          %s435 = sshll.u32 [#allocation7], 4
          %s436 = int_to_ptr.vmem [resolvable:$true] %s435
          %438 = dma.hbm_to_vmem [thread:$0]  %s434, 16, %s436, [#allocation8]
        $region44: #{decoder_layer_forward.4} parent=11 // pred_fallthru
          _
        // Predicated region
        $region45: #{decoder_layer_forward.4} parent=11 // pred_check
          %p439 = pneg %p317
        $region46: #{decoder_layer_forward.4} parent=11 // pred_check_branch
          %441 = sbr.rel (%p439) target = $region48
        $region47: #{decoder_layer_forward.4} parent=11 // pred_region
          %443 = vsyncadd [#allocation8], 0
          %s445 = sshll.u32 %s12, 4
          %s446 = int_to_ptr.hbm [resolvable:$true] %s445
          %s447 = sshll.u32 [#allocation9], 4
          %s448 = int_to_ptr.vmem [resolvable:$true] %s447
          %450 = dma.hbm_to_vmem [thread:$0]  %s446, 16, %s448, [#allocation8]
        $region48: #{decoder_layer_forward.4} parent=11 // pred_fallthru
          _
        // Predicated region
        $region49: #{decoder_layer_forward.4} parent=11 // pred_check
          %p451 = pneg %p338
        $region50: #{decoder_layer_forward.4} parent=11 // pred_check_branch
          %453 = sbr.rel (%p451) target = $region52
        $region51: #{decoder_layer_forward.4} parent=11 // pred_region
          %455 = vsyncadd [#allocation11], 0
          %s457 = sshll.u32 %s13, 4
          %s458 = int_to_ptr.hbm [resolvable:$true] %s457
          %s459 = sshll.u32 [#allocation10], 4
          %s460 = int_to_ptr.vmem [resolvable:$true] %s459
          %462 = dma.hbm_to_vmem [thread:$0]  %s458, 16, %s460, [#allocation11]
        $region52: #{decoder_layer_forward.4} parent=11 // pred_fallthru
          _
      $region12: #{decoder_layer_forward.4} parent=5 // pred_fallthru
        _
      %p463 = scmp.lt.s32.totalorder %s24, 2
      // Predicated region
      $region53: #{decoder_layer_forward.4} parent=5 // pred_check
        %p464 = pneg %p463
      $region54: #{decoder_layer_forward.4} parent=5 // pred_check_branch
        %466 = sbr.rel (%p464) target = $region56
      $region55: #{decoder_layer_forward.4} parent=5 // pred_region
        // Predicated region
        $region57: #{decoder_layer_forward.4} parent=55 // pred_check
          %p467 = pneg %p44
        $region58: #{decoder_layer_forward.4} parent=55 // pred_check_branch
          %469 = sbr.rel (%p467) target = $region60
        $region59: #{decoder_layer_forward.4} parent=55 // pred_region
          %p470 = scmp.lt.s32.totalorder %s24, 1
          %s471 = scalar_select %p470, %s24, 1
          %s472 = smul.addr %s471, 8
          %s473 = scalar_lea.vmem %s0, %s472
        $region60: #{decoder_layer_forward.4} parent=55 // pred_fallthru
          _
        // Predicated region
        $region61: #{decoder_layer_forward.4} parent=55 // pred_check
          %p474 = pneg %p70
        $region62: #{decoder_layer_forward.4} parent=55 // pred_check_branch
          %476 = sbr.rel (%p474) target = $region64
        $region63: #{decoder_layer_forward.4} parent=55 // pred_region
          %p477 = scmp.lt.s32.totalorder %s24, 1
          %s478 = scalar_select %p477, %s24, 1
          %s479 = smul.addr %s478, 2
          %s480 = smul.addr %s479, 8
          %s481 = scalar_lea.vmem %s1, %s480
        $region64: #{decoder_layer_forward.4} parent=55 // pred_fallthru
          _
        // Predicated region
        $region65: #{decoder_layer_forward.4} parent=55 // pred_check
          %p482 = pneg %p96
        $region66: #{decoder_layer_forward.4} parent=55 // pred_check_branch
          %484 = sbr.rel (%p482) target = $region68
        $region67: #{decoder_layer_forward.4} parent=55 // pred_region
          %p485 = scmp.lt.s32.totalorder %s24, 1
          %s486 = scalar_select %p485, %s24, 1
          %s487 = smul.addr %s486, 2
          %s488 = smul.addr %s487, 8
          %s489 = scalar_lea.vmem %s2, %s488
        $region68: #{decoder_layer_forward.4} parent=55 // pred_fallthru
          _
        // Predicated region
        $region69: #{decoder_layer_forward.4} parent=55 // pred_check
          %p490 = pneg %p122
        $region70: #{decoder_layer_forward.4} parent=55 // pred_check_branch
          %492 = sbr.rel (%p490) target = $region72
        $region71: #{decoder_layer_forward.4} parent=55 // pred_region
          %p493 = scmp.lt.s32.totalorder %s24, 1
          %s494 = scalar_select %p493, %s24, 1
          %s495 = smul.addr %s494, 8
          %s496 = scalar_lea.vmem %s3, %s495
        $region72: #{decoder_layer_forward.4} parent=55 // pred_fallthru
          _
      $region56: #{decoder_layer_forward.4} parent=5 // pred_fallthru
        _
      %p497 = scmp.le.s32.totalorder 1, %s24
      %p498 = scmp.lt.s32.totalorder %s24, 3
      %p499 = pnand %p497, %p498
      %p500 = pneg %p499
      // Predicated region
      $region73: #{decoder_layer_forward.4} parent=5 // pred_check
        _
      $region74: #{decoder_layer_forward.4} parent=5 // pred_check_branch
        %502 = sbr.rel (%p499) target = $region76
      $region75: #{decoder_layer_forward.4} parent=5 // pred_region
        %s503 = ssub.s32 %s24, 1
        // Predicated region
        $region77: #{decoder_layer_forward.4} parent=75 // pred_check
          %p504 = pneg %p170
        $region78: #{decoder_layer_forward.4} parent=75 // pred_check_branch
          %506 = sbr.rel (%p504) target = $region80
        $region79: #{decoder_layer_forward.4} parent=75 // pred_region
          %508 = dma.done [#allocation3], 16
        $region80: #{decoder_layer_forward.4} parent=75 // pred_fallthru
          _
        // Predicated region
        $region81: #{decoder_layer_forward.4} parent=75 // pred_check
          %p509 = pneg %p212
        $region82: #{decoder_layer_forward.4} parent=75 // pred_check_branch
          %511 = sbr.rel (%p509) target = $region84
        $region83: #{decoder_layer_forward.4} parent=75 // pred_region
          %513 = dma.done [#allocation5], 16
        $region84: #{decoder_layer_forward.4} parent=75 // pred_fallthru
          _
        // Predicated region
        $region85: #{decoder_layer_forward.4} parent=75 // pred_check
          %p514 = pneg %p254
        $region86: #{decoder_layer_forward.4} parent=75 // pred_check_branch
          %516 = sbr.rel (%p514) target = $region88
        $region87: #{decoder_layer_forward.4} parent=75 // pred_region
          %518 = dma.done [#allocation5], 16
        $region88: #{decoder_layer_forward.4} parent=75 // pred_fallthru
          _
        // Predicated region
        $region89: #{decoder_layer_forward.4} parent=75 // pred_check
          %p519 = pneg %p296
        $region90: #{decoder_layer_forward.4} parent=75 // pred_check_branch
          %521 = sbr.rel (%p519) target = $region92
        $region91: #{decoder_layer_forward.4} parent=75 // pred_region
          %523 = dma.done [#allocation8], 16
        $region92: #{decoder_layer_forward.4} parent=75 // pred_fallthru
          _
        // Predicated region
        $region93: #{decoder_layer_forward.4} parent=75 // pred_check
          %p524 = pneg %p317
        $region94: #{decoder_layer_forward.4} parent=75 // pred_check_branch
          %526 = sbr.rel (%p524) target = $region96
        $region95: #{decoder_layer_forward.4} parent=75 // pred_region
          %528 = dma.done [#allocation8], 16
        $region96: #{decoder_layer_forward.4} parent=75 // pred_fallthru
          _
        // Predicated region
        $region97: #{decoder_layer_forward.4} parent=75 // pred_check
          %p529 = pneg %p338
        $region98: #{decoder_layer_forward.4} parent=75 // pred_check_branch
          %531 = sbr.rel (%p529) target = $region100
        $region99: #{decoder_layer_forward.4} parent=75 // pred_region
          %533 = dma.done [#allocation11], 16
        $region100: #{decoder_layer_forward.4} parent=75 // pred_fallthru
          _
        %p534 = scmp.lt.s32.totalorder %s29, 1
        %s535 = scalar_select %p534, %s29, 1
        %s536 = smul.addr %s535, 8
        %s537 = scalar_lea.vmem %s0, %s536
        %p538 = pneg %p50
        %p539 = pneg %p47
        %p540 = scmp.lt.s32.totalorder %s29, 1
        %s541 = scalar_select %p540, %s29, 1
        %s542 = smul.addr %s541, 2
        %s543 = smul.addr %s542, 8
        %s544 = scalar_lea.vmem %s1, %s543
        %p545 = pneg %p76
        %p546 = pneg %p73
        %p547 = scmp.lt.s32.totalorder %s29, 1
        %s548 = scalar_select %p547, %s29, 1
        %s549 = smul.addr %s548, 2
        %s550 = smul.addr %s549, 8
        %s551 = scalar_lea.vmem %s2, %s550
        %p552 = pneg %p102
        %p553 = pneg %p99
        %p554 = scmp.lt.s32.totalorder %s29, 1
        %s555 = scalar_select %p554, %s29, 1
        %s556 = smul.addr %s555, 8
        %s557 = scalar_lea.vmem %s3, %s556
        %p558 = pneg %p128
        %p559 = pneg %p125
        %p560 = pneg %p149
        %p561 = pneg %p146
        %p562 = pneg %p170
        %p563 = pneg %p167
        %p564 = pneg %p191
        %p565 = pneg %p188
        %p566 = pneg %p212
        %p567 = pneg %p209
        %p568 = pneg %p233
        %p569 = pneg %p230
        %p570 = pneg %p254
        %p571 = pneg %p251
        %p572 = pneg %p275
        %p573 = pneg %p272
        %p574 = pneg %p296
        %p575 = pneg %p293
        %p576 = pneg %p317
        %p577 = pneg %p314
        %p578 = pneg %p338
        %p579 = pneg %p335
        %p580 = pneg %p364
        %p581 = pneg %p361
        %p582 = scmp.lt.s32.totalorder %s29, 1
        %s583 = scalar_select %p582, %s29, 1
        %s584 = smul.addr %s583, 8
        %s585 = scalar_lea.vmem %s14, %s584
        %p586 = scmp.lt.s32.totalorder %s29, 1
        %s587 = scalar_select %p586, %s29, 1
        %s588 = smul.addr %s587, 8
        %s589 = scalar_lea.vmem %s0, %s588
        %p590 = scmp.lt.s32.totalorder %s29, 1
        %s591 = scalar_select %p590, %s29, 1
        %s592 = smul.addr %s591, 2
        %s593 = smul.addr %s592, 8
        %s594 = scalar_lea.vmem %s1, %s593
        %p595 = scmp.lt.s32.totalorder %s29, 1
        %s596 = scalar_select %p595, %s29, 1
        %s597 = smul.addr %s596, 2
        %s598 = smul.addr %s597, 8
        %s599 = scalar_lea.vmem %s2, %s598
        %p600 = scmp.lt.s32.totalorder %s29, 1
        %s601 = scalar_select %p600, %s29, 1
        %s602 = smul.addr %s601, 8
        %s603 = scalar_lea.vmem %s3, %s602
        %p604 = scmp.lt.s32.totalorder %s29, 1
        %s605 = scalar_select %p604, %s29, 1
        %s606 = smul.addr %s605, 8
        %s607 = scalar_lea.vmem %s14, %s606
        %v609 = vld [vmem:[%s589] sm:$0xff]
        %v610 = vld [vmem:[%s594] sm:$0xff]
        %v611 = vld [vmem:[%s594 + $0x8] sm:$0xff]
        %v612 = vld [vmem:[%s599] sm:$0xff]
        %v613 = vld [vmem:[%s599 + $0x8] sm:$0xff]
        %v614 = vld [vmem:[%s603] sm:$0xff]
        %v615 = vpack.c.bf16 %v609, %v609
        %v616 = vld [vmem:[%s4] sm:$0xff]
        %v617 = vld [vmem:[%s4 + $0x8] sm:$0xff]
        %v618 = vld [vmem:[%s4 + $0x10] sm:$0xff]
        %v619 = vld [vmem:[%s4 + $0x18] sm:$0xff]
        %v620 = vpack.c.bf16 %v617, %v616
        %v621 = vpack.c.bf16 %v619, %v618
        %v622 = vld [vmem:[#allocation2] sm:$0x1]
        %v624 = vperm.slane %v622, 0
        %vm626 = vcmask 261120
        %v628 = vsel %vm626, %v615, 0
        %630 = vmatpush.bf16.msra.mxu0 0
        %631 = vmatpush.bf16.msra.mxu0 0
        %632 = vmatpush.bf16.msra.mxu0 0
        %633 = vmatpush.bf16.msra.mxu0 0
        %634 = vmatpush.bf16.msra.mxu0 0
        %635 = vmatpush.bf16.msra.mxu0 0
        %636 = vmatpush.bf16.msra.mxu0 %v621
        %637 = vmatpush.bf16.msra.mxu0 %v620
        %638 = vmatmul.bf16.gmra.mxu0 %v628
        %v639 = vpop.f32.mrf.mxu0
        %v640 = vadd.f32 %v624, %v639
        %v641 = vpop.f32.mrf.mxu0
        %642 = vdwg.mxu0
        %v643 = vmul.f32 %v640, 0.35355338
        %v644 = vpack.c.bf16 %v611, %v610
        %v645 = vld [vmem:[%s6] sm:$0xff]
        %v646 = vld [vmem:[%s6 + $0x8] sm:$0xff]
        %v647 = vld [vmem:[%s6 + $0x10] sm:$0xff]
        %v648 = vld [vmem:[%s6 + $0x18] sm:$0xff]
        %v649 = vpack.c.bf16 %v646, %v645
        %v650 = vpack.c.bf16 %v648, %v647
        %v651 = vld [vmem:[#allocation4] sm:$0x1]
        %v653 = vperm.slane %v651, 0
        %v656 = vsel %vm626, %v644, 0
        %658 = vmatpush.bf16.msra.mxu0 0
        %659 = vmatpush.bf16.msra.mxu0 0
        %660 = vmatpush.bf16.msra.mxu0 0
        %661 = vmatpush.bf16.msra.mxu0 0
        %662 = vmatpush.bf16.msra.mxu0 0
        %663 = vmatpush.bf16.msra.mxu0 0
        %664 = vmatpush.bf16.msra.mxu0 %v650
        %665 = vmatpush.bf16.msra.mxu0 %v649
        %666 = vmatmul.bf16.gmra.mxu0 %v656
        %v667 = vpop.f32.mrf.mxu0
        %v668 = vadd.f32 %v653, %v667
        %v669 = vpop.f32.mrf.mxu0
        %v670 = vadd.f32 %v653, %v669
        %671 = vdwg.mxu0
        %v672 = vpack.c.bf16 %v613, %v612
        %v673 = vld [vmem:[%s8] sm:$0xff]
        %v674 = vld [vmem:[%s8 + $0x8] sm:$0xff]
        %v675 = vld [vmem:[%s8 + $0x10] sm:$0xff]
        %v676 = vld [vmem:[%s8 + $0x18] sm:$0xff]
        %v677 = vpack.c.bf16 %v674, %v673
        %v678 = vpack.c.bf16 %v676, %v675
        %v679 = vld [vmem:[#allocation6] sm:$0x1]
        %v681 = vperm.slane %v679, 0
        %v684 = vsel %vm626, %v672, 0
        %686 = vmatpush.bf16.msra.mxu0 0
        %687 = vmatpush.bf16.msra.mxu0 0
        %688 = vmatpush.bf16.msra.mxu0 0
        %689 = vmatpush.bf16.msra.mxu0 0
        %690 = vmatpush.bf16.msra.mxu0 0
        %691 = vmatpush.bf16.msra.mxu0 0
        %692 = vmatpush.bf16.msra.mxu0 %v678
        %693 = vmatpush.bf16.msra.mxu0 %v677
        %694 = vmatmul.bf16.gmra.mxu0 %v684
        %v695 = vpop.f32.mrf.mxu0
        %v696 = vadd.f32 %v681, %v695
        %v697 = vpop.f32.mrf.mxu0
        %v698 = vadd.f32 %v681, %v697
        %699 = vdwg.mxu0
        %v700 = vpack.c.bf16 %v643, %v643
        %v701 = vpack.c.bf16 %v670, %v668
        %v702 = vpack.c.bf16 %v698, %v696
        %vm703 = vcmask 64512
        %v705 = vsel %vm703, %v700, 0
        %v708 = vsel %vm703, %v701, 0
        %710 = vmatpush.bf16.xpose.msra.mxu0 0
        %711 = vmatpush.bf16.xpose.msra.mxu0 0
        %712 = vmatpush.bf16.xpose.msra.mxu0 0
        %713 = vmatpush.bf16.xpose.msra.mxu0 0
        %714 = vmatpush.bf16.xpose.msra.mxu0 0
        %715 = vmatpush.bf16.xpose.msra.mxu0 0
        %716 = vmatpush.bf16.xpose.msra.mxu0 0
        %717 = vmatpush.bf16.xpose.msra.mxu0 %v708
        %718 = vmatmul.bf16.gmra.mxu0 %v705
        %v719 = vpop.f32.mrf.mxu0
        %v720 = vadd.f32 0.0, %v719
        %v721 = vpop.f32.mrf.mxu0
        %722 = vdwg.mxu0
        %vm723 = vcmask 130048
        %v724 = vsel %vm723, %v720, -inf
        %725 = vmax.xlane.f32.xlu0 %v724
        %v726 = vpop.xlane.xlu0 %725
        %v727 = vsub.f32 %v720, %v726
        %v728 = vmul.f32 %v727, 1.442695
        %v729 = vpow.pop %v728
        %v730 = vsel %vm723, %v729, 0.0
        %731 = vadd.xlane.f32.xlu0 %v730
        %v732 = vpop.xlane.xlu0 %731
        %v733 = vrcp.pop %v732
        %v734 = vmul.f32 %v729, %v733
        %v735 = vpack.c.bf16 %v734, %v734
        %v737 = vsel %vm723, %v735, 0
        %739 = vmatpush.bf16.msra.mxu0 0
        %740 = vmatpush.bf16.msra.mxu0 0
        %741 = vmatpush.bf16.msra.mxu0 0
        %742 = vmatpush.bf16.msra.mxu0 0
        %743 = vmatpush.bf16.msra.mxu0 0
        %744 = vmatpush.bf16.msra.mxu0 0
        %745 = vmatpush.bf16.msra.mxu0 0
        %746 = vmatpush.bf16.msra.mxu0 %v702
        %747 = vmatmul.bf16.gmra.mxu0 %v737
        %v748 = vpop.f32.mrf.mxu0
        %v749 = vadd.f32 0.0, %v748
        %v750 = vpop.f32.mrf.mxu0
        %751 = vdwg.mxu0
        %753 = vrot.lane.b32.xlu0 %v700, 120
        %v754 = vpop.permute.xlu0 %753
        %756 = vrot.lane.b32.xlu0 %v701, 120
        %v757 = vpop.permute.xlu0 %756
        %v759 = vsel %vm703, %v754, 0
        %v762 = vsel %vm703, %v757, 0
        %764 = vmatpush.bf16.xpose.msra.mxu0 0
        %765 = vmatpush.bf16.xpose.msra.mxu0 0
        %766 = vmatpush.bf16.xpose.msra.mxu0 0
        %767 = vmatpush.bf16.xpose.msra.mxu0 0
        %768 = vmatpush.bf16.xpose.msra.mxu0 0
        %769 = vmatpush.bf16.xpose.msra.mxu0 0
        %770 = vmatpush.bf16.xpose.msra.mxu0 0
        %771 = vmatpush.bf16.xpose.msra.mxu0 %v762
        %772 = vmatmul.bf16.gmra.mxu0 %v759
        %v773 = vpop.f32.mrf.mxu0
        %v774 = vadd.f32 0.0, %v773
        %v775 = vpop.f32.mrf.mxu0
        %776 = vdwg.mxu0
        %v777 = vsel %vm723, %v774, -inf
        %778 = vmax.xlane.f32.xlu0 %v777
        %v779 = vpop.xlane.xlu0 %778
        %v780 = vsub.f32 %v774, %v779
        %v781 = vmul.f32 %v780, 1.442695
        %v782 = vpow.pop %v781
        %v783 = vsel %vm723, %v782, 0.0
        %784 = vadd.xlane.f32.xlu0 %v783
        %v785 = vpop.xlane.xlu0 %784
        %v786 = vrcp.pop %v785
        %v787 = vmul.f32 %v782, %v786
        %v788 = vpack.c.bf16 %v787, %v787
        %790 = vrot.lane.b32.xlu0 %v702, 120
        %v791 = vpop.permute.xlu0 %790
        %v794 = vsel %vm723, %v788, 0
        %796 = vmatpush.bf16.msra.mxu0 0
        %797 = vmatpush.bf16.msra.mxu0 0
        %798 = vmatpush.bf16.msra.mxu0 0
        %799 = vmatpush.bf16.msra.mxu0 0
        %800 = vmatpush.bf16.msra.mxu0 0
        %801 = vmatpush.bf16.msra.mxu0 0
        %802 = vmatpush.bf16.msra.mxu0 0
        %803 = vmatpush.bf16.msra.mxu0 %v791
        %804 = vmatmul.bf16.gmra.mxu0 %v794
        %v805 = vpop.f32.mrf.mxu0
        %v806 = vadd.f32 0.0, %v805
        %v807 = vpop.f32.mrf.mxu0
        %808 = vdwg.mxu0
        %809 = vrot.lane.b32.xlu0 %v700, 112
        %v810 = vpop.permute.xlu0 %809
        %811 = vrot.lane.b32.xlu0 %v701, 112
        %v812 = vpop.permute.xlu0 %811
        %v814 = vsel %vm703, %v810, 0
        %v817 = vsel %vm703, %v812, 0
        %819 = vmatpush.bf16.xpose.msra.mxu0 0
        %820 = vmatpush.bf16.xpose.msra.mxu0 0
        %821 = vmatpush.bf16.xpose.msra.mxu0 0
        %822 = vmatpush.bf16.xpose.msra.mxu0 0
        %823 = vmatpush.bf16.xpose.msra.mxu0 0
        %824 = vmatpush.bf16.xpose.msra.mxu0 0
        %825 = vmatpush.bf16.xpose.msra.mxu0 0
        %826 = vmatpush.bf16.xpose.msra.mxu0 %v817
        %827 = vmatmul.bf16.gmra.mxu0 %v814
        %v828 = vpop.f32.mrf.mxu0
        %v829 = vadd.f32 0.0, %v828
        %v830 = vpop.f32.mrf.mxu0
        %831 = vdwg.mxu0
        %v832 = vsel %vm723, %v829, -inf
        %833 = vmax.xlane.f32.xlu0 %v832
        %v834 = vpop.xlane.xlu0 %833
        %v835 = vsub.f32 %v829, %v834
        %v836 = vmul.f32 %v835, 1.442695
        %v837 = vpow.pop %v836
        %v838 = vsel %vm723, %v837, 0.0
        %839 = vadd.xlane.f32.xlu0 %v838
        %v840 = vpop.xlane.xlu0 %839
        %v841 = vrcp.pop %v840
        %v842 = vmul.f32 %v837, %v841
        %v843 = vpack.c.bf16 %v842, %v842
        %844 = vrot.lane.b32.xlu0 %v702, 112
        %v845 = vpop.permute.xlu0 %844
        %v848 = vsel %vm723, %v843, 0
        %850 = vmatpush.bf16.msra.mxu0 0
        %851 = vmatpush.bf16.msra.mxu0 0
        %852 = vmatpush.bf16.msra.mxu0 0
        %853 = vmatpush.bf16.msra.mxu0 0
        %854 = vmatpush.bf16.msra.mxu0 0
        %855 = vmatpush.bf16.msra.mxu0 0
        %856 = vmatpush.bf16.msra.mxu0 0
        %857 = vmatpush.bf16.msra.mxu0 %v845
        %858 = vmatmul.bf16.gmra.mxu0 %v848
        %v859 = vpop.f32.mrf.mxu0
        %v860 = vadd.f32 0.0, %v859
        %v861 = vpop.f32.mrf.mxu0
        %862 = vdwg.mxu0
        %863 = vrot.lane.b32.xlu0 %v700, 104
        %v864 = vpop.permute.xlu0 %863
        %865 = vrot.lane.b32.xlu0 %v701, 104
        %v866 = vpop.permute.xlu0 %865
        %v868 = vsel %vm703, %v864, 0
        %v871 = vsel %vm703, %v866, 0
        %873 = vmatpush.bf16.xpose.msra.mxu0 0
        %874 = vmatpush.bf16.xpose.msra.mxu0 0
        %875 = vmatpush.bf16.xpose.msra.mxu0 0
        %876 = vmatpush.bf16.xpose.msra.mxu0 0
        %877 = vmatpush.bf16.xpose.msra.mxu0 0
        %878 = vmatpush.bf16.xpose.msra.mxu0 0
        %879 = vmatpush.bf16.xpose.msra.mxu0 0
        %880 = vmatpush.bf16.xpose.msra.mxu0 %v871
        %881 = vmatmul.bf16.gmra.mxu0 %v868
        %v882 = vpop.f32.mrf.mxu0
        %v883 = vadd.f32 0.0, %v882
        %v884 = vpop.f32.mrf.mxu0
        %885 = vdwg.mxu0
        %v886 = vsel %vm723, %v883, -inf
        %887 = vmax.xlane.f32.xlu0 %v886
        %v888 = vpop.xlane.xlu0 %887
        %v889 = vsub.f32 %v883, %v888
        %v890 = vmul.f32 %v889, 1.442695
        %v891 = vpow.pop %v890
        %v892 = vsel %vm723, %v891, 0.0
        %893 = vadd.xlane.f32.xlu0 %v892
        %v894 = vpop.xlane.xlu0 %893
        %v895 = vrcp.pop %v894
        %v896 = vmul.f32 %v891, %v895
        %v897 = vpack.c.bf16 %v896, %v896
        %898 = vrot.lane.b32.xlu0 %v702, 104
        %v899 = vpop.permute.xlu0 %898
        %v902 = vsel %vm723, %v897, 0
        %904 = vmatpush.bf16.msra.mxu0 0
        %905 = vmatpush.bf16.msra.mxu0 0
        %906 = vmatpush.bf16.msra.mxu0 0
        %907 = vmatpush.bf16.msra.mxu0 0
        %908 = vmatpush.bf16.msra.mxu0 0
        %909 = vmatpush.bf16.msra.mxu0 0
        %910 = vmatpush.bf16.msra.mxu0 0
        %911 = vmatpush.bf16.msra.mxu0 %v899
        %912 = vmatmul.bf16.gmra.mxu0 %v902
        %v913 = vpop.f32.mrf.mxu0
        %v914 = vadd.f32 0.0, %v913
        %v915 = vpop.f32.mrf.mxu0
        %916 = vdwg.mxu0
        %918 = vrot.lane.b32.xlu0 %v806, 8
        %v919 = vpop.permute.xlu0 %918
        %922 = vrot.lane.b32.xlu0 %v860, 16
        %v923 = vpop.permute.xlu0 %922
        %926 = vrot.lane.b32.xlu0 %v914, 24
        %v927 = vpop.permute.xlu0 %926
        %v929 = vsel %vm703, %v749, %v919
        %v930 = vsel %vm723, %v929, %v923
        %vm931 = vcmask 195584
        %v932 = vsel %vm931, %v930, %v927
        %v933 = vpack.c.bf16 %v932, %v932
        %v934 = vld [vmem:[%s10] sm:$0xff]
        %v935 = vld [vmem:[%s10 + $0x8] sm:$0xff]
        %v936 = vld [vmem:[%s10 + $0x10] sm:$0xff]
        %v937 = vld [vmem:[%s10 + $0x18] sm:$0xff]
        %v938 = vpack.c.bf16 %v935, %v934
        %v939 = vpack.c.bf16 %v937, %v936
        %v940 = vld [vmem:[#allocation7] sm:$0x1]
        %v942 = vperm.slane %v940, 0
        %v945 = vsel %vm626, %v933, 0
        %947 = vmatpush.bf16.msra.mxu0 0
        %948 = vmatpush.bf16.msra.mxu0 0
        %949 = vmatpush.bf16.msra.mxu0 0
        %950 = vmatpush.bf16.msra.mxu0 0
        %951 = vmatpush.bf16.msra.mxu0 0
        %952 = vmatpush.bf16.msra.mxu0 0
        %953 = vmatpush.bf16.msra.mxu0 %v939
        %954 = vmatpush.bf16.msra.mxu0 %v938
        %955 = vmatmul.bf16.gmra.mxu0 %v945
        %v956 = vpop.f32.mrf.mxu0
        %v957 = vadd.f32 %v942, %v956
        %v958 = vpop.f32.mrf.mxu0
        %959 = vdwg.mxu0
        %v960 = vadd.f32 %v614, %v957
        %v961 = vsel %vm626, %v960, 0.0
        %962 = vadd.xlane.f32.xlu0 %v961
        %v963 = vpop.xlane.xlu0 %962
        %v964 = vrcp.pop 32.0
        %v965 = vmul.f32 32.0, %v964
        %v966 = vsub.f32 1.0, %v965
        %v967 = vmul.f32 %v964, %v966
        %v968 = vadd.f32 %v964, %v967
        %vm969 = vweird.f32 %v964
        %v970 = vsel %vm969, %v964, %v968
        %v971 = vmul.f32 %v963, %v970
        %v972 = vsub.f32 %v960, %v971
        %v973 = vmul.f32 %v972, %v972
        %v974 = vsel %vm626, %v973, 0.0
        %975 = vadd.xlane.f32.xlu0 %v974
        %v976 = vpop.xlane.xlu0 %975
        %v977 = vmul.f32 %v976, %v970
        %v978 = vadd.f32 %v977, 1e-05
        %v979 = vrsqrt.pop %v978
        %v980 = vmul.f32 %v979, %v978
        %v981 = vmul.f32 %v980, %v979
        %v982 = vmul.f32 0.5, %v981
        %v983 = vsub.f32 1.5, %v982
        %v984 = vmul.f32 %v979, %v983
        %vm985 = vweird.f32 %v978
        %vm986 = vweird.f32 %v979
        %vm987 = vmor %vm985, %vm986
        %v988 = vsel %vm987, %v979, %v984
        %v989 = vmul.f32 %v972, %v988
        %v990 = vld [vmem:[#allocation9] sm:$0x1]
        %v992 = vperm.slane %v990, 0
        %v994 = vmul.f32 %v989, %v992
        %v995 = vld [vmem:[#allocation10] sm:$0x1]
        %v997 = vperm.slane %v995, 0
        %v999 = vadd.f32 %v994, %v997
        %1000 = vst.msk [vmem:[%s607] sm:$0xff] %vm626, %v999
        %p1001 = scmp.lt.s32.totalorder %s29, 1
        %s1002 = scalar_select %p1001, %s29, 1
        %s1003 = smul.addr %s1002, 8
        %s1004 = scalar_lea.vmem %s14, %s1003
        // Predicated region
        $region101: #{decoder_layer_forward.4} parent=75 // pred_check
          %p1005 = pneg %p361
        $region102: #{decoder_layer_forward.4} parent=75 // pred_check_branch
          %1007 = sbr.rel (%p1005) target = $region104
        $region103: #{decoder_layer_forward.4} parent=75 // pred_region
          _
        $region104: #{decoder_layer_forward.4} parent=75 // pred_fallthru
          _
      $region76: #{decoder_layer_forward.4} parent=5 // pred_fallthru
        _
      %p1008 = scmp.le.s32.totalorder 2, %s24
      // Predicated region
      $region105: #{decoder_layer_forward.4} parent=5 // pred_check
        %p1009 = pneg %p1008
      $region106: #{decoder_layer_forward.4} parent=5 // pred_check_branch
        %1011 = sbr.rel (%p1009) target = $region108
      $region107: #{decoder_layer_forward.4} parent=5 // pred_region
        %s1012 = ssub.s32 %s24, 2
        // Predicated region
        $region109: #{decoder_layer_forward.4} parent=107 // pred_check
          %p1013 = pneg %p367
        $region110: #{decoder_layer_forward.4} parent=107 // pred_check_branch
          %1015 = sbr.rel (%p1013) target = $region112
        $region111: #{decoder_layer_forward.4} parent=107 // pred_region
          %p1016 = scmp.lt.s32.totalorder %s30, 1
          %s1017 = scalar_select %p1016, %s30, 1
          %s1018 = smul.addr %s1017, 8
          %s1019 = scalar_lea.vmem %s14, %s1018
        $region112: #{decoder_layer_forward.4} parent=107 // pred_fallthru
          _
      $region108: #{decoder_layer_forward.4} parent=5 // pred_fallthru
        _
    $region6: #{decoder_layer_forward.4} parent=1 // loop_footer
      %s28 = sadd.s32 1, %s24
    $region7: #{decoder_layer_forward.4} parent=1 // loop_footer_branch
      %23 = sbr.rel target = $region3
    $region8: #{decoder_layer_forward.4} parent=1 // loop_exit
      _
    %1020 = vsyncpa [#allocation3], 1
    %s1021 = scalar_lea.sflag [#allocation3], 1
    %1022 = vsyncpa %s1021, 1
    %1023 = vsyncpa [#allocation5], 1
    %1024 = vsyncpa [#allocation8], 1
    %1025 = vsyncpa [#allocation11], 1

// kernel: decoder_layer_forward.5
$region0: #{decoder_layer_forward.5}
  #allocation0 [shape = 'u32[]', space=smem, size = 0x4, offset = 0x4, fixed_abs, tag = 'smem constant byte address 0x4 - core index']
  #allocation1 [shape = 'u32[72,128]{1,0:T(1,128)}', space=vmem, size = 0x9000, scoped, tag = 'internal scratch']
  %s0 = inlined_call_operand.vmem [shape: f32[16,32], index: 0, kind: input, shape index: {}]
  %s1 = inlined_call_operand.vmem [shape: f32[32,64], index: 1, kind: input, shape index: {}]
  %s2 = inlined_call_operand.vmem [shape: f32[1,64], index: 2, kind: input, shape index: {}]
  %s3 = inlined_call_operand.vmem [shape: f32[64,32], index: 3, kind: input, shape index: {}]
  %s4 = inlined_call_operand.vmem [shape: f32[1,32], index: 4, kind: input, shape index: {}]
  %s5 = inlined_call_operand.vmem [shape: f32[1,32], index: 5, kind: input, shape index: {}]
  %s6 = inlined_call_operand.vmem [shape: f32[1,32], index: 6, kind: input, shape index: {}]
  %s7 = inlined_call_operand.vmem [shape: f32[16,32], index: 7, kind: output, shape index: {}]
  %s8 = sld [smem:[#allocation0]]
  $region38: #{decoder_layer_forward.5} parent=0
    _
  %s10 = ssub.s32 1, %s8
  %s11 = scalar_select 0, %s10, %s8
  // Predicated region
  $region2: #{decoder_layer_forward.5} parent=0 // pred_check
    _
  $region3: #{decoder_layer_forward.5} parent=0 // pred_check_branch
    %13 = sbr.rel (0) target = $region5
  $region4: #{decoder_layer_forward.5} parent=0 // pred_region
    _
  $region5: #{decoder_layer_forward.5} parent=0 // pred_fallthru
    _
  // Predicated region
  $region6: #{decoder_layer_forward.5} parent=0 // pred_check
    _
  $region7: #{decoder_layer_forward.5} parent=0 // pred_check_branch
    %15 = sbr.rel (0) target = $region9
  $region8: #{decoder_layer_forward.5} parent=0 // pred_region
    _
  $region9: #{decoder_layer_forward.5} parent=0 // pred_fallthru
    _
  // Predicated region
  $region10: #{decoder_layer_forward.5} parent=0 // pred_check
    _
  $region11: #{decoder_layer_forward.5} parent=0 // pred_check_branch
    %17 = sbr.rel (0) target = $region13
  $region12: #{decoder_layer_forward.5} parent=0 // pred_region
    _
  $region13: #{decoder_layer_forward.5} parent=0 // pred_fallthru
    _
  // Predicated region
  $region14: #{decoder_layer_forward.5} parent=0 // pred_check
    _
  $region15: #{decoder_layer_forward.5} parent=0 // pred_check_branch
    %19 = sbr.rel (0) target = $region17
  $region16: #{decoder_layer_forward.5} parent=0 // pred_region
    _
  $region17: #{decoder_layer_forward.5} parent=0 // pred_fallthru
    _
  // Predicated region
  $region18: #{decoder_layer_forward.5} parent=0 // pred_check
    _
  $region19: #{decoder_layer_forward.5} parent=0 // pred_check_branch
    %21 = sbr.rel (0) target = $region21
  $region20: #{decoder_layer_forward.5} parent=0 // pred_region
    _
  $region21: #{decoder_layer_forward.5} parent=0 // pred_fallthru
    _
  // Predicated region
  $region22: #{decoder_layer_forward.5} parent=0 // pred_check
    _
  $region23: #{decoder_layer_forward.5} parent=0 // pred_check_branch
    %23 = sbr.rel (0) target = $region25
  $region24: #{decoder_layer_forward.5} parent=0 // pred_region
    _
  $region25: #{decoder_layer_forward.5} parent=0 // pred_fallthru
    _
  // Predicated region
  $region26: #{decoder_layer_forward.5} parent=0 // pred_check
    _
  $region27: #{decoder_layer_forward.5} parent=0 // pred_check_branch
    %25 = sbr.rel (0) target = $region29
  $region28: #{decoder_layer_forward.5} parent=0 // pred_region
    _
  $region29: #{decoder_layer_forward.5} parent=0 // pred_fallthru
    _
  %v27 = vld [vmem:[%s0] sm:$0xff]
  %v28 = vld [vmem:[%s0 + $0x8] sm:$0xff]
  %v29 = vpack.c.bf16 %v28, %v27
  %v30 = vld [vmem:[%s1] sm:$0xff]
  %v31 = vld [vmem:[%s1 + $0x8] sm:$0xff]
  %v32 = vld [vmem:[%s1 + $0x10] sm:$0xff]
  %v33 = vld [vmem:[%s1 + $0x18] sm:$0xff]
  %v34 = vpack.c.bf16 %v31, %v30
  %v35 = vpack.c.bf16 %v33, %v32
  %v36 = vld [vmem:[%s2] sm:$0x1]
  %v38 = vperm.slane %v36, 0
  %vm40 = vcmask 261120
  %v42 = vsel %vm40, %v29, 0
  %44 = vmatpush.bf16.msra.mxu0 0
  %45 = vmatpush.bf16.msra.mxu0 0
  %46 = vmatpush.bf16.msra.mxu0 0
  %47 = vmatpush.bf16.msra.mxu0 0
  %48 = vmatpush.bf16.msra.mxu0 0
  %49 = vmatpush.bf16.msra.mxu0 0
  %50 = vmatpush.bf16.msra.mxu0 %v35
  %51 = vmatpush.bf16.msra.mxu0 %v34
  %52 = vmatmul.bf16.gmra.mxu0 %v42
  %v53 = vpop.f32.mrf.mxu0
  %v54 = vadd.f32 %v38, %v53
  %v55 = vpop.f32.mrf.mxu0
  %v56 = vadd.f32 %v38, %v55
  %57 = vdwg.mxu0
  %v58 = vmax.f32 %v54, 0.0
  %v59 = vmax.f32 %v56, 0.0
  %v60 = vpack.c.bf16 %v59, %v58
  %v61 = vld [vmem:[%s3] sm:$0xff]
  %v62 = vld [vmem:[%s3 + $0x8] sm:$0xff]
  %v63 = vld [vmem:[%s3 + $0x10] sm:$0xff]
  %v64 = vld [vmem:[%s3 + $0x18] sm:$0xff]
  %v65 = vld [vmem:[%s3 + $0x20] sm:$0xff]
  %v66 = vld [vmem:[%s3 + $0x28] sm:$0xff]
  %v67 = vld [vmem:[%s3 + $0x30] sm:$0xff]
  %v68 = vld [vmem:[%s3 + $0x38] sm:$0xff]
  %v69 = vpack.c.bf16 %v62, %v61
  %v70 = vpack.c.bf16 %v64, %v63
  %v71 = vpack.c.bf16 %v66, %v65
  %v72 = vpack.c.bf16 %v68, %v67
  %v73 = vld [vmem:[%s4] sm:$0x1]
  %v75 = vperm.slane %v73, 0
  %vm77 = vcmask 523264
  %v79 = vsel %vm77, %v60, 0
  %81 = vmatpush.bf16.msra.mxu0 0
  %82 = vmatpush.bf16.msra.mxu0 0
  %83 = vmatpush.bf16.msra.mxu0 0
  %84 = vmatpush.bf16.msra.mxu0 0
  %85 = vmatpush.bf16.msra.mxu0 %v72
  %86 = vmatpush.bf16.msra.mxu0 %v71
  %87 = vmatpush.bf16.msra.mxu0 %v70
  %88 = vmatpush.bf16.msra.mxu0 %v69
  %89 = vmatmul.bf16.gmra.mxu0 %v79
  %v90 = vpop.f32.mrf.mxu0
  %v91 = vadd.f32 %v75, %v90
  %v92 = vpop.f32.mrf.mxu0
  %v93 = vadd.f32 %v75, %v92
  %94 = vdwg.mxu0
  %v95 = vadd.f32 %v27, %v91
  %v96 = vadd.f32 %v28, %v93
  %v97 = vsel %vm40, %v95, 0.0
  %98 = vadd.xlane.f32.xlu0 %v97
  %v99 = vpop.xlane.xlu0 %98
  %v100 = vsel %vm40, %v96, 0.0
  %101 = vadd.xlane.f32.xlu0 %v100
  %v102 = vpop.xlane.xlu0 %101
  %v103 = vrcp.pop 32.0
  %v104 = vmul.f32 32.0, %v103
  %v105 = vsub.f32 1.0, %v104
  %v106 = vmul.f32 %v103, %v105
  %v107 = vadd.f32 %v103, %v106
  %vm108 = vweird.f32 %v103
  %v109 = vsel %vm108, %v103, %v107
  %v110 = vmul.f32 %v99, %v109
  %v111 = vmul.f32 %v102, %v109
  %v112 = vsub.f32 %v95, %v110
  %v113 = vsub.f32 %v96, %v111
  %v114 = vmul.f32 %v112, %v112
  %v115 = vmul.f32 %v113, %v113
  %v116 = vsel %vm40, %v114, 0.0
  %117 = vadd.xlane.f32.xlu0 %v116
  %v118 = vpop.xlane.xlu0 %117
  %v119 = vsel %vm40, %v115, 0.0
  %120 = vadd.xlane.f32.xlu0 %v119
  %v121 = vpop.xlane.xlu0 %120
  %v122 = vmul.f32 %v118, %v109
  %v123 = vmul.f32 %v121, %v109
  %v124 = vadd.f32 %v122, 1e-05
  %v125 = vadd.f32 %v123, 1e-05
  %v126 = vrsqrt.pop %v124
  %v127 = vmul.f32 %v126, %v124
  %v128 = vmul.f32 %v127, %v126
  %v129 = vmul.f32 0.5, %v128
  %v130 = vsub.f32 1.5, %v129
  %v131 = vmul.f32 %v126, %v130
  %vm132 = vweird.f32 %v124
  %vm133 = vweird.f32 %v126
  %vm134 = vmor %vm132, %vm133
  %v135 = vsel %vm134, %v126, %v131
  %v136 = vrsqrt.pop %v125
  %v137 = vmul.f32 %v136, %v125
  %v138 = vmul.f32 %v137, %v136
  %v139 = vmul.f32 0.5, %v138
  %v140 = vsub.f32 1.5, %v139
  %v141 = vmul.f32 %v136, %v140
  %vm142 = vweird.f32 %v125
  %vm143 = vweird.f32 %v136
  %vm144 = vmor %vm142, %vm143
  %v145 = vsel %vm144, %v136, %v141
  %v146 = vmul.f32 %v112, %v135
  %v147 = vmul.f32 %v113, %v145
  %v148 = vld [vmem:[%s5] sm:$0x1]
  %v150 = vperm.slane %v148, 0
  %v152 = vmul.f32 %v146, %v150
  %v153 = vmul.f32 %v147, %v150
  %v154 = vld [vmem:[%s6] sm:$0x1]
  %v156 = vperm.slane %v154, 0
  %v158 = vadd.f32 %v152, %v156
  %v159 = vadd.f32 %v153, %v156
  %160 = vst.msk [vmem:[%s7] sm:$0xff] %vm40, %v158
  %161 = vst.msk [vmem:[%s7 + $0x8] sm:$0xff] %vm40, %v159
  // Predicated region
  $region30: #{decoder_layer_forward.5} parent=0 // pred_check
    _
  $region31: #{decoder_layer_forward.5} parent=0 // pred_check_branch
    %163 = sbr.rel (0) target = $region33
  $region32: #{decoder_layer_forward.5} parent=0 // pred_region
    _
  $region33: #{decoder_layer_forward.5} parent=0 // pred_fallthru
    _
  // Predicated region
  $region34: #{decoder_layer_forward.5} parent=0 // pred_check
    _
  $region35: #{decoder_layer_forward.5} parent=0 // pred_check_branch
    %165 = sbr.rel (0) target = $region37
  $region36: #{decoder_layer_forward.5} parent=0 // pred_region
    _
  $region37: #{decoder_layer_forward.5} parent=0 // pred_fallthru
    _

// kernel: decoder_layer_forward.3
$region0: #{decoder_layer_forward.3}
  #allocation0 [shape = 'u32[]', space=smem, size = 0x4, offset = 0x4, fixed_abs, tag = 'smem constant byte address 0x4 - core index']
  #allocation1 [shape = 'u32[72,128]{1,0:T(1,128)}', space=vmem, size = 0x9000, scoped, tag = 'internal scratch']
  %s0 = inlined_call_operand.vmem [shape: f32[2,8,32], index: 0, kind: input, shape index: {}, may-alias: {0,1}]
  %s1 = inlined_call_operand.vmem [shape: f32[2,8,32], index: 1, kind: input, shape index: {}, may-alias: {0,1}]
  %s2 = inlined_call_operand.vmem [shape: f32[2,8,32], index: 2, kind: input, shape index: {}, may-alias: {2,3}]
  %s3 = inlined_call_operand.vmem [shape: f32[2,8,32], index: 3, kind: input, shape index: {}, may-alias: {2,3}]
  %s4 = inlined_call_operand.vmem [shape: f32[32,32], index: 4, kind: input, shape index: {}]
  %s5 = inlined_call_operand.vmem [shape: f32[1,32], index: 5, kind: input, shape index: {}]
  %s6 = inlined_call_operand.vmem [shape: f32[32,32], index: 6, kind: input, shape index: {}]
  %s7 = inlined_call_operand.hbm [shape: f32[1,32], index: 7, kind: input, shape index: {}]
  %s8 = inlined_call_operand.hbm [shape: f32[32,32], index: 8, kind: input, shape index: {}]
  %s9 = inlined_call_operand.hbm [shape: f32[1,32], index: 9, kind: input, shape index: {}]
  %s10 = inlined_call_operand.hbm [shape: f32[32,32], index: 10, kind: input, shape index: {}]
  %s11 = inlined_call_operand.hbm [shape: f32[1,32], index: 11, kind: input, shape index: {}]
  %s12 = inlined_call_operand.hbm [shape: f32[1,32], index: 12, kind: input, shape index: {}]
  %s13 = inlined_call_operand.hbm [shape: f32[1,32], index: 13, kind: input, shape index: {}]
  %s14 = inlined_call_operand.vmem [shape: f32[2,8,32], index: 14, kind: output, shape index: {}]
  %s15 = sld [smem:[#allocation0]]
  $region117: #{decoder_layer_forward.3} parent=0
    _
  %s17 = ssub.s32 1, %s15
  %s18 = scalar_select 0, %s17, %s15
  $region1: #{decoder_layer_forward.3} parent=0
    #allocation2 [shape = 'u8[512]{0}', space=vmem, size = 0x400, scoped, tag = 'input window, operand 7, single buffered']
    #allocation3 [shape = 's32[2]{0}', space=sflag, size = 0x8, scoped, tag = 'scoped memory for decoder_layer_forward.3']
    #allocation4 [shape = 'u8[16384]{0}', space=vmem, size = 0x4000, scoped, tag = 'input window, operand 8, single buffered']
    #allocation5 [shape = 's32[1]{0}', space=sflag, size = 0x4, scoped, tag = 'scoped memory for decoder_layer_forward.3']
    #allocation6 [shape = 'u8[512]{0}', space=vmem, size = 0x400, scoped, tag = 'input window, operand 9, single buffered']
    #allocation7 [shape = 'u8[16384]{0}', space=vmem, size = 0x4000, scoped, tag = 'input window, operand 10, single buffered']
    #allocation8 [shape = 's32[1]{0}', space=sflag, size = 0x4, scoped, tag = 'scoped memory for decoder_layer_forward.3']
    #allocation9 [shape = 'u8[512]{0}', space=vmem, size = 0x400, scoped, tag = 'input window, operand 11, single buffered']
    #allocation10 [shape = 'u8[512]{0}', space=vmem, size = 0x400, scoped, tag = 'input window, operand 12, single buffered']
    #allocation11 [shape = 's32[1]{0}', space=sflag, size = 0x4, scoped, tag = 'scoped memory for decoder_layer_forward.3']
    #allocation12 [shape = 'u8[512]{0}', space=vmem, size = 0x400, scoped, tag = 'input window, operand 13, single buffered']
    %19 = vsyncpa [#allocation3], 0
    %20 = vsyncpa [#allocation5], 0
    %21 = vsyncpa [#allocation8], 0
    %22 = vsyncpa [#allocation11], 0
    loop: start=0, step=1, limit=4
    $region2: #{decoder_layer_forward.3} parent=1 // loop_pre_header
      _
    $region3: #{decoder_layer_forward.3} parent=1 // loop_header
      %s24 = sphi 0, %s28
      %p25 = scmp.ge.s32.totalorder %s24, 4
      %s34 = sphi 0, %s36
      %s37 = sphi 0, %s34
      %s38 = sphi 0, %s37
      %s54 = sphi 0, %s38
      %s60 = sphi 0, %s62
      %s63 = sphi 0, %s60
      %s64 = sphi 0, %s63
      %s80 = sphi 0, %s64
      %s86 = sphi 0, %s88
      %s89 = sphi 0, %s86
      %s90 = sphi 0, %s89
      %s106 = sphi 0, %s90
      %s112 = sphi 0, %s114
      %s115 = sphi 0, %s112
      %s116 = sphi 0, %s115
      %s132 = sphi 0, %s116
      %s136 = sphi 0, %s136
      %s138 = sphi 0, %s136
      %s139 = sphi 0, %s138
      %s153 = sphi 0, %s139
      %s157 = sphi 0, %s157
      %s159 = sphi 0, %s157
      %s160 = sphi 0, %s159
      %s174 = sphi 0, %s160
      %s178 = sphi 0, %s178
      %s180 = sphi 0, %s178
      %s181 = sphi 0, %s180
      %s195 = sphi 0, %s181
      %s199 = sphi 0, %s199
      %s201 = sphi 0, %s199
      %s202 = sphi 0, %s201
      %s216 = sphi 0, %s202
      %s220 = sphi 0, %s220
      %s222 = sphi 0, %s220
      %s223 = sphi 0, %s222
      %s237 = sphi 0, %s223
      %s241 = sphi 0, %s241
      %s243 = sphi 0, %s241
      %s244 = sphi 0, %s243
      %s258 = sphi 0, %s244
      %s262 = sphi 0, %s262
      %s264 = sphi 0, %s262
      %s265 = sphi 0, %s264
      %s279 = sphi 0, %s265
      %s283 = sphi 0, %s283
      %s285 = sphi 0, %s283
      %s286 = sphi 0, %s285
      %s300 = sphi 0, %s286
      %s304 = sphi 0, %s304
      %s306 = sphi 0, %s304
      %s307 = sphi 0, %s306
      %s321 = sphi 0, %s307
      %s325 = sphi 0, %s325
      %s327 = sphi 0, %s325
      %s328 = sphi 0, %s327
      %s342 = sphi 0, %s328
      %s348 = sphi 0, %s350
      %s351 = sphi 0, %s348
      %s352 = sphi 0, %s351
      %s368 = sphi 0, %s352
    $region4: #{decoder_layer_forward.3} parent=1 // loop_header_branch
      %27 = sbr.rel (%p25) target = $region8
    $region5: #{decoder_layer_forward.3} parent=1 // loop_body
      %s29 = ssub.s32 %s24, 1
      %s30 = ssub.s32 %s24, 2
      %s31 = sadd.s32 %s24, 1
      %s32 = ssub.s32 %s24, %s31
      %p33 = scmp.eq.s32.totalorder %s32, 0
      %s35 = sadd.s32 %s34, 1
      %s36 = scalar_select %p33, %s34, %s35
      %p39 = pneg %p33
      %p40 = scmp.eq.s32.totalorder %s24, 1
      %p41 = por %p39, %p40
      %p42 = scmp.ne.s32.totalorder %s34, %s37
      %p43 = scmp.eq.s32.totalorder %s24, 0
      %p44 = por %p42, %p43
      %p45 = scmp.ne.s32.totalorder %s34, %s37
      %p46 = scmp.eq.s32.totalorder %s29, 1
      %p47 = por %p45, %p46
      %p48 = scmp.ne.s32.totalorder %s37, %s38
      %p49 = scmp.eq.s32.totalorder %s29, 0
      %p50 = por %p48, %p49
      %p51 = scmp.ne.s32.totalorder %s37, %s38
      %p52 = scmp.eq.s32.totalorder %s30, 1
      %p53 = por %p51, %p52
      %p55 = scmp.ne.s32.totalorder %s38, %s54
      %p56 = scmp.eq.s32.totalorder %s30, 0
      %p57 = por %p55, %p56
      %s58 = ssub.s32 %s24, %s31
      %p59 = scmp.eq.s32.totalorder %s58, 0
      %s61 = sadd.s32 %s60, 1
      %s62 = scalar_select %p59, %s60, %s61
      %p65 = pneg %p59
      %p66 = scmp.eq.s32.totalorder %s24, 1
      %p67 = por %p65, %p66
      %p68 = scmp.ne.s32.totalorder %s60, %s63
      %p69 = scmp.eq.s32.totalorder %s24, 0
      %p70 = por %p68, %p69
      %p71 = scmp.ne.s32.totalorder %s60, %s63
      %p72 = scmp.eq.s32.totalorder %s29, 1
      %p73 = por %p71, %p72
      %p74 = scmp.ne.s32.totalorder %s63, %s64
      %p75 = scmp.eq.s32.totalorder %s29, 0
      %p76 = por %p74, %p75
      %p77 = scmp.ne.s32.totalorder %s63, %s64
      %p78 = scmp.eq.s32.totalorder %s30, 1
      %p79 = por %p77, %p78
      %p81 = scmp.ne.s32.totalorder %s64, %s80
      %p82 = scmp.eq.s32.totalorder %s30, 0
      %p83 = por %p81, %p82
      %s84 = ssub.s32 %s24, %s31
      %p85 = scmp.eq.s32.totalorder %s84, 0
      %s87 = sadd.s32 %s86, 1
      %s88 = scalar_select %p85, %s86, %s87
      %p91 = pneg %p85
      %p92 = scmp.eq.s32.totalorder %s24, 1
      %p93 = por %p91, %p92
      %p94 = scmp.ne.s32.totalorder %s86, %s89
      %p95 = scmp.eq.s32.totalorder %s24, 0
      %p96 = por %p94, %p95
      %p97 = scmp.ne.s32.totalorder %s86, %s89
      %p98 = scmp.eq.s32.totalorder %s29, 1
      %p99 = por %p97, %p98
      %p100 = scmp.ne.s32.totalorder %s89, %s90
      %p101 = scmp.eq.s32.totalorder %s29, 0
      %p102 = por %p100, %p101
      %p103 = scmp.ne.s32.totalorder %s89, %s90
      %p104 = scmp.eq.s32.totalorder %s30, 1
      %p105 = por %p103, %p104
      %p107 = scmp.ne.s32.totalorder %s90, %s106
      %p108 = scmp.eq.s32.totalorder %s30, 0
      %p109 = por %p107, %p108
      %s110 = ssub.s32 %s24, %s31
      %p111 = scmp.eq.s32.totalorder %s110, 0
      %s113 = sadd.s32 %s112, 1
      %s114 = scalar_select %p111, %s112, %s113
      %p117 = pneg %p111
      %p118 = scmp.eq.s32.totalorder %s24, 1
      %p119 = por %p117, %p118
      %p120 = scmp.ne.s32.totalorder %s112, %s115
      %p121 = scmp.eq.s32.totalorder %s24, 0
      %p122 = por %p120, %p121
      %p123 = scmp.ne.s32.totalorder %s112, %s115
      %p124 = scmp.eq.s32.totalorder %s29, 1
      %p125 = por %p123, %p124
      %p126 = scmp.ne.s32.totalorder %s115, %s116
      %p127 = scmp.eq.s32.totalorder %s29, 0
      %p128 = por %p126, %p127
      %p129 = scmp.ne.s32.totalorder %s115, %s116
      %p130 = scmp.eq.s32.totalorder %s30, 1
      %p131 = por %p129, %p130
      %p133 = scmp.ne.s32.totalorder %s116, %s132
      %p134 = scmp.eq.s32.totalorder %s30, 0
      %p135 = por %p133, %p134
      %s137 = sadd.s32 %s136, 1
      %p140 = scmp.eq.s32.totalorder %s24, 1
      %p141 = scmp.ne.s32.totalorder %s136, %s138
      %p142 = scmp.eq.s32.totalorder %s24, 0
      %p143 = por %p141, %p142
      %p144 = scmp.ne.s32.totalorder %s136, %s138
      %p145 = scmp.eq.s32.totalorder %s29, 1
      %p146 = por %p144, %p145
      %p147 = scmp.ne.s32.totalorder %s138, %s139
      %p148 = scmp.eq.s32.totalorder %s29, 0
      %p149 = por %p147, %p148
      %p150 = scmp.ne.s32.totalorder %s138, %s139
      %p151 = scmp.eq.s32.totalorder %s30, 1
      %p152 = por %p150, %p151
      %p154 = scmp.ne.s32.totalorder %s139, %s153
      %p155 = scmp.eq.s32.totalorder %s30, 0
      %p156 = por %p154, %p155
      %s158 = sadd.s32 %s157, 1
      %p161 = scmp.eq.s32.totalorder %s24, 1
      %p162 = scmp.ne.s32.totalorder %s157, %s159
      %p163 = scmp.eq.s32.totalorder %s24, 0
      %p164 = por %p162, %p163
      %p165 = scmp.ne.s32.totalorder %s157, %s159
      %p166 = scmp.eq.s32.totalorder %s29, 1
      %p167 = por %p165, %p166
      %p168 = scmp.ne.s32.totalorder %s159, %s160
      %p169 = scmp.eq.s32.totalorder %s29, 0
      %p170 = por %p168, %p169
      %p171 = scmp.ne.s32.totalorder %s159, %s160
      %p172 = scmp.eq.s32.totalorder %s30, 1
      %p173 = por %p171, %p172
      %p175 = scmp.ne.s32.totalorder %s160, %s174
      %p176 = scmp.eq.s32.totalorder %s30, 0
      %p177 = por %p175, %p176
      %s179 = sadd.s32 %s178, 1
      %p182 = scmp.eq.s32.totalorder %s24, 1
      %p183 = scmp.ne.s32.totalorder %s178, %s180
      %p184 = scmp.eq.s32.totalorder %s24, 0
      %p185 = por %p183, %p184
      %p186 = scmp.ne.s32.totalorder %s178, %s180
      %p187 = scmp.eq.s32.totalorder %s29, 1
      %p188 = por %p186, %p187
      %p189 = scmp.ne.s32.totalorder %s180, %s181
      %p190 = scmp.eq.s32.totalorder %s29, 0
      %p191 = por %p189, %p190
      %p192 = scmp.ne.s32.totalorder %s180, %s181
      %p193 = scmp.eq.s32.totalorder %s30, 1
      %p194 = por %p192, %p193
      %p196 = scmp.ne.s32.totalorder %s181, %s195
      %p197 = scmp.eq.s32.totalorder %s30, 0
      %p198 = por %p196, %p197
      %s200 = sadd.s32 %s199, 1
      %p203 = scmp.eq.s32.totalorder %s24, 1
      %p204 = scmp.ne.s32.totalorder %s199, %s201
      %p205 = scmp.eq.s32.totalorder %s24, 0
      %p206 = por %p204, %p205
      %p207 = scmp.ne.s32.totalorder %s199, %s201
      %p208 = scmp.eq.s32.totalorder %s29, 1
      %p209 = por %p207, %p208
      %p210 = scmp.ne.s32.totalorder %s201, %s202
      %p211 = scmp.eq.s32.totalorder %s29, 0
      %p212 = por %p210, %p211
      %p213 = scmp.ne.s32.totalorder %s201, %s202
      %p214 = scmp.eq.s32.totalorder %s30, 1
      %p215 = por %p213, %p214
      %p217 = scmp.ne.s32.totalorder %s202, %s216
      %p218 = scmp.eq.s32.totalorder %s30, 0
      %p219 = por %p217, %p218
      %s221 = sadd.s32 %s220, 1
      %p224 = scmp.eq.s32.totalorder %s24, 1
      %p225 = scmp.ne.s32.totalorder %s220, %s222
      %p226 = scmp.eq.s32.totalorder %s24, 0
      %p227 = por %p225, %p226
      %p228 = scmp.ne.s32.totalorder %s220, %s222
      %p229 = scmp.eq.s32.totalorder %s29, 1
      %p230 = por %p228, %p229
      %p231 = scmp.ne.s32.totalorder %s222, %s223
      %p232 = scmp.eq.s32.totalorder %s29, 0
      %p233 = por %p231, %p232
      %p234 = scmp.ne.s32.totalorder %s222, %s223
      %p235 = scmp.eq.s32.totalorder %s30, 1
      %p236 = por %p234, %p235
      %p238 = scmp.ne.s32.totalorder %s223, %s237
      %p239 = scmp.eq.s32.totalorder %s30, 0
      %p240 = por %p238, %p239
      %s242 = sadd.s32 %s241, 1
      %p245 = scmp.eq.s32.totalorder %s24, 1
      %p246 = scmp.ne.s32.totalorder %s241, %s243
      %p247 = scmp.eq.s32.totalorder %s24, 0
      %p248 = por %p246, %p247
      %p249 = scmp.ne.s32.totalorder %s241, %s243
      %p250 = scmp.eq.s32.totalorder %s29, 1
      %p251 = por %p249, %p250
      %p252 = scmp.ne.s32.totalorder %s243, %s244
      %p253 = scmp.eq.s32.totalorder %s29, 0
      %p254 = por %p252, %p253
      %p255 = scmp.ne.s32.totalorder %s243, %s244
      %p256 = scmp.eq.s32.totalorder %s30, 1
      %p257 = por %p255, %p256
      %p259 = scmp.ne.s32.totalorder %s244, %s258
      %p260 = scmp.eq.s32.totalorder %s30, 0
      %p261 = por %p259, %p260
      %s263 = sadd.s32 %s262, 1
      %p266 = scmp.eq.s32.totalorder %s24, 1
      %p267 = scmp.ne.s32.totalorder %s262, %s264
      %p268 = scmp.eq.s32.totalorder %s24, 0
      %p269 = por %p267, %p268
      %p270 = scmp.ne.s32.totalorder %s262, %s264
      %p271 = scmp.eq.s32.totalorder %s29, 1
      %p272 = por %p270, %p271
      %p273 = scmp.ne.s32.totalorder %s264, %s265
      %p274 = scmp.eq.s32.totalorder %s29, 0
      %p275 = por %p273, %p274
      %p276 = scmp.ne.s32.totalorder %s264, %s265
      %p277 = scmp.eq.s32.totalorder %s30, 1
      %p278 = por %p276, %p277
      %p280 = scmp.ne.s32.totalorder %s265, %s279
      %p281 = scmp.eq.s32.totalorder %s30, 0
      %p282 = por %p280, %p281
      %s284 = sadd.s32 %s283, 1
      %p287 = scmp.eq.s32.totalorder %s24, 1
      %p288 = scmp.ne.s32.totalorder %s283, %s285
      %p289 = scmp.eq.s32.totalorder %s24, 0
      %p290 = por %p288, %p289
      %p291 = scmp.ne.s32.totalorder %s283, %s285
      %p292 = scmp.eq.s32.totalorder %s29, 1
      %p293 = por %p291, %p292
      %p294 = scmp.ne.s32.totalorder %s285, %s286
      %p295 = scmp.eq.s32.totalorder %s29, 0
      %p296 = por %p294, %p295
      %p297 = scmp.ne.s32.totalorder %s285, %s286
      %p298 = scmp.eq.s32.totalorder %s30, 1
      %p299 = por %p297, %p298
      %p301 = scmp.ne.s32.totalorder %s286, %s300
      %p302 = scmp.eq.s32.totalorder %s30, 0
      %p303 = por %p301, %p302
      %s305 = sadd.s32 %s304, 1
      %p308 = scmp.eq.s32.totalorder %s24, 1
      %p309 = scmp.ne.s32.totalorder %s304, %s306
      %p310 = scmp.eq.s32.totalorder %s24, 0
      %p311 = por %p309, %p310
      %p312 = scmp.ne.s32.totalorder %s304, %s306
      %p313 = scmp.eq.s32.totalorder %s29, 1
      %p314 = por %p312, %p313
      %p315 = scmp.ne.s32.totalorder %s306, %s307
      %p316 = scmp.eq.s32.totalorder %s29, 0
      %p317 = por %p315, %p316
      %p318 = scmp.ne.s32.totalorder %s306, %s307
      %p319 = scmp.eq.s32.totalorder %s30, 1
      %p320 = por %p318, %p319
      %p322 = scmp.ne.s32.totalorder %s307, %s321
      %p323 = scmp.eq.s32.totalorder %s30, 0
      %p324 = por %p322, %p323
      %s326 = sadd.s32 %s325, 1
      %p329 = scmp.eq.s32.totalorder %s24, 1
      %p330 = scmp.ne.s32.totalorder %s325, %s327
      %p331 = scmp.eq.s32.totalorder %s24, 0
      %p332 = por %p330, %p331
      %p333 = scmp.ne.s32.totalorder %s325, %s327
      %p334 = scmp.eq.s32.totalorder %s29, 1
      %p335 = por %p333, %p334
      %p336 = scmp.ne.s32.totalorder %s327, %s328
      %p337 = scmp.eq.s32.totalorder %s29, 0
      %p338 = por %p336, %p337
      %p339 = scmp.ne.s32.totalorder %s327, %s328
      %p340 = scmp.eq.s32.totalorder %s30, 1
      %p341 = por %p339, %p340
      %p343 = scmp.ne.s32.totalorder %s328, %s342
      %p344 = scmp.eq.s32.totalorder %s30, 0
      %p345 = por %p343, %p344
      %s346 = ssub.s32 %s24, %s31
      %p347 = scmp.eq.s32.totalorder %s346, 0
      %s349 = sadd.s32 %s348, 1
      %s350 = scalar_select %p347, %s348, %s349
      %p353 = pneg %p347
      %p354 = scmp.eq.s32.totalorder %s24, 1
      %p355 = por %p353, %p354
      %p356 = scmp.ne.s32.totalorder %s348, %s351
      %p357 = scmp.eq.s32.totalorder %s24, 0
      %p358 = por %p356, %p357
      %p359 = scmp.ne.s32.totalorder %s348, %s351
      %p360 = scmp.eq.s32.totalorder %s29, 1
      %p361 = por %p359, %p360
      %p362 = scmp.ne.s32.totalorder %s351, %s352
      %p363 = scmp.eq.s32.totalorder %s29, 0
      %p364 = por %p362, %p363
      %p365 = scmp.ne.s32.totalorder %s351, %s352
      %p366 = scmp.eq.s32.totalorder %s30, 1
      %p367 = por %p365, %p366
      %p369 = scmp.ne.s32.totalorder %s352, %s368
      %p370 = scmp.eq.s32.totalorder %s30, 0
      %p371 = por %p369, %p370
      %p372 = scmp.le.s32.totalorder 1, %s24
      %p373 = scmp.lt.s32.totalorder %s24, 3
      %p374 = pnand %p372, %p373
      %p375 = pneg %p374
      // Predicated region
      $region9: #{decoder_layer_forward.3} parent=5 // pred_check
        _
      $region10: #{decoder_layer_forward.3} parent=5 // pred_check_branch
        %377 = sbr.rel (%p374) target = $region12
      $region11: #{decoder_layer_forward.3} parent=5 // pred_region
        %s378 = ssub.s32 %s24, 1
        // Predicated region
        $region13: #{decoder_layer_forward.3} parent=11 // pred_check
          %p379 = pneg %p149
        $region14: #{decoder_layer_forward.3} parent=11 // pred_check_branch
          %381 = sbr.rel (%p379) target = $region16
        $region15: #{decoder_layer_forward.3} parent=11 // pred_region
          _
        $region16: #{decoder_layer_forward.3} parent=11 // pred_fallthru
          _
        // Predicated region
        $region17: #{decoder_layer_forward.3} parent=11 // pred_check
          %p382 = pneg %p170
        $region18: #{decoder_layer_forward.3} parent=11 // pred_check_branch
          %384 = sbr.rel (%p382) target = $region20
        $region19: #{decoder_layer_forward.3} parent=11 // pred_region
          _
        $region20: #{decoder_layer_forward.3} parent=11 // pred_fallthru
          _
        // Predicated region
        $region21: #{decoder_layer_forward.3} parent=11 // pred_check
          %p385 = pneg %p191
        $region22: #{decoder_layer_forward.3} parent=11 // pred_check_branch
          %387 = sbr.rel (%p385) target = $region24
        $region23: #{decoder_layer_forward.3} parent=11 // pred_region
          _
        $region24: #{decoder_layer_forward.3} parent=11 // pred_fallthru
          _
        // Predicated region
        $region25: #{decoder_layer_forward.3} parent=11 // pred_check
          %p388 = pneg %p212
        $region26: #{decoder_layer_forward.3} parent=11 // pred_check_branch
          %390 = sbr.rel (%p388) target = $region28
        $region27: #{decoder_layer_forward.3} parent=11 // pred_region
          %392 = vsyncadd [#allocation3], 0
          %s394 = sshll.u32 %s7, 4
          %s395 = int_to_ptr.hbm [resolvable:$true] %s394
          %s396 = sshll.u32 [#allocation2], 4
          %s397 = int_to_ptr.vmem [resolvable:$true] %s396
          %399 = dma.hbm_to_vmem [thread:$0]  %s395, 16, %s397, [#allocation3]
        $region28: #{decoder_layer_forward.3} parent=11 // pred_fallthru
          _
        // Predicated region
        $region29: #{decoder_layer_forward.3} parent=11 // pred_check
          %p400 = pneg %p233
        $region30: #{decoder_layer_forward.3} parent=11 // pred_check_branch
          %402 = sbr.rel (%p400) target = $region32
        $region31: #{decoder_layer_forward.3} parent=11 // pred_region
          %404 = vsyncadd [#allocation5], 0
          %s405 = sshll.u32 %s8, 4
          %s406 = int_to_ptr.hbm [resolvable:$true] %s405
          %s407 = sshll.u32 [#allocation4], 4
          %s408 = int_to_ptr.vmem [resolvable:$true] %s407
          %413 = dma.hbm_to_vmem [thread:$0]  %s406, 512, %s408, [#allocation5], 128, 128, 8
        $region32: #{decoder_layer_forward.3} parent=11 // pred_fallthru
          _
        // Predicated region
        $region33: #{decoder_layer_forward.3} parent=11 // pred_check
          %p414 = pneg %p254
        $region34: #{decoder_layer_forward.3} parent=11 // pred_check_branch
          %416 = sbr.rel (%p414) target = $region36
        $region35: #{decoder_layer_forward.3} parent=11 // pred_region
          %418 = vsyncadd [#allocation5], 0
          %s420 = sshll.u32 %s9, 4
          %s421 = int_to_ptr.hbm [resolvable:$true] %s420
          %s422 = sshll.u32 [#allocation6], 4
          %s423 = int_to_ptr.vmem [resolvable:$true] %s422
          %425 = dma.hbm_to_vmem [thread:$0]  %s421, 16, %s423, [#allocation5]
        $region36: #{decoder_layer_forward.3} parent=11 // pred_fallthru
          _
        // Predicated region
        $region37: #{decoder_layer_forward.3} parent=11 // pred_check
          %p426 = pneg %p275
        $region38: #{decoder_layer_forward.3} parent=11 // pred_check_branch
          %428 = sbr.rel (%p426) target = $region40
        $region39: #{decoder_layer_forward.3} parent=11 // pred_region
          %430 = vsyncadd [#allocation8], 0
          %s431 = sshll.u32 %s10, 4
          %s432 = int_to_ptr.hbm [resolvable:$true] %s431
          %s433 = sshll.u32 [#allocation7], 4
          %s434 = int_to_ptr.vmem [resolvable:$true] %s433
          %439 = dma.hbm_to_vmem [thread:$0]  %s432, 512, %s434, [#allocation8], 128, 128, 8
        $region40: #{decoder_layer_forward.3} parent=11 // pred_fallthru
          _
        // Predicated region
        $region41: #{decoder_layer_forward.3} parent=11 // pred_check
          %p440 = pneg %p296
        $region42: #{decoder_layer_forward.3} parent=11 // pred_check_branch
          %442 = sbr.rel (%p440) target = $region44
        $region43: #{decoder_layer_forward.3} parent=11 // pred_region
          %444 = vsyncadd [#allocation8], 0
          %s446 = sshll.u32 %s11, 4
          %s447 = int_to_ptr.hbm [resolvable:$true] %s446
          %s448 = sshll.u32 [#allocation9], 4
          %s449 = int_to_ptr.vmem [resolvable:$true] %s448
          %451 = dma.hbm_to_vmem [thread:$0]  %s447, 16, %s449, [#allocation8]
        $region44: #{decoder_layer_forward.3} parent=11 // pred_fallthru
          _
        // Predicated region
        $region45: #{decoder_layer_forward.3} parent=11 // pred_check
          %p452 = pneg %p317
        $region46: #{decoder_layer_forward.3} parent=11 // pred_check_branch
          %454 = sbr.rel (%p452) target = $region48
        $region47: #{decoder_layer_forward.3} parent=11 // pred_region
          %456 = vsyncadd [#allocation11], 0
          %s458 = sshll.u32 %s12, 4
          %s459 = int_to_ptr.hbm [resolvable:$true] %s458
          %s460 = sshll.u32 [#allocation10], 4
          %s461 = int_to_ptr.vmem [resolvable:$true] %s460
          %463 = dma.hbm_to_vmem [thread:$0]  %s459, 16, %s461, [#allocation11]
        $region48: #{decoder_layer_forward.3} parent=11 // pred_fallthru
          _
        // Predicated region
        $region49: #{decoder_layer_forward.3} parent=11 // pred_check
          %p464 = pneg %p338
        $region50: #{decoder_layer_forward.3} parent=11 // pred_check_branch
          %466 = sbr.rel (%p464) target = $region52
        $region51: #{decoder_layer_forward.3} parent=11 // pred_region
          %468 = vsyncadd [#allocation11], 0
          %s470 = sshll.u32 %s13, 4
          %s471 = int_to_ptr.hbm [resolvable:$true] %s470
          %s472 = sshll.u32 [#allocation12], 4
          %s473 = int_to_ptr.vmem [resolvable:$true] %s472
          %475 = dma.hbm_to_vmem [thread:$0]  %s471, 16, %s473, [#allocation11]
        $region52: #{decoder_layer_forward.3} parent=11 // pred_fallthru
          _
      $region12: #{decoder_layer_forward.3} parent=5 // pred_fallthru
        _
      %p476 = scmp.lt.s32.totalorder %s24, 2
      // Predicated region
      $region53: #{decoder_layer_forward.3} parent=5 // pred_check
        %p477 = pneg %p476
      $region54: #{decoder_layer_forward.3} parent=5 // pred_check_branch
        %479 = sbr.rel (%p477) target = $region56
      $region55: #{decoder_layer_forward.3} parent=5 // pred_region
        // Predicated region
        $region57: #{decoder_layer_forward.3} parent=55 // pred_check
          %p480 = pneg %p44
        $region58: #{decoder_layer_forward.3} parent=55 // pred_check_branch
          %482 = sbr.rel (%p480) target = $region60
        $region59: #{decoder_layer_forward.3} parent=55 // pred_region
          %p483 = scmp.lt.s32.totalorder %s24, 1
          %s484 = scalar_select %p483, %s24, 1
          %s485 = smul.addr %s484, 8
          %s486 = scalar_lea.vmem %s0, %s485
        $region60: #{decoder_layer_forward.3} parent=55 // pred_fallthru
          _
        // Predicated region
        $region61: #{decoder_layer_forward.3} parent=55 // pred_check
          %p487 = pneg %p70
        $region62: #{decoder_layer_forward.3} parent=55 // pred_check_branch
          %489 = sbr.rel (%p487) target = $region64
        $region63: #{decoder_layer_forward.3} parent=55 // pred_region
          %p490 = scmp.lt.s32.totalorder %s24, 1
          %s491 = scalar_select %p490, %s24, 1
          %s492 = smul.addr %s491, 8
          %s493 = scalar_lea.vmem %s1, %s492
        $region64: #{decoder_layer_forward.3} parent=55 // pred_fallthru
          _
        // Predicated region
        $region65: #{decoder_layer_forward.3} parent=55 // pred_check
          %p494 = pneg %p96
        $region66: #{decoder_layer_forward.3} parent=55 // pred_check_branch
          %496 = sbr.rel (%p494) target = $region68
        $region67: #{decoder_layer_forward.3} parent=55 // pred_region
          %p497 = scmp.lt.s32.totalorder %s24, 1
          %s498 = scalar_select %p497, %s24, 1
          %s499 = smul.addr %s498, 8
          %s500 = scalar_lea.vmem %s2, %s499
        $region68: #{decoder_layer_forward.3} parent=55 // pred_fallthru
          _
        // Predicated region
        $region69: #{decoder_layer_forward.3} parent=55 // pred_check
          %p501 = pneg %p122
        $region70: #{decoder_layer_forward.3} parent=55 // pred_check_branch
          %503 = sbr.rel (%p501) target = $region72
        $region71: #{decoder_layer_forward.3} parent=55 // pred_region
          %p504 = scmp.lt.s32.totalorder %s24, 1
          %s505 = scalar_select %p504, %s24, 1
          %s506 = smul.addr %s505, 8
          %s507 = scalar_lea.vmem %s3, %s506
        $region72: #{decoder_layer_forward.3} parent=55 // pred_fallthru
          _
      $region56: #{decoder_layer_forward.3} parent=5 // pred_fallthru
        _
      %p508 = scmp.le.s32.totalorder 1, %s24
      %p509 = scmp.lt.s32.totalorder %s24, 3
      %p510 = pnand %p508, %p509
      %p511 = pneg %p510
      // Predicated region
      $region73: #{decoder_layer_forward.3} parent=5 // pred_check
        _
      $region74: #{decoder_layer_forward.3} parent=5 // pred_check_branch
        %513 = sbr.rel (%p510) target = $region76
      $region75: #{decoder_layer_forward.3} parent=5 // pred_region
        %s514 = ssub.s32 %s24, 1
        // Predicated region
        $region77: #{decoder_layer_forward.3} parent=75 // pred_check
          %p515 = pneg %p212
        $region78: #{decoder_layer_forward.3} parent=75 // pred_check_branch
          %517 = sbr.rel (%p515) target = $region80
        $region79: #{decoder_layer_forward.3} parent=75 // pred_region
          %519 = dma.done [#allocation3], 16
        $region80: #{decoder_layer_forward.3} parent=75 // pred_fallthru
          _
        // Predicated region
        $region81: #{decoder_layer_forward.3} parent=75 // pred_check
          %p520 = pneg %p233
        $region82: #{decoder_layer_forward.3} parent=75 // pred_check_branch
          %522 = sbr.rel (%p520) target = $region84
        $region83: #{decoder_layer_forward.3} parent=75 // pred_region
          %524 = dma.done [#allocation5], 512
        $region84: #{decoder_layer_forward.3} parent=75 // pred_fallthru
          _
        // Predicated region
        $region85: #{decoder_layer_forward.3} parent=75 // pred_check
          %p525 = pneg %p254
        $region86: #{decoder_layer_forward.3} parent=75 // pred_check_branch
          %527 = sbr.rel (%p525) target = $region88
        $region87: #{decoder_layer_forward.3} parent=75 // pred_region
          %529 = dma.done [#allocation5], 16
        $region88: #{decoder_layer_forward.3} parent=75 // pred_fallthru
          _
        // Predicated region
        $region89: #{decoder_layer_forward.3} parent=75 // pred_check
          %p530 = pneg %p275
        $region90: #{decoder_layer_forward.3} parent=75 // pred_check_branch
          %532 = sbr.rel (%p530) target = $region92
        $region91: #{decoder_layer_forward.3} parent=75 // pred_region
          %534 = dma.done [#allocation8], 512
        $region92: #{decoder_layer_forward.3} parent=75 // pred_fallthru
          _
        // Predicated region
        $region93: #{decoder_layer_forward.3} parent=75 // pred_check
          %p535 = pneg %p296
        $region94: #{decoder_layer_forward.3} parent=75 // pred_check_branch
          %537 = sbr.rel (%p535) target = $region96
        $region95: #{decoder_layer_forward.3} parent=75 // pred_region
          %539 = dma.done [#allocation8], 16
        $region96: #{decoder_layer_forward.3} parent=75 // pred_fallthru
          _
        // Predicated region
        $region97: #{decoder_layer_forward.3} parent=75 // pred_check
          %p540 = pneg %p317
        $region98: #{decoder_layer_forward.3} parent=75 // pred_check_branch
          %542 = sbr.rel (%p540) target = $region100
        $region99: #{decoder_layer_forward.3} parent=75 // pred_region
          %544 = dma.done [#allocation11], 16
        $region100: #{decoder_layer_forward.3} parent=75 // pred_fallthru
          _
        // Predicated region
        $region101: #{decoder_layer_forward.3} parent=75 // pred_check
          %p545 = pneg %p338
        $region102: #{decoder_layer_forward.3} parent=75 // pred_check_branch
          %547 = sbr.rel (%p545) target = $region104
        $region103: #{decoder_layer_forward.3} parent=75 // pred_region
          %549 = dma.done [#allocation11], 16
        $region104: #{decoder_layer_forward.3} parent=75 // pred_fallthru
          _
        %p550 = scmp.lt.s32.totalorder %s29, 1
        %s551 = scalar_select %p550, %s29, 1
        %s552 = smul.addr %s551, 8
        %s553 = scalar_lea.vmem %s0, %s552
        %p554 = pneg %p50
        %p555 = pneg %p47
        %p556 = scmp.lt.s32.totalorder %s29, 1
        %s557 = scalar_select %p556, %s29, 1
        %s558 = smul.addr %s557, 8
        %s559 = scalar_lea.vmem %s1, %s558
        %p560 = pneg %p76
        %p561 = pneg %p73
        %p562 = scmp.lt.s32.totalorder %s29, 1
        %s563 = scalar_select %p562, %s29, 1
        %s564 = smul.addr %s563, 8
        %s565 = scalar_lea.vmem %s2, %s564
        %p566 = pneg %p102
        %p567 = pneg %p99
        %p568 = scmp.lt.s32.totalorder %s29, 1
        %s569 = scalar_select %p568, %s29, 1
        %s570 = smul.addr %s569, 8
        %s571 = scalar_lea.vmem %s3, %s570
        %p572 = pneg %p128
        %p573 = pneg %p125
        %p574 = pneg %p149
        %p575 = pneg %p146
        %p576 = pneg %p170
        %p577 = pneg %p167
        %p578 = pneg %p191
        %p579 = pneg %p188
        %p580 = pneg %p212
        %p581 = pneg %p209
        %p582 = pneg %p233
        %p583 = pneg %p230
        %p584 = pneg %p254
        %p585 = pneg %p251
        %p586 = pneg %p275
        %p587 = pneg %p272
        %p588 = pneg %p296
        %p589 = pneg %p293
        %p590 = pneg %p317
        %p591 = pneg %p314
        %p592 = pneg %p338
        %p593 = pneg %p335
        %p594 = pneg %p364
        %p595 = pneg %p361
        %p596 = scmp.lt.s32.totalorder %s29, 1
        %s597 = scalar_select %p596, %s29, 1
        %s598 = smul.addr %s597, 8
        %s599 = scalar_lea.vmem %s14, %s598
        %p600 = scmp.lt.s32.totalorder %s29, 1
        %s601 = scalar_select %p600, %s29, 1
        %s602 = smul.addr %s601, 8
        %s603 = scalar_lea.vmem %s0, %s602
        %p604 = scmp.lt.s32.totalorder %s29, 1
        %s605 = scalar_select %p604, %s29, 1
        %s606 = smul.addr %s605, 8
        %s607 = scalar_lea.vmem %s1, %s606
        %p608 = scmp.lt.s32.totalorder %s29, 1
        %s609 = scalar_select %p608, %s29, 1
        %s610 = smul.addr %s609, 8
        %s611 = scalar_lea.vmem %s2, %s610
        %p612 = scmp.lt.s32.totalorder %s29, 1
        %s613 = scalar_select %p612, %s29, 1
        %s614 = smul.addr %s613, 8
        %s615 = scalar_lea.vmem %s3, %s614
        %p616 = scmp.lt.s32.totalorder %s29, 1
        %s617 = scalar_select %p616, %s29, 1
        %s618 = smul.addr %s617, 8
        %s619 = scalar_lea.vmem %s14, %s618
        %v621 = vld [vmem:[%s603] sm:$0xff]
        %v622 = vld [vmem:[%s607] sm:$0xff]
        %v623 = vld [vmem:[%s611] sm:$0xff]
        %v624 = vld [vmem:[%s615] sm:$0xff]
        %v625 = vpack.c.bf16 %v621, %v621
        %v626 = vld [vmem:[%s4] sm:$0xff]
        %v627 = vld [vmem:[%s4 + $0x8] sm:$0xff]
        %v628 = vld [vmem:[%s4 + $0x10] sm:$0xff]
        %v629 = vld [vmem:[%s4 + $0x18] sm:$0xff]
        %v630 = vpack.c.bf16 %v627, %v626
        %v631 = vpack.c.bf16 %v629, %v628
        %v632 = vld [vmem:[%s5] sm:$0x1]
        %v634 = vperm.slane %v632, 0
        %vm636 = vcmask 261120
        %v638 = vsel %vm636, %v625, 0
        %640 = vmatpush.bf16.msra.mxu0 0
        %641 = vmatpush.bf16.msra.mxu0 0
        %642 = vmatpush.bf16.msra.mxu0 0
        %643 = vmatpush.bf16.msra.mxu0 0
        %644 = vmatpush.bf16.msra.mxu0 0
        %645 = vmatpush.bf16.msra.mxu0 0
        %646 = vmatpush.bf16.msra.mxu0 %v631
        %647 = vmatpush.bf16.msra.mxu0 %v630
        %648 = vmatmul.bf16.gmra.mxu0 %v638
        %v649 = vpop.f32.mrf.mxu0
        %v650 = vadd.f32 %v634, %v649
        %v651 = vpop.f32.mrf.mxu0
        %652 = vdwg.mxu0
        %v653 = vmul.f32 %v650, 0.35355338
        %v654 = vpack.c.bf16 %v622, %v622
        %v655 = vld [vmem:[%s6] sm:$0xff]
        %v656 = vld [vmem:[%s6 + $0x8] sm:$0xff]
        %v657 = vld [vmem:[%s6 + $0x10] sm:$0xff]
        %v658 = vld [vmem:[%s6 + $0x18] sm:$0xff]
        %v659 = vpack.c.bf16 %v656, %v655
        %v660 = vpack.c.bf16 %v658, %v657
        %v661 = vld [vmem:[#allocation2] sm:$0x1]
        %v663 = vperm.slane %v661, 0
        %v666 = vsel %vm636, %v654, 0
        %668 = vmatpush.bf16.msra.mxu0 0
        %669 = vmatpush.bf16.msra.mxu0 0
        %670 = vmatpush.bf16.msra.mxu0 0
        %671 = vmatpush.bf16.msra.mxu0 0
        %672 = vmatpush.bf16.msra.mxu0 0
        %673 = vmatpush.bf16.msra.mxu0 0
        %674 = vmatpush.bf16.msra.mxu0 %v660
        %675 = vmatpush.bf16.msra.mxu0 %v659
        %676 = vmatmul.bf16.gmra.mxu0 %v666
        %v677 = vpop.f32.mrf.mxu0
        %v678 = vadd.f32 %v663, %v677
        %v679 = vpop.f32.mrf.mxu0
        %680 = vdwg.mxu0
        %v681 = vpack.c.bf16 %v623, %v623
        %v682 = vld [vmem:[#allocation4] sm:$0xff]
        %v683 = vld [vmem:[#allocation4 + $0x8] sm:$0xff]
        %v684 = vld [vmem:[#allocation4 + $0x10] sm:$0xff]
        %v685 = vld [vmem:[#allocation4 + $0x18] sm:$0xff]
        %v686 = vpack.c.bf16 %v683, %v682
        %v687 = vpack.c.bf16 %v685, %v684
        %v688 = vld [vmem:[#allocation6] sm:$0x1]
        %v690 = vperm.slane %v688, 0
        %v693 = vsel %vm636, %v681, 0
        %695 = vmatpush.bf16.msra.mxu0 0
        %696 = vmatpush.bf16.msra.mxu0 0
        %697 = vmatpush.bf16.msra.mxu0 0
        %698 = vmatpush.bf16.msra.mxu0 0
        %699 = vmatpush.bf16.msra.mxu0 0
        %700 = vmatpush.bf16.msra.mxu0 0
        %701 = vmatpush.bf16.msra.mxu0 %v687
        %702 = vmatpush.bf16.msra.mxu0 %v686
        %703 = vmatmul.bf16.gmra.mxu0 %v693
        %v704 = vpop.f32.mrf.mxu0
        %v705 = vadd.f32 %v690, %v704
        %v706 = vpop.f32.mrf.mxu0
        %707 = vdwg.mxu0
        %v708 = vpack.c.bf16 %v653, %v653
        %v709 = vpack.c.bf16 %v678, %v678
        %v710 = vpack.c.bf16 %v705, %v705
        %vm711 = vcmask 64512
        %v713 = vsel %vm711, %v708, 0
        %v716 = vsel %vm711, %v709, 0
        %718 = vmatpush.bf16.xpose.msra.mxu0 0
        %719 = vmatpush.bf16.xpose.msra.mxu0 0
        %720 = vmatpush.bf16.xpose.msra.mxu0 0
        %721 = vmatpush.bf16.xpose.msra.mxu0 0
        %722 = vmatpush.bf16.xpose.msra.mxu0 0
        %723 = vmatpush.bf16.xpose.msra.mxu0 0
        %724 = vmatpush.bf16.xpose.msra.mxu0 0
        %725 = vmatpush.bf16.xpose.msra.mxu0 %v716
        %726 = vmatmul.bf16.gmra.mxu0 %v713
        %v727 = vpop.f32.mrf.mxu0
        %v728 = vadd.f32 0.0, %v727
        %v729 = vpop.f32.mrf.mxu0
        %730 = vdwg.mxu0
        %v731 = vsel %vm711, %v728, -inf
        %732 = vmax.xlane.f32.xlu0 %v731
        %v733 = vpop.xlane.xlu0 %732
        %v734 = vsub.f32 %v728, %v733
        %v735 = vmul.f32 %v734, 1.442695
        %v736 = vpow.pop %v735
        %v737 = vsel %vm711, %v736, 0.0
        %738 = vadd.xlane.f32.xlu0 %v737
        %v739 = vpop.xlane.xlu0 %738
        %v740 = vrcp.pop %v739
        %v741 = vmul.f32 %v736, %v740
        %v742 = vpack.c.bf16 %v741, %v741
        %v744 = vsel %vm711, %v742, 0
        %vm746 = vcmask 1043456
        %v748 = vsel %vm746, %v710, 0
        %750 = vmatpush.bf16.msra.mxu0 0
        %751 = vmatpush.bf16.msra.mxu0 0
        %752 = vmatpush.bf16.msra.mxu0 0
        %753 = vmatpush.bf16.msra.mxu0 0
        %754 = vmatpush.bf16.msra.mxu0 0
        %755 = vmatpush.bf16.msra.mxu0 0
        %756 = vmatpush.bf16.msra.mxu0 0
        %757 = vmatpush.bf16.msra.mxu0 %v748
        %758 = vmatmul.bf16.gmra.mxu0 %v744
        %v759 = vpop.f32.mrf.mxu0
        %v760 = vadd.f32 0.0, %v759
        %v761 = vpop.f32.mrf.mxu0
        %762 = vdwg.mxu0
        %764 = vrot.lane.b32.xlu0 %v708, 120
        %v765 = vpop.permute.xlu0 %764
        %767 = vrot.lane.b32.xlu0 %v709, 120
        %v768 = vpop.permute.xlu0 %767
        %v770 = vsel %vm711, %v765, 0
        %v773 = vsel %vm711, %v768, 0
        %775 = vmatpush.bf16.xpose.msra.mxu0 0
        %776 = vmatpush.bf16.xpose.msra.mxu0 0
        %777 = vmatpush.bf16.xpose.msra.mxu0 0
        %778 = vmatpush.bf16.xpose.msra.mxu0 0
        %779 = vmatpush.bf16.xpose.msra.mxu0 0
        %780 = vmatpush.bf16.xpose.msra.mxu0 0
        %781 = vmatpush.bf16.xpose.msra.mxu0 0
        %782 = vmatpush.bf16.xpose.msra.mxu0 %v773
        %783 = vmatmul.bf16.gmra.mxu0 %v770
        %v784 = vpop.f32.mrf.mxu0
        %v785 = vadd.f32 0.0, %v784
        %v786 = vpop.f32.mrf.mxu0
        %787 = vdwg.mxu0
        %v788 = vsel %vm711, %v785, -inf
        %789 = vmax.xlane.f32.xlu0 %v788
        %v790 = vpop.xlane.xlu0 %789
        %v791 = vsub.f32 %v785, %v790
        %v792 = vmul.f32 %v791, 1.442695
        %v793 = vpow.pop %v792
        %v794 = vsel %vm711, %v793, 0.0
        %795 = vadd.xlane.f32.xlu0 %v794
        %v796 = vpop.xlane.xlu0 %795
        %v797 = vrcp.pop %v796
        %v798 = vmul.f32 %v793, %v797
        %v799 = vpack.c.bf16 %v798, %v798
        %801 = vrot.lane.b32.xlu0 %v710, 120
        %v802 = vpop.permute.xlu0 %801
        %v804 = vsel %vm711, %v799, 0
        %v807 = vsel %vm746, %v802, 0
        %809 = vmatpush.bf16.msra.mxu0 0
        %810 = vmatpush.bf16.msra.mxu0 0
        %811 = vmatpush.bf16.msra.mxu0 0
        %812 = vmatpush.bf16.msra.mxu0 0
        %813 = vmatpush.bf16.msra.mxu0 0
        %814 = vmatpush.bf16.msra.mxu0 0
        %815 = vmatpush.bf16.msra.mxu0 0
        %816 = vmatpush.bf16.msra.mxu0 %v807
        %817 = vmatmul.bf16.gmra.mxu0 %v804
        %v818 = vpop.f32.mrf.mxu0
        %v819 = vadd.f32 0.0, %v818
        %v820 = vpop.f32.mrf.mxu0
        %821 = vdwg.mxu0
        %822 = vrot.lane.b32.xlu0 %v708, 112
        %v823 = vpop.permute.xlu0 %822
        %824 = vrot.lane.b32.xlu0 %v709, 112
        %v825 = vpop.permute.xlu0 %824
        %v827 = vsel %vm711, %v823, 0
        %v830 = vsel %vm711, %v825, 0
        %832 = vmatpush.bf16.xpose.msra.mxu0 0
        %833 = vmatpush.bf16.xpose.msra.mxu0 0
        %834 = vmatpush.bf16.xpose.msra.mxu0 0
        %835 = vmatpush.bf16.xpose.msra.mxu0 0
        %836 = vmatpush.bf16.xpose.msra.mxu0 0
        %837 = vmatpush.bf16.xpose.msra.mxu0 0
        %838 = vmatpush.bf16.xpose.msra.mxu0 0
        %839 = vmatpush.bf16.xpose.msra.mxu0 %v830
        %840 = vmatmul.bf16.gmra.mxu0 %v827
        %v841 = vpop.f32.mrf.mxu0
        %v842 = vadd.f32 0.0, %v841
        %v843 = vpop.f32.mrf.mxu0
        %844 = vdwg.mxu0
        %v845 = vsel %vm711, %v842, -inf
        %846 = vmax.xlane.f32.xlu0 %v845
        %v847 = vpop.xlane.xlu0 %846
        %v848 = vsub.f32 %v842, %v847
        %v849 = vmul.f32 %v848, 1.442695
        %v850 = vpow.pop %v849
        %v851 = vsel %vm711, %v850, 0.0
        %852 = vadd.xlane.f32.xlu0 %v851
        %v853 = vpop.xlane.xlu0 %852
        %v854 = vrcp.pop %v853
        %v855 = vmul.f32 %v850, %v854
        %v856 = vpack.c.bf16 %v855, %v855
        %857 = vrot.lane.b32.xlu0 %v710, 112
        %v858 = vpop.permute.xlu0 %857
        %v860 = vsel %vm711, %v856, 0
        %v863 = vsel %vm746, %v858, 0
        %865 = vmatpush.bf16.msra.mxu0 0
        %866 = vmatpush.bf16.msra.mxu0 0
        %867 = vmatpush.bf16.msra.mxu0 0
        %868 = vmatpush.bf16.msra.mxu0 0
        %869 = vmatpush.bf16.msra.mxu0 0
        %870 = vmatpush.bf16.msra.mxu0 0
        %871 = vmatpush.bf16.msra.mxu0 0
        %872 = vmatpush.bf16.msra.mxu0 %v863
        %873 = vmatmul.bf16.gmra.mxu0 %v860
        %v874 = vpop.f32.mrf.mxu0
        %v875 = vadd.f32 0.0, %v874
        %v876 = vpop.f32.mrf.mxu0
        %877 = vdwg.mxu0
        %878 = vrot.lane.b32.xlu0 %v708, 104
        %v879 = vpop.permute.xlu0 %878
        %880 = vrot.lane.b32.xlu0 %v709, 104
        %v881 = vpop.permute.xlu0 %880
        %v883 = vsel %vm711, %v879, 0
        %v886 = vsel %vm711, %v881, 0
        %888 = vmatpush.bf16.xpose.msra.mxu0 0
        %889 = vmatpush.bf16.xpose.msra.mxu0 0
        %890 = vmatpush.bf16.xpose.msra.mxu0 0
        %891 = vmatpush.bf16.xpose.msra.mxu0 0
        %892 = vmatpush.bf16.xpose.msra.mxu0 0
        %893 = vmatpush.bf16.xpose.msra.mxu0 0
        %894 = vmatpush.bf16.xpose.msra.mxu0 0
        %895 = vmatpush.bf16.xpose.msra.mxu0 %v886
        %896 = vmatmul.bf16.gmra.mxu0 %v883
        %v897 = vpop.f32.mrf.mxu0
        %v898 = vadd.f32 0.0, %v897
        %v899 = vpop.f32.mrf.mxu0
        %900 = vdwg.mxu0
        %v901 = vsel %vm711, %v898, -inf
        %902 = vmax.xlane.f32.xlu0 %v901
        %v903 = vpop.xlane.xlu0 %902
        %v904 = vsub.f32 %v898, %v903
        %v905 = vmul.f32 %v904, 1.442695
        %v906 = vpow.pop %v905
        %v907 = vsel %vm711, %v906, 0.0
        %908 = vadd.xlane.f32.xlu0 %v907
        %v909 = vpop.xlane.xlu0 %908
        %v910 = vrcp.pop %v909
        %v911 = vmul.f32 %v906, %v910
        %v912 = vpack.c.bf16 %v911, %v911
        %913 = vrot.lane.b32.xlu0 %v710, 104
        %v914 = vpop.permute.xlu0 %913
        %v916 = vsel %vm711, %v912, 0
        %v919 = vsel %vm746, %v914, 0
        %921 = vmatpush.bf16.msra.mxu0 0
        %922 = vmatpush.bf16.msra.mxu0 0
        %923 = vmatpush.bf16.msra.mxu0 0
        %924 = vmatpush.bf16.msra.mxu0 0
        %925 = vmatpush.bf16.msra.mxu0 0
        %926 = vmatpush.bf16.msra.mxu0 0
        %927 = vmatpush.bf16.msra.mxu0 0
        %928 = vmatpush.bf16.msra.mxu0 %v919
        %929 = vmatmul.bf16.gmra.mxu0 %v916
        %v930 = vpop.f32.mrf.mxu0
        %v931 = vadd.f32 0.0, %v930
        %v932 = vpop.f32.mrf.mxu0
        %933 = vdwg.mxu0
        %935 = vrot.lane.b32.xlu0 %v819, 8
        %v936 = vpop.permute.xlu0 %935
        %939 = vrot.lane.b32.xlu0 %v875, 16
        %v940 = vpop.permute.xlu0 %939
        %943 = vrot.lane.b32.xlu0 %v931, 24
        %v944 = vpop.permute.xlu0 %943
        %v946 = vsel %vm711, %v760, %v936
        %vm947 = vcmask 130048
        %v948 = vsel %vm947, %v946, %v940
        %vm949 = vcmask 195584
        %v950 = vsel %vm949, %v948, %v944
        %v951 = vpack.c.bf16 %v950, %v950
        %v952 = vld [vmem:[#allocation7] sm:$0xff]
        %v953 = vld [vmem:[#allocation7 + $0x8] sm:$0xff]
        %v954 = vld [vmem:[#allocation7 + $0x10] sm:$0xff]
        %v955 = vld [vmem:[#allocation7 + $0x18] sm:$0xff]
        %v956 = vpack.c.bf16 %v953, %v952
        %v957 = vpack.c.bf16 %v955, %v954
        %v958 = vld [vmem:[#allocation9] sm:$0x1]
        %v960 = vperm.slane %v958, 0
        %v963 = vsel %vm636, %v951, 0
        %965 = vmatpush.bf16.msra.mxu0 0
        %966 = vmatpush.bf16.msra.mxu0 0
        %967 = vmatpush.bf16.msra.mxu0 0
        %968 = vmatpush.bf16.msra.mxu0 0
        %969 = vmatpush.bf16.msra.mxu0 0
        %970 = vmatpush.bf16.msra.mxu0 0
        %971 = vmatpush.bf16.msra.mxu0 %v957
        %972 = vmatpush.bf16.msra.mxu0 %v956
        %973 = vmatmul.bf16.gmra.mxu0 %v963
        %v974 = vpop.f32.mrf.mxu0
        %v975 = vadd.f32 %v960, %v974
        %v976 = vpop.f32.mrf.mxu0
        %977 = vdwg.mxu0
        %v978 = vadd.f32 %v624, %v975
        %v979 = vsel %vm636, %v978, 0.0
        %980 = vadd.xlane.f32.xlu0 %v979
        %v981 = vpop.xlane.xlu0 %980
        %v982 = vrcp.pop 32.0
        %v983 = vmul.f32 32.0, %v982
        %v984 = vsub.f32 1.0, %v983
        %v985 = vmul.f32 %v982, %v984
        %v986 = vadd.f32 %v982, %v985
        %vm987 = vweird.f32 %v982
        %v988 = vsel %vm987, %v982, %v986
        %v989 = vmul.f32 %v981, %v988
        %v990 = vsub.f32 %v978, %v989
        %v991 = vmul.f32 %v990, %v990
        %v992 = vsel %vm636, %v991, 0.0
        %993 = vadd.xlane.f32.xlu0 %v992
        %v994 = vpop.xlane.xlu0 %993
        %v995 = vmul.f32 %v994, %v988
        %v996 = vadd.f32 %v995, 1e-05
        %v997 = vrsqrt.pop %v996
        %v998 = vmul.f32 %v997, %v996
        %v999 = vmul.f32 %v998, %v997
        %v1000 = vmul.f32 0.5, %v999
        %v1001 = vsub.f32 1.5, %v1000
        %v1002 = vmul.f32 %v997, %v1001
        %vm1003 = vweird.f32 %v996
        %vm1004 = vweird.f32 %v997
        %vm1005 = vmor %vm1003, %vm1004
        %v1006 = vsel %vm1005, %v997, %v1002
        %v1007 = vmul.f32 %v990, %v1006
        %v1008 = vld [vmem:[#allocation10] sm:$0x1]
        %v1010 = vperm.slane %v1008, 0
        %v1012 = vmul.f32 %v1007, %v1010
        %v1013 = vld [vmem:[#allocation12] sm:$0x1]
        %v1015 = vperm.slane %v1013, 0
        %v1017 = vadd.f32 %v1012, %v1015
        %1018 = vst.msk [vmem:[%s619] sm:$0xff] %vm636, %v1017
        %p1019 = scmp.lt.s32.totalorder %s29, 1
        %s1020 = scalar_select %p1019, %s29, 1
        %s1021 = smul.addr %s1020, 8
        %s1022 = scalar_lea.vmem %s14, %s1021
        // Predicated region
        $region105: #{decoder_layer_forward.3} parent=75 // pred_check
          %p1023 = pneg %p361
        $region106: #{decoder_layer_forward.3} parent=75 // pred_check_branch
          %1025 = sbr.rel (%p1023) target = $region108
        $region107: #{decoder_layer_forward.3} parent=75 // pred_region
          _
        $region108: #{decoder_layer_forward.3} parent=75 // pred_fallthru
          _
      $region76: #{decoder_layer_forward.3} parent=5 // pred_fallthru
        _
      %p1026 = scmp.le.s32.totalorder 2, %s24
      // Predicated region
      $region109: #{decoder_layer_forward.3} parent=5 // pred_check
        %p1027 = pneg %p1026
      $region110: #{decoder_layer_forward.3} parent=5 // pred_check_branch
        %1029 = sbr.rel (%p1027) target = $region112
      $region111: #{decoder_layer_forward.3} parent=5 // pred_region
        %s1030 = ssub.s32 %s24, 2
        // Predicated region
        $region113: #{decoder_layer_forward.3} parent=111 // pred_check
          %p1031 = pneg %p367
        $region114: #{decoder_layer_forward.3} parent=111 // pred_check_branch
          %1033 = sbr.rel (%p1031) target = $region116
        $region115: #{decoder_layer_forward.3} parent=111 // pred_region
          %p1034 = scmp.lt.s32.totalorder %s30, 1
          %s1035 = scalar_select %p1034, %s30, 1
          %s1036 = smul.addr %s1035, 8
          %s1037 = scalar_lea.vmem %s14, %s1036
        $region116: #{decoder_layer_forward.3} parent=111 // pred_fallthru
          _
      $region112: #{decoder_layer_forward.3} parent=5 // pred_fallthru
        _
    $region6: #{decoder_layer_forward.3} parent=1 // loop_footer
      %s28 = sadd.s32 1, %s24
    $region7: #{decoder_layer_forward.3} parent=1 // loop_footer_branch
      %23 = sbr.rel target = $region3
    $region8: #{decoder_layer_forward.3} parent=1 // loop_exit
      _
    %1038 = vsyncpa [#allocation3], 1
    %s1039 = scalar_lea.sflag [#allocation3], 1
    %1040 = vsyncpa %s1039, 1
    %1041 = vsyncpa [#allocation5], 1
    %1042 = vsyncpa [#allocation8], 1
    %1043 = vsyncpa [#allocation11], 1

</llo_original>
